<compile_context>
chip_gen: v5e
topology: v5e:2x2
jax: 0.10.0
libtpu: 0.0.40
codegen_flags: <defaults>
</compile_context>

<pallas_src>
import functools

import jax
import jax.numpy as jnp
from jax.experimental import pallas as pl
from jax.experimental.pallas import tpu as pltpu


KSIZE = 3          # every conv / convT in this model is 3x3
SPLIT_M = 1024     # M rows above this -> 2 parallel grid steps (feeds both v7x TCs)


def _round_up(x, m):
    return ((x + m - 1) // m) * m


# ----------------------------------------------------------------------------
# Pallas kernel: fused (patches @ weight) + bias + activation
# ----------------------------------------------------------------------------
def _matmul_bias_act_kernel(a_ref, b_ref, bias_ref, o_ref, *, act):
    a = a_ref[...].astype(jnp.bfloat16)          # bf16 MXU operands (no-op if already bf16)
    b = b_ref[...].astype(jnp.bfloat16)
    acc = jnp.dot(a, b, preferred_element_type=jnp.float32)   # f32 accumulate
    acc = acc + bias_ref[...]                    # (1, Ncol) f32, broadcasts over rows
    if act == "relu":
        acc = jnp.maximum(acc, 0.0)
    elif act == "sigmoid":
        # exp + approx reciprocal both land on the (otherwise idle) EUP slot;
        # clamp keeps the output strictly inside [0, 1].
        acc = pl.reciprocal(1.0 + jnp.exp(-acc), approx=True)
        acc = jnp.clip(acc, 0.0, 1.0)
    o_ref[...] = acc.astype(o_ref.dtype)


def matmul_bias_act(patches, wmat, bias, act, out_dtype):
    """patches:(M,K) bf16; wmat:(K,Ncol) bf16; bias:(1,Ncol) f32 -> (M,Ncol) out_dtype."""
    m, k = patches.shape
    _, ncol = wmat.shape
    # Whole-M single step for small layers; 2 parallel steps for the big one so both
    # v7x TensorCores get work.  cdiv-based tiling -> no divisor-search perf cliff.
    ntiles = 2 if m > SPLIT_M else 1
    tm = _round_up(-(-m // ntiles), 8)
    mp = tm * ntiles
    a = patches if mp == m else jnp.pad(patches, ((0, mp - m), (0, 0)))
    out = pl.pallas_call(
        functools.partial(_matmul_bias_act_kernel, act=act),
        out_shape=jax.ShapeDtypeStruct((mp, ncol), out_dtype),
        grid=(ntiles,),
        in_specs=[
            pl.BlockSpec((tm, k), lambda i: (i, 0)),       # full-K block (no 128 pad)
            pl.BlockSpec((k, ncol), lambda i: (0, 0)),     # full weight, resident
            pl.BlockSpec((1, ncol), lambda i: (0, 0)),
        ],
        out_specs=pl.BlockSpec((tm, ncol), lambda i: (i, 0)),   # narrow (masked) store
        compiler_params=pltpu.CompilerParams(
            dimension_semantics=("parallel",),
        ),
    )(a, wmat, bias)
    return out[:m] if mp != m else out


# ----------------------------------------------------------------------------
# Layer specs / host-side glue (NHWC, minimal)
# ----------------------------------------------------------------------------
def layer_specs(colour):
    return (
        dict(kind="conv",  cin=colour, cout=16,     stride=2, pad=1, out_pad=0, act="relu"),
        dict(kind="conv",  cin=16,     cout=8,      stride=2, pad=1, out_pad=0, act="relu"),
        dict(kind="convT", cin=8,      cout=16,     stride=2, pad=1, out_pad=0, act="relu"),
        dict(kind="convT", cin=16,     cout=16,     stride=2, pad=1, out_pad=1, act="relu"),
        dict(kind="convT", cin=16,     cout=8,      stride=2, pad=1, out_pad=1, act="relu"),
        dict(kind="convT", cin=8,      cout=colour, stride=2, pad=1, out_pad=1, act="sigmoid"),
    )


def _im2col_nhwc(x, k, stride):
    """x:(N,Hp,Wp,C) already padded -> ((N*OH*OW, k*k*C), OH, OW). Cols = (dy,dx,ci)."""
    n, hp, wp, c = x.shape
    oh = (hp - k) // stride + 1
    ow = (wp - k) // stride + 1
    cols = []
    for dy in range(k):
        for dx in range(k):
            cols.append(x[:, dy:dy + stride * oh:stride, dx:dx + stride * ow:stride, :])
    p = jnp.stack(cols, axis=3)                       # (N, OH, OW, k*k, C)
    return p.reshape(n * oh * ow, k * k * c), oh, ow


# Sub-pixel (phase) tap map for stride-2 ConvTranspose.  Output-row parity p is
# produced by flipped-kernel rows dy taken at 2x2-window offset a:
#   p=0 -> (a=0, dy=1);   p=1 -> (a=0, dy=0) and (a=1, dy=2).
# The same mapping applies to columns (q, b, dx).
_PHASE_TAPS = {0: ((0, 1),), 1: ((0, 0), (1, 2))}


def pack_params(params, colour):
    """Reorder PyTorch-layout weights into bf16 matmul operands (done once)."""
    packed = []
    for (w, b), s in zip(params, layer_specs(colour)):
        cin, cout = s["cin"], s["cout"]
        if s["kind"] == "conv":
            # w: (Cout, Cin, 3, 3) -> rows ordered (dy, dx, cin)
            wmat = w.transpose(2, 3, 1, 0).reshape(KSIZE * KSIZE * cin, cout)
            bias = b.reshape(1, cout)
        else:
            # Phase-decomposed ConvTranspose: the equivalent stride-1 conv kernel on the
            # zero-dilated input is the spatially flipped, channel-swapped weight.  Fold
            # the dilation zeros away so each layer is ONE 2x2-window matmul that emits
            # all 4 output phases at once.
            wf = jnp.flip(w, axis=(2, 3)).transpose(2, 3, 0, 1)     # (dy, dx, Cin, Cout)
            w4 = jnp.zeros((2, 2, cin, 2, 2, cout), w.dtype)        # (a, b, ci, p, q, co)
            for p in (0, 1):
                for q in (0, 1):
                    for a, dy in _PHASE_TAPS[p]:
                        for bb, dx in _PHASE_TAPS[q]:
                            w4 = w4.at[a, bb, :, p, q, :].set(wf[dy, dx])
            wmat = w4.reshape(4 * cin, 4 * cout)
            bias = jnp.tile(b, 4).reshape(1, 4 * cout)
        packed.append((wmat.astype(jnp.bfloat16), bias.astype(jnp.float32)))
    return packed


def _conv2d_nhwc(x, wmat, bias, s, out_dtype):
    n = x.shape[0]
    pad = s["pad"]
    xp = jnp.pad(x, ((0, 0), (pad, pad), (pad, pad), (0, 0)))
    patches, oh, ow = _im2col_nhwc(xp, KSIZE, s["stride"])
    out = matmul_bias_act(patches, wmat, bias, s["act"], out_dtype)
    return out.reshape(n, oh, ow, s["cout"])


def _conv_transpose2d_nhwc(x, wmat, bias, s, out_dtype):
    n = x.shape[0]
    cout = s["cout"]
    # One-pixel bottom/right zero pad supplies the X[i+1]/X[j+1] taps.
    xp = jnp.pad(x, ((0, 0), (0, 1), (0, 1), (0, 0)))
    patches, oh, ow = _im2col_nhwc(xp, 2, 1)              # oh/ow == input H/W
    out = matmul_bias_act(patches, wmat, bias, s["act"], out_dtype)
    y = out.reshape(n, oh, ow, 2, 2, cout)                # (n, i, j, p, q, co)
    y = y.transpose(0, 1, 3, 2, 4, 5).reshape(n, 2 * oh, 2 * ow, cout)   # depth->space
    if s["out_pad"] == 0:
        y = y[:, : 2 * oh - 1, : 2 * ow - 1, :]
    return y


def autoencoder4x_forward(x_nchw, packed, *, colour):
    specs = layer_specs(colour)
    x = x_nchw.transpose(0, 2, 3, 1).astype(jnp.bfloat16)   # NHWC; bf16 intermediates
    for li, ((wmat, bias), s) in enumerate(zip(packed, specs)):
        out_dtype = jnp.float32 if li == len(specs) - 1 else jnp.bfloat16
        if s["kind"] == "conv":
            x = _conv2d_nhwc(x, wmat, bias, s, out_dtype)
        else:
            x = _conv_transpose2d_nhwc(x, wmat, bias, s, out_dtype)
    return x.transpose(0, 3, 1, 2)                           # back to NCHW, f32


# ----------------------------------------------------------------------------
# Params + pure-JAX f32 reference (same math) for a numerical self-check
# ----------------------------------------------------------------------------
def init_params(colour, key):
    """Deterministic synthetic init mirroring the module's parameter shapes."""
    specs = [
        ("conv",  (16, colour, 3, 3), colour * 9),
        ("conv",  (8, 16, 3, 3),      16 * 9),
        ("convT", (8, 16, 3, 3),      8 * 9),
        ("convT", (16, 16, 3, 3),     16 * 9),
        ("convT", (16, 8, 3, 3),      16 * 9),
        ("convT", (8, colour, 3, 3),  8 * 9),
    ]
    params = []
    for kind, wshape, fan_in in specs:
        key, kw, kb = jax.random.split(key, 3)
        bound = 1.0 / jnp.sqrt(float(fan_in))
        w = jax.random.uniform(kw, wshape, jnp.float32, -bound, bound)
        n_out = wshape[0] if kind == "conv" else wshape[1]
        b = jax.random.uniform(kb, (n_out,), jnp.float32, -bound, bound)
        params.append((w, b))
    return params


def _ref_forward(x_nchw, params, colour):
    x = x_nchw.transpose(0, 2, 3, 1)
    for (w, b), s in zip(params, layer_specs(colour)):
        if s["kind"] == "conv":
            wk = w.transpose(2, 3, 1, 0)              # HWIO
            y = jax.lax.conv_general_dilated(
                x, wk, window_strides=(s["stride"],) * 2,
                padding=[(s["pad"], s["pad"])] * 2,
                dimension_numbers=("NHWC", "HWIO", "NHWC"))
        else:
            wk = jnp.flip(w, axis=(2, 3)).transpose(2, 3, 0, 1)   # HWIO
            plo = KSIZE - 1 - s["pad"]
            phi = plo + s["out_pad"]
            y = jax.lax.conv_general_dilated(
                x, wk, window_strides=(1, 1),
                padding=[(plo, phi)] * 2,
                lhs_dilation=(s["stride"],) * 2,
                dimension_numbers=("NHWC", "HWIO", "NHWC"))
        y = y + b.reshape(1, 1, 1, -1)
        x = jnp.maximum(y, 0.0) if s["act"] == "relu" else jax.nn.sigmoid(y)
    return x.transpose(0, 3, 1, 2)


if __name__ == "__main__":
    colour = 4
    key = jax.random.PRNGKey(0)
    k_x, k_p = jax.random.split(key)
    x = jax.random.normal(k_x, (2, colour, 16, 16), jnp.float32)
    params = init_params(colour, k_p)
    packed = pack_params(params, colour)              # weight packing done once

    fwd = jax.jit(functools.partial(autoencoder4x_forward, colour=colour))
    out = jax.block_until_ready(fwd(x, packed))

    # shape sanity: 16 -> 8 -> 4 (enc); 4 -> 7 -> 14 -> 28 -> 56 (dec)
    assert out.shape == (2, colour, 56, 56), out.shape
    assert out.dtype == jnp.float32
    # sigmoid is clamped in-kernel -> strict range
    assert bool(jnp.all((out >= 0.0) & (out <= 1.0)))

    # numerical check vs pure-JAX f32 reference (bf16 operands/intermediates -> loose tol)
    ref = _ref_forward(x, params, colour)
    max_err = float(jnp.max(jnp.abs(out - ref)))
    assert max_err < 5e-2, max_err

    print("KERNEL_OK")
</pallas_src>

<mosaic_0001>
module attributes {stable_mosaic.version = 11 : i64} {
  func.func @_matmul_bias_act_kernel(%arg0: i32, %arg1: memref<128x36xbf16, #tpu.memory_space<vmem>>, %arg2: memref<36x16xbf16, #tpu.memory_space<vmem>>, %arg3: memref<1x16xf32, #tpu.memory_space<vmem>>, %arg4: memref<128x16xbf16, #tpu.memory_space<vmem>>) attributes {dimension_semantics = [#tpu.dimension_semantics<parallel>], iteration_bounds = array<i64: 1>, scalar_prefetch = 0 : i64, scratch_operands = 0 : i64, tpu.core_type = #tpu.core_type<tc>, window_params = [{transform_indices = @transform_0, window_bounds = array<i64: 128, 36>}, {pipeline_mode = #tpu.pipeline_mode<synchronous>, transform_indices = @transform_1, window_bounds = array<i64: 36, 16>}, {pipeline_mode = #tpu.pipeline_mode<synchronous>, transform_indices = @transform_2, window_bounds = array<i64: 1, 16>}, {transform_indices = @transform_3, window_bounds = array<i64: 128, 16>}]} {
    %c0 = arith.constant 0 : index
    %c0_0 = arith.constant 0 : index
    %0 = vector.load %arg1[%c0, %c0_0] : memref<128x36xbf16, #tpu.memory_space<vmem>>, vector<128x36xbf16>
    %c0_1 = arith.constant 0 : index
    %c0_2 = arith.constant 0 : index
    %1 = vector.load %arg2[%c0_1, %c0_2] : memref<36x16xbf16, #tpu.memory_space<vmem>>, vector<36x16xbf16>
    %cst = arith.constant dense<0.000000e+00> : vector<128x16xf32>
    %2 = tpu.matmul %0, %1, %cst {dimension_numbers = #tpu.dot_dimension_numbers<[1], [0], [0], [1], [0, 0, 1, 1], [], []>} : vector<128x36xbf16>, vector<36x16xbf16>, vector<128x16xf32> -> vector<128x16xf32>
    %c0_3 = arith.constant 0 : index
    %c0_4 = arith.constant 0 : index
    %3 = vector.load %arg3[%c0_3, %c0_4] : memref<1x16xf32, #tpu.memory_space<vmem>>, vector<1x16xf32>
    %4 = vector.broadcast %3 : vector<1x16xf32> to vector<128x16xf32>
    %5 = arith.addf %2, %4 : vector<128x16xf32>
    %cst_5 = arith.constant 0.000000e+00 : f32
    %6 = vector.broadcast %cst_5 : f32 to vector<128x16xf32>
    %7 = arith.maximumf %5, %6 : vector<128x16xf32>
    %8 = arith.truncf %7 : vector<128x16xf32> to vector<128x16xbf16>
    %c0_6 = arith.constant 0 : index
    %c0_7 = arith.constant 0 : index
    %9 = vector.load %arg4[%c0_6, %c0_7] : memref<128x16xbf16, #tpu.memory_space<vmem>>, vector<128x16xbf16>
    tpu.vector_store %arg4[%c0_6, %c0_7], %8 {strides = array<i32>} : memref<128x16xbf16, #tpu.memory_space<vmem>>, vector<128x16xbf16>,
    return
  }
  func.func @transform_0(%arg0: i32) -> (i32, i32) {
    %c0_i32 = arith.constant 0 : i32
    %c0_i32_0 = arith.constant 0 : i32
    return %arg0, %c0_i32 : i32, i32
  }
  func.func @transform_1(%arg0: i32) -> (i32, i32) {
    %c0_i32 = arith.constant 0 : i32
    %c0_i32_0 = arith.constant 0 : i32
    %c0_i32_1 = arith.constant 0 : i32
    return %c0_i32, %c0_i32_0 : i32, i32
  }
  func.func @transform_2(%arg0: i32) -> (i32, i32) {
    %c0_i32 = arith.constant 0 : i32
    %c0_i32_0 = arith.constant 0 : i32
    %c0_i32_1 = arith.constant 0 : i32
    return %c0_i32, %c0_i32_0 : i32, i32
  }
  func.func @transform_3(%arg0: i32) -> (i32, i32) {
    %c0_i32 = arith.constant 0 : i32
    %c0_i32_0 = arith.constant 0 : i32
    return %arg0, %c0_i32 : i32, i32
  }
}

module attributes {stable_mosaic.version = 11 : i64} {
  func.func @_matmul_bias_act_kernel(%arg0: i32, %arg1: memref<32x144xbf16, #tpu.memory_space<vmem>>, %arg2: memref<144x8xbf16, #tpu.memory_space<vmem>>, %arg3: memref<1x8xf32, #tpu.memory_space<vmem>>, %arg4: memref<32x8xbf16, #tpu.memory_space<vmem>>) attributes {dimension_semantics = [#tpu.dimension_semantics<parallel>], iteration_bounds = array<i64: 1>, scalar_prefetch = 0 : i64, scratch_operands = 0 : i64, tpu.core_type = #tpu.core_type<tc>, window_params = [{transform_indices = @transform_0, window_bounds = array<i64: 32, 144>}, {pipeline_mode = #tpu.pipeline_mode<synchronous>, transform_indices = @transform_1, window_bounds = array<i64: 144, 8>}, {pipeline_mode = #tpu.pipeline_mode<synchronous>, transform_indices = @transform_2, window_bounds = array<i64: 1, 8>}, {transform_indices = @transform_3, window_bounds = array<i64: 32, 8>}]} {
    %c0 = arith.constant 0 : index
    %c0_0 = arith.constant 0 : index
    %0 = vector.load %arg1[%c0, %c0_0] : memref<32x144xbf16, #tpu.memory_space<vmem>>, vector<32x144xbf16>
    %c0_1 = arith.constant 0 : index
    %c0_2 = arith.constant 0 : index
    %1 = vector.load %arg2[%c0_1, %c0_2] : memref<144x8xbf16, #tpu.memory_space<vmem>>, vector<144x8xbf16>
    %cst = arith.constant dense<0.000000e+00> : vector<32x8xf32>
    %2 = tpu.matmul %0, %1, %cst {dimension_numbers = #tpu.dot_dimension_numbers<[1], [0], [0], [1], [0, 0, 1, 1], [], []>} : vector<32x144xbf16>, vector<144x8xbf16>, vector<32x8xf32> -> vector<32x8xf32>
    %c0_3 = arith.constant 0 : index
    %c0_4 = arith.constant 0 : index
    %3 = vector.load %arg3[%c0_3, %c0_4] : memref<1x8xf32, #tpu.memory_space<vmem>>, vector<1x8xf32>
    %4 = vector.broadcast %3 : vector<1x8xf32> to vector<32x8xf32>
    %5 = arith.addf %2, %4 : vector<32x8xf32>
    %cst_5 = arith.constant 0.000000e+00 : f32
    %6 = vector.broadcast %cst_5 : f32 to vector<32x8xf32>
    %7 = arith.maximumf %5, %6 : vector<32x8xf32>
    %8 = arith.truncf %7 : vector<32x8xf32> to vector<32x8xbf16>
    %c0_6 = arith.constant 0 : index
    %c0_7 = arith.constant 0 : index
    %9 = vector.load %arg4[%c0_6, %c0_7] : memref<32x8xbf16, #tpu.memory_space<vmem>>, vector<32x8xbf16>
    tpu.vector_store %arg4[%c0_6, %c0_7], %8 {strides = array<i32>} : memref<32x8xbf16, #tpu.memory_space<vmem>>, vector<32x8xbf16>,
    return
  }
  func.func @transform_0(%arg0: i32) -> (i32, i32) {
    %c0_i32 = arith.constant 0 : i32
    %c0_i32_0 = arith.constant 0 : i32
    return %arg0, %c0_i32 : i32, i32
  }
  func.func @transform_1(%arg0: i32) -> (i32, i32) {
    %c0_i32 = arith.constant 0 : i32
    %c0_i32_0 = arith.constant 0 : i32
    %c0_i32_1 = arith.constant 0 : i32
    return %c0_i32, %c0_i32_0 : i32, i32
  }
  func.func @transform_2(%arg0: i32) -> (i32, i32) {
    %c0_i32 = arith.constant 0 : i32
    %c0_i32_0 = arith.constant 0 : i32
    %c0_i32_1 = arith.constant 0 : i32
    return %c0_i32, %c0_i32_0 : i32, i32
  }
  func.func @transform_3(%arg0: i32) -> (i32, i32) {
    %c0_i32 = arith.constant 0 : i32
    %c0_i32_0 = arith.constant 0 : i32
    return %arg0, %c0_i32 : i32, i32
  }
}

module attributes {stable_mosaic.version = 11 : i64} {
  func.func @_matmul_bias_act_kernel(%arg0: i32, %arg1: memref<32x32xbf16, #tpu.memory_space<vmem>>, %arg2: memref<32x64xbf16, #tpu.memory_space<vmem>>, %arg3: memref<1x64xf32, #tpu.memory_space<vmem>>, %arg4: memref<32x64xbf16, #tpu.memory_space<vmem>>) attributes {dimension_semantics = [#tpu.dimension_semantics<parallel>], iteration_bounds = array<i64: 1>, scalar_prefetch = 0 : i64, scratch_operands = 0 : i64, tpu.core_type = #tpu.core_type<tc>, window_params = [{transform_indices = @transform_0, window_bounds = array<i64: 32, 32>}, {pipeline_mode = #tpu.pipeline_mode<synchronous>, transform_indices = @transform_1, window_bounds = array<i64: 32, 64>}, {pipeline_mode = #tpu.pipeline_mode<synchronous>, transform_indices = @transform_2, window_bounds = array<i64: 1, 64>}, {transform_indices = @transform_3, window_bounds = array<i64: 32, 64>}]} {
    %c0 = arith.constant 0 : index
    %c0_0 = arith.constant 0 : index
    %0 = vector.load %arg1[%c0, %c0_0] : memref<32x32xbf16, #tpu.memory_space<vmem>>, vector<32x32xbf16>
    %c0_1 = arith.constant 0 : index
    %c0_2 = arith.constant 0 : index
    %1 = vector.load %arg2[%c0_1, %c0_2] : memref<32x64xbf16, #tpu.memory_space<vmem>>, vector<32x64xbf16>
    %cst = arith.constant dense<0.000000e+00> : vector<32x64xf32>
    %2 = tpu.matmul %0, %1, %cst {dimension_numbers = #tpu.dot_dimension_numbers<[1], [0], [0], [1], [0, 0, 1, 1], [], []>} : vector<32x32xbf16>, vector<32x64xbf16>, vector<32x64xf32> -> vector<32x64xf32>
    %c0_3 = arith.constant 0 : index
    %c0_4 = arith.constant 0 : index
    %3 = vector.load %arg3[%c0_3, %c0_4] : memref<1x64xf32, #tpu.memory_space<vmem>>, vector<1x64xf32>
    %4 = vector.broadcast %3 : vector<1x64xf32> to vector<32x64xf32>
    %5 = arith.addf %2, %4 : vector<32x64xf32>
    %cst_5 = arith.constant 0.000000e+00 : f32
    %6 = vector.broadcast %cst_5 : f32 to vector<32x64xf32>
    %7 = arith.maximumf %5, %6 : vector<32x64xf32>
    %8 = arith.truncf %7 : vector<32x64xf32> to vector<32x64xbf16>
    %c0_6 = arith.constant 0 : index
    %c0_7 = arith.constant 0 : index
    %9 = vector.load %arg4[%c0_6, %c0_7] : memref<32x64xbf16, #tpu.memory_space<vmem>>, vector<32x64xbf16>
    tpu.vector_store %arg4[%c0_6, %c0_7], %8 {strides = array<i32>} : memref<32x64xbf16, #tpu.memory_space<vmem>>, vector<32x64xbf16>,
    return
  }
  func.func @transform_0(%arg0: i32) -> (i32, i32) {
    %c0_i32 = arith.constant 0 : i32
    %c0_i32_0 = arith.constant 0 : i32
    return %arg0, %c0_i32 : i32, i32
  }
  func.func @transform_1(%arg0: i32) -> (i32, i32) {
    %c0_i32 = arith.constant 0 : i32
    %c0_i32_0 = arith.constant 0 : i32
    %c0_i32_1 = arith.constant 0 : i32
    return %c0_i32, %c0_i32_0 : i32, i32
  }
  func.func @transform_2(%arg0: i32) -> (i32, i32) {
    %c0_i32 = arith.constant 0 : i32
    %c0_i32_0 = arith.constant 0 : i32
    %c0_i32_1 = arith.constant 0 : i32
    return %c0_i32, %c0_i32_0 : i32, i32
  }
  func.func @transform_3(%arg0: i32) -> (i32, i32) {
    %c0_i32 = arith.constant 0 : i32
    %c0_i32_0 = arith.constant 0 : i32
    return %arg0, %c0_i32 : i32, i32
  }
}

module attributes {stable_mosaic.version = 11 : i64} {
  func.func @_matmul_bias_act_kernel(%arg0: i32, %arg1: memref<104x64xbf16, #tpu.memory_space<vmem>>, %arg2: memref<64x64xbf16, #tpu.memory_space<vmem>>, %arg3: memref<1x64xf32, #tpu.memory_space<vmem>>, %arg4: memref<104x64xbf16, #tpu.memory_space<vmem>>) attributes {dimension_semantics = [#tpu.dimension_semantics<parallel>], iteration_bounds = array<i64: 1>, scalar_prefetch = 0 : i64, scratch_operands = 0 : i64, tpu.core_type = #tpu.core_type<tc>, window_params = [{transform_indices = @transform_0, window_bounds = array<i64: 104, 64>}, {pipeline_mode = #tpu.pipeline_mode<synchronous>, transform_indices = @transform_1, window_bounds = array<i64: 64, 64>}, {pipeline_mode = #tpu.pipeline_mode<synchronous>, transform_indices = @transform_2, window_bounds = array<i64: 1, 64>}, {transform_indices = @transform_3, window_bounds = array<i64: 104, 64>}]} {
    %c0 = arith.constant 0 : index
    %c0_0 = arith.constant 0 : index
    %0 = vector.load %arg1[%c0, %c0_0] : memref<104x64xbf16, #tpu.memory_space<vmem>>, vector<104x64xbf16>
    %c0_1 = arith.constant 0 : index
    %c0_2 = arith.constant 0 : index
    %1 = vector.load %arg2[%c0_1, %c0_2] : memref<64x64xbf16, #tpu.memory_space<vmem>>, vector<64x64xbf16>
    %cst = arith.constant dense<0.000000e+00> : vector<104x64xf32>
    %2 = tpu.matmul %0, %1, %cst {dimension_numbers = #tpu.dot_dimension_numbers<[1], [0], [0], [1], [0, 0, 1, 1], [], []>} : vector<104x64xbf16>, vector<64x64xbf16>, vector<104x64xf32> -> vector<104x64xf32>
    %c0_3 = arith.constant 0 : index
    %c0_4 = arith.constant 0 : index
    %3 = vector.load %arg3[%c0_3, %c0_4] : memref<1x64xf32, #tpu.memory_space<vmem>>, vector<1x64xf32>
    %4 = vector.broadcast %3 : vector<1x64xf32> to vector<104x64xf32>
    %5 = arith.addf %2, %4 : vector<104x64xf32>
    %cst_5 = arith.constant 0.000000e+00 : f32
    %6 = vector.broadcast %cst_5 : f32 to vector<104x64xf32>
    %7 = arith.maximumf %5, %6 : vector<104x64xf32>
    %8 = arith.truncf %7 : vector<104x64xf32> to vector<104x64xbf16>
    %c0_6 = arith.constant 0 : index
    %c0_7 = arith.constant 0 : index
    %9 = vector.load %arg4[%c0_6, %c0_7] : memref<104x64xbf16, #tpu.memory_space<vmem>>, vector<104x64xbf16>
    tpu.vector_store %arg4[%c0_6, %c0_7], %8 {strides = array<i32>} : memref<104x64xbf16, #tpu.memory_space<vmem>>, vector<104x64xbf16>,
    return
  }
  func.func @transform_0(%arg0: i32) -> (i32, i32) {
    %c0_i32 = arith.constant 0 : i32
    %c0_i32_0 = arith.constant 0 : i32
    return %arg0, %c0_i32 : i32, i32
  }
  func.func @transform_1(%arg0: i32) -> (i32, i32) {
    %c0_i32 = arith.constant 0 : i32
    %c0_i32_0 = arith.constant 0 : i32
    %c0_i32_1 = arith.constant 0 : i32
    return %c0_i32, %c0_i32_0 : i32, i32
  }
  func.func @transform_2(%arg0: i32) -> (i32, i32) {
    %c0_i32 = arith.constant 0 : i32
    %c0_i32_0 = arith.constant 0 : i32
    %c0_i32_1 = arith.constant 0 : i32
    return %c0_i32, %c0_i32_0 : i32, i32
  }
  func.func @transform_3(%arg0: i32) -> (i32, i32) {
    %c0_i32 = arith.constant 0 : i32
    %c0_i32_0 = arith.constant 0 : i32
    return %arg0, %c0_i32 : i32, i32
  }
}

module attributes {stable_mosaic.version = 11 : i64} {
  func.func @_matmul_bias_act_kernel(%arg0: i32, %arg1: memref<392x64xbf16, #tpu.memory_space<vmem>>, %arg2: memref<64x32xbf16, #tpu.memory_space<vmem>>, %arg3: memref<1x32xf32, #tpu.memory_space<vmem>>, %arg4: memref<392x32xbf16, #tpu.memory_space<vmem>>) attributes {dimension_semantics = [#tpu.dimension_semantics<parallel>], iteration_bounds = array<i64: 1>, scalar_prefetch = 0 : i64, scratch_operands = 0 : i64, tpu.core_type = #tpu.core_type<tc>, window_params = [{transform_indices = @transform_0, window_bounds = array<i64: 392, 64>}, {pipeline_mode = #tpu.pipeline_mode<synchronous>, transform_indices = @transform_1, window_bounds = array<i64: 64, 32>}, {pipeline_mode = #tpu.pipeline_mode<synchronous>, transform_indices = @transform_2, window_bounds = array<i64: 1, 32>}, {transform_indices = @transform_3, window_bounds = array<i64: 392, 32>}]} {
    %c0 = arith.constant 0 : index
    %c0_0 = arith.constant 0 : index
    %0 = vector.load %arg1[%c0, %c0_0] : memref<392x64xbf16, #tpu.memory_space<vmem>>, vector<392x64xbf16>
    %c0_1 = arith.constant 0 : index
    %c0_2 = arith.constant 0 : index
    %1 = vector.load %arg2[%c0_1, %c0_2] : memref<64x32xbf16, #tpu.memory_space<vmem>>, vector<64x32xbf16>
    %cst = arith.constant dense<0.000000e+00> : vector<392x32xf32>
    %2 = tpu.matmul %0, %1, %cst {dimension_numbers = #tpu.dot_dimension_numbers<[1], [0], [0], [1], [0, 0, 1, 1], [], []>} : vector<392x64xbf16>, vector<64x32xbf16>, vector<392x32xf32> -> vector<392x32xf32>
    %c0_3 = arith.constant 0 : index
    %c0_4 = arith.constant 0 : index
    %3 = vector.load %arg3[%c0_3, %c0_4] : memref<1x32xf32, #tpu.memory_space<vmem>>, vector<1x32xf32>
    %4 = vector.broadcast %3 : vector<1x32xf32> to vector<392x32xf32>
    %5 = arith.addf %2, %4 : vector<392x32xf32>
    %cst_5 = arith.constant 0.000000e+00 : f32
    %6 = vector.broadcast %cst_5 : f32 to vector<392x32xf32>
    %7 = arith.maximumf %5, %6 : vector<392x32xf32>
    %8 = arith.truncf %7 : vector<392x32xf32> to vector<392x32xbf16>
    %c0_6 = arith.constant 0 : index
    %c0_7 = arith.constant 0 : index
    %9 = vector.load %arg4[%c0_6, %c0_7] : memref<392x32xbf16, #tpu.memory_space<vmem>>, vector<392x32xbf16>
    tpu.vector_store %arg4[%c0_6, %c0_7], %8 {strides = array<i32>} : memref<392x32xbf16, #tpu.memory_space<vmem>>, vector<392x32xbf16>,
    return
  }
  func.func @transform_0(%arg0: i32) -> (i32, i32) {
    %c0_i32 = arith.constant 0 : i32
    %c0_i32_0 = arith.constant 0 : i32
    return %arg0, %c0_i32 : i32, i32
  }
  func.func @transform_1(%arg0: i32) -> (i32, i32) {
    %c0_i32 = arith.constant 0 : i32
    %c0_i32_0 = arith.constant 0 : i32
    %c0_i32_1 = arith.constant 0 : i32
    return %c0_i32, %c0_i32_0 : i32, i32
  }
  func.func @transform_2(%arg0: i32) -> (i32, i32) {
    %c0_i32 = arith.constant 0 : i32
    %c0_i32_0 = arith.constant 0 : i32
    %c0_i32_1 = arith.constant 0 : i32
    return %c0_i32, %c0_i32_0 : i32, i32
  }
  func.func @transform_3(%arg0: i32) -> (i32, i32) {
    %c0_i32 = arith.constant 0 : i32
    %c0_i32_0 = arith.constant 0 : i32
    return %arg0, %c0_i32 : i32, i32
  }
}

module attributes {stable_mosaic.version = 11 : i64} {
  func.func @_matmul_bias_act_kernel(%arg0: i32, %arg1: memref<784x32xbf16, #tpu.memory_space<vmem>>, %arg2: memref<32x16xbf16, #tpu.memory_space<vmem>>, %arg3: memref<1x16xf32, #tpu.memory_space<vmem>>, %arg4: memref<784x16xf32, #tpu.memory_space<vmem>>) attributes {dimension_semantics = [#tpu.dimension_semantics<parallel>], iteration_bounds = array<i64: 2>, scalar_prefetch = 0 : i64, scratch_operands = 0 : i64, tpu.core_type = #tpu.core_type<tc>, window_params = [{transform_indices = @transform_0, window_bounds = array<i64: 784, 32>}, {pipeline_mode = #tpu.pipeline_mode<synchronous>, transform_indices = @transform_1, window_bounds = array<i64: 32, 16>}, {pipeline_mode = #tpu.pipeline_mode<synchronous>, transform_indices = @transform_2, window_bounds = array<i64: 1, 16>}, {transform_indices = @transform_3, window_bounds = array<i64: 784, 16>}]} {
    %c0 = arith.constant 0 : index
    %c0_0 = arith.constant 0 : index
    %0 = vector.load %arg1[%c0, %c0_0] : memref<784x32xbf16, #tpu.memory_space<vmem>>, vector<784x32xbf16>
    %c0_1 = arith.constant 0 : index
    %c0_2 = arith.constant 0 : index
    %1 = vector.load %arg2[%c0_1, %c0_2] : memref<32x16xbf16, #tpu.memory_space<vmem>>, vector<32x16xbf16>
    %cst = arith.constant dense<0.000000e+00> : vector<784x16xf32>
    %2 = tpu.matmul %0, %1, %cst {dimension_numbers = #tpu.dot_dimension_numbers<[1], [0], [0], [1], [0, 0, 1, 1], [], []>} : vector<784x32xbf16>, vector<32x16xbf16>, vector<784x16xf32> -> vector<784x16xf32>
    %c0_3 = arith.constant 0 : index
    %c0_4 = arith.constant 0 : index
    %3 = vector.load %arg3[%c0_3, %c0_4] : memref<1x16xf32, #tpu.memory_space<vmem>>, vector<1x16xf32>
    %4 = vector.broadcast %3 : vector<1x16xf32> to vector<784x16xf32>
    %5 = arith.addf %2, %4 : vector<784x16xf32>
    %cst_5 = arith.constant 0.000000e+00 : f32
    %6 = vector.broadcast %cst_5 : f32 to vector<784x16xf32>
    %7 = arith.subf %6, %5 : vector<784x16xf32>
    %8 = math.exp %7 : vector<784x16xf32>
    %cst_6 = arith.constant 1.000000e+00 : f32
    %9 = vector.broadcast %cst_6 : f32 to vector<784x16xf32>
    %10 = arith.addf %9, %8 : vector<784x16xf32>
    %11 = tpu.reciprocal %10 {approx = true} : vector<784x16xf32> -> vector<784x16xf32>
    %cst_7 = arith.constant 0.000000e+00 : f32
    %cst_8 = arith.constant 1.000000e+00 : f32
    %12 = vector.broadcast %cst_7 : f32 to vector<784x16xf32>
    %13 = arith.maximumf %12, %11 : vector<784x16xf32>
    %14 = vector.broadcast %cst_8 : f32 to vector<784x16xf32>
    %15 = arith.minimumf %14, %13 : vector<784x16xf32>
    %c0_9 = arith.constant 0 : index
    %c0_10 = arith.constant 0 : index
    %16 = vector.load %arg4[%c0_9, %c0_10] : memref<784x16xf32, #tpu.memory_space<vmem>>, vector<784x16xf32>
    tpu.vector_store %arg4[%c0_9, %c0_10], %15 {strides = array<i32>} : memref<784x16xf32, #tpu.memory_space<vmem>>, vector<784x16xf32>,
    return
  }
  func.func @transform_0(%arg0: i32) -> (i32, i32) {
    %c0_i32 = arith.constant 0 : i32
    %c0_i32_0 = arith.constant 0 : i32
    return %arg0, %c0_i32 : i32, i32
  }
  func.func @transform_1(%arg0: i32) -> (i32, i32) {
    %c0_i32 = arith.constant 0 : i32
    %c0_i32_0 = arith.constant 0 : i32
    %c0_i32_1 = arith.constant 0 : i32
    return %c0_i32, %c0_i32_0 : i32, i32
  }
  func.func @transform_2(%arg0: i32) -> (i32, i32) {
    %c0_i32 = arith.constant 0 : i32
    %c0_i32_0 = arith.constant 0 : i32
    %c0_i32_1 = arith.constant 0 : i32
    return %c0_i32, %c0_i32_0 : i32, i32
  }
  func.func @transform_3(%arg0: i32) -> (i32, i32) {
    %c0_i32 = arith.constant 0 : i32
    %c0_i32_0 = arith.constant 0 : i32
    return %arg0, %c0_i32 : i32, i32
  }
}

</mosaic_0001>

<llo_original>
// kernel: autoencoder4x_forward.6
$region0: #{autoencoder4x_forward.6}
  #allocation0 [shape = 'u32[]', space=smem, size = 0x4, offset = 0x4, fixed_abs, tag = 'smem constant byte address 0x4 - core index']
  #allocation1 [shape = 'u32[72,128]{1,0:T(1,128)}', space=vmem, size = 0x9000, scoped, tag = 'internal scratch']
  %s0 = inlined_call_operand.vmem [shape: bf16[128,36], index: 0, kind: input, shape index: {}]
  %s1 = inlined_call_operand.vmem [shape: bf16[36,16], index: 1, kind: input, shape index: {}]
  %s2 = inlined_call_operand.hbm [shape: f32[1,16], index: 2, kind: input, shape index: {}]
  %s3 = inlined_call_operand.vmem [shape: bf16[128,16], index: 3, kind: output, shape index: {}]
  %s4 = sld [smem:[#allocation0]]
  $region26: #{autoencoder4x_forward.6} parent=0
    _
  %s6 = ssub.s32 1, %s4
  %s7 = scalar_select 0, %s6, %s4
  $region1: #{autoencoder4x_forward.6} parent=0
    #allocation2 [shape = 'u8[512]{0}', space=vmem, size = 0x400, scoped, tag = 'input window, operand 2, single buffered']
    #allocation3 [shape = 's32[1]{0}', space=sflag, size = 0x4, scoped, tag = 'scoped memory for autoencoder4x_forward.6']
    %8 = vsyncpa [#allocation3], 0
    // Predicated region
    $region2: #{autoencoder4x_forward.6} parent=1 // pred_check
      _
    $region3: #{autoencoder4x_forward.6} parent=1 // pred_check_branch
      %10 = sbr.rel (0) target = $region5
    $region4: #{autoencoder4x_forward.6} parent=1 // pred_region
      _
    $region5: #{autoencoder4x_forward.6} parent=1 // pred_fallthru
      _
    // Predicated region
    $region6: #{autoencoder4x_forward.6} parent=1 // pred_check
      _
    $region7: #{autoencoder4x_forward.6} parent=1 // pred_check_branch
      %12 = sbr.rel (0) target = $region9
    $region8: #{autoencoder4x_forward.6} parent=1 // pred_region
      _
    $region9: #{autoencoder4x_forward.6} parent=1 // pred_fallthru
      _
    // Predicated region
    $region10: #{autoencoder4x_forward.6} parent=1 // pred_check
      _
    $region11: #{autoencoder4x_forward.6} parent=1 // pred_check_branch
      %14 = sbr.rel (0) target = $region13
    $region12: #{autoencoder4x_forward.6} parent=1 // pred_region
      %16 = vsyncadd [#allocation3], 0
      %s18 = sshll.u32 %s2, 4
      %s19 = int_to_ptr.hbm [resolvable:$true] %s18
      %s20 = sshll.u32 [#allocation2], 4
      %s21 = int_to_ptr.vmem [resolvable:$true] %s20
      %23 = dma.hbm_to_vmem [thread:$0]  %s19, 16, %s21, [#allocation3]
    $region13: #{autoencoder4x_forward.6} parent=1 // pred_fallthru
      _
    // Predicated region
    $region14: #{autoencoder4x_forward.6} parent=1 // pred_check
      _
    $region15: #{autoencoder4x_forward.6} parent=1 // pred_check_branch
      %25 = sbr.rel (0) target = $region17
    $region16: #{autoencoder4x_forward.6} parent=1 // pred_region
      %27 = dma.done [#allocation3], 16
    $region17: #{autoencoder4x_forward.6} parent=1 // pred_fallthru
      _
    %v29 = vld [vmem:[%s0] sm:$0xf]
    %v30 = vld [vmem:[%s0 + $0x4] sm:$0xf]
    %v31 = vld [vmem:[%s0 + $0x8] sm:$0xf]
    %v32 = vld [vmem:[%s0 + $0xc] sm:$0xf]
    %v33 = vld [vmem:[%s0 + $0x10] sm:$0xf]
    %v34 = vld [vmem:[%s0 + $0x14] sm:$0xf]
    %v35 = vld [vmem:[%s0 + $0x18] sm:$0xf]
    %v36 = vld [vmem:[%s0 + $0x1c] sm:$0xf]
    %v37 = vld [vmem:[%s0 + $0x20] sm:$0xf]
    %v38 = vld [vmem:[%s0 + $0x24] sm:$0xf]
    %v39 = vld [vmem:[%s0 + $0x28] sm:$0xf]
    %v40 = vld [vmem:[%s0 + $0x2c] sm:$0xf]
    %v41 = vld [vmem:[%s0 + $0x30] sm:$0xf]
    %v42 = vld [vmem:[%s0 + $0x34] sm:$0xf]
    %v43 = vld [vmem:[%s0 + $0x38] sm:$0xf]
    %v44 = vld [vmem:[%s0 + $0x3c] sm:$0xf]
    %v45 = vld [vmem:[%s1] sm:$0xf]
    %v46 = vld [vmem:[%s1 + $0x4] sm:$0xf]
    %v47 = vld [vmem:[%s1 + $0x8] sm:$0xf]
    %v48 = vld [vmem:[%s1 + $0xc] sm:$0xf]
    %v49 = vld [vmem:[%s1 + $0x10] sm:$0x3]
    %v50 = vld [vmem:[#allocation2] sm:$0x1]
    %v52 = vperm.slane %v50, 0
    %v70 = vunpack.c.l.b16 %v29
    %v71 = vunpack.c.l.b16 %v30
    %v72 = vunpack.c.l.b16 %v31
    %v73 = vunpack.c.l.b16 %v32
    %v74 = vunpack.c.l.b16 %v33
    %v75 = vunpack.c.l.b16 %v34
    %v76 = vunpack.c.l.b16 %v35
    %v77 = vunpack.c.l.b16 %v36
    %v78 = vunpack.c.l.b16 %v37
    %v79 = vunpack.c.l.b16 %v38
    %v80 = vunpack.c.l.b16 %v39
    %v81 = vunpack.c.l.b16 %v40
    %v82 = vunpack.c.l.b16 %v41
    %v83 = vunpack.c.l.b16 %v42
    %v84 = vunpack.c.l.b16 %v43
    %v85 = vunpack.c.l.b16 %v44
    %v86 = vpack.c.b16 %v71, %v70
    %v87 = vpack.c.b16 %v73, %v72
    %v88 = vpack.c.b16 %v75, %v74
    %v89 = vpack.c.b16 %v77, %v76
    %v90 = vpack.c.b16 %v79, %v78
    %v91 = vpack.c.b16 %v81, %v80
    %v92 = vpack.c.b16 %v83, %v82
    %v93 = vpack.c.b16 %v85, %v84
    %v99 = vunpack.c.l.b16 %v45
    %v100 = vunpack.c.l.b16 %v46
    %v101 = vunpack.c.l.b16 %v47
    %v102 = vunpack.c.l.b16 %v48
    %v103 = vunpack.c.l.b16 %v49
    %v104 = vpack.c.b16 %v100, %v99
    %v105 = vpack.c.b16 %v102, %v101
    %v106 = vpack.c.b16 %v103, %v103
    %vm109 = vcmask 293888
    %v111 = vsel %vm109, %v86, 0
    %v114 = vsel %vm109, %v87, 0
    %v117 = vsel %vm109, %v88, 0
    %v120 = vsel %vm109, %v89, 0
    %v123 = vsel %vm109, %v90, 0
    %v126 = vsel %vm109, %v91, 0
    %v129 = vsel %vm109, %v92, 0
    %v132 = vsel %vm109, %v93, 0
    %vm134 = vcmask 1041408
    %v136 = vsel %vm134, %v106, 0
    %138 = vmatpush.bf16.msra.mxu0 0
    %139 = vmatpush.bf16.msra.mxu0 0
    %140 = vmatpush.bf16.msra.mxu0 0
    %141 = vmatpush.bf16.msra.mxu0 0
    %142 = vmatpush.bf16.msra.mxu0 0
    %143 = vmatpush.bf16.msra.mxu0 %v136
    %144 = vmatpush.bf16.msra.mxu0 %v105
    %145 = vmatpush.bf16.msra.mxu0 %v104
    %146 = vmatmul.bf16.gmra.mxu0 %v111
    %v147 = vpop.f32.mrf.mxu0
    %v148 = vadd.f32 %v52, %v147
    %v149 = vpop.f32.mrf.mxu0
    %v150 = vadd.f32 %v52, %v149
    %151 = vmatmul.bf16.gmra.mxu0 %v114
    %v152 = vpop.f32.mrf.mxu0
    %v153 = vadd.f32 %v52, %v152
    %v154 = vpop.f32.mrf.mxu0
    %v155 = vadd.f32 %v52, %v154
    %156 = vmatmul.bf16.gmra.mxu0 %v117
    %v157 = vpop.f32.mrf.mxu0
    %v158 = vadd.f32 %v52, %v157
    %v159 = vpop.f32.mrf.mxu0
    %v160 = vadd.f32 %v52, %v159
    %161 = vmatmul.bf16.gmra.mxu0 %v120
    %v162 = vpop.f32.mrf.mxu0
    %v163 = vadd.f32 %v52, %v162
    %v164 = vpop.f32.mrf.mxu0
    %v165 = vadd.f32 %v52, %v164
    %166 = vmatmul.bf16.gmra.mxu0 %v123
    %v167 = vpop.f32.mrf.mxu0
    %v168 = vadd.f32 %v52, %v167
    %v169 = vpop.f32.mrf.mxu0
    %v170 = vadd.f32 %v52, %v169
    %171 = vmatmul.bf16.gmra.mxu0 %v126
    %v172 = vpop.f32.mrf.mxu0
    %v173 = vadd.f32 %v52, %v172
    %v174 = vpop.f32.mrf.mxu0
    %v175 = vadd.f32 %v52, %v174
    %176 = vmatmul.bf16.gmra.mxu0 %v129
    %v177 = vpop.f32.mrf.mxu0
    %v178 = vadd.f32 %v52, %v177
    %v179 = vpop.f32.mrf.mxu0
    %v180 = vadd.f32 %v52, %v179
    %181 = vmatmul.bf16.gmra.mxu0 %v132
    %v182 = vpop.f32.mrf.mxu0
    %v183 = vadd.f32 %v52, %v182
    %v184 = vpop.f32.mrf.mxu0
    %v185 = vadd.f32 %v52, %v184
    %186 = vdwg.mxu0
    %v187 = vmax.f32 %v148, 0.0
    %v188 = vmax.f32 %v150, 0.0
    %v189 = vmax.f32 %v153, 0.0
    %v190 = vmax.f32 %v155, 0.0
    %v191 = vmax.f32 %v158, 0.0
    %v192 = vmax.f32 %v160, 0.0
    %v193 = vmax.f32 %v163, 0.0
    %v194 = vmax.f32 %v165, 0.0
    %v195 = vmax.f32 %v168, 0.0
    %v196 = vmax.f32 %v170, 0.0
    %v197 = vmax.f32 %v173, 0.0
    %v198 = vmax.f32 %v175, 0.0
    %v199 = vmax.f32 %v178, 0.0
    %v200 = vmax.f32 %v180, 0.0
    %v201 = vmax.f32 %v183, 0.0
    %v202 = vmax.f32 %v185, 0.0
    %v203 = vpack.c.bf16 %v187, %v187
    %v204 = vpack.c.bf16 %v188, %v188
    %v205 = vpack.c.bf16 %v189, %v189
    %v206 = vpack.c.bf16 %v190, %v190
    %v207 = vpack.c.bf16 %v191, %v191
    %v208 = vpack.c.bf16 %v192, %v192
    %v209 = vpack.c.bf16 %v193, %v193
    %v210 = vpack.c.bf16 %v194, %v194
    %v211 = vpack.c.bf16 %v195, %v195
    %v212 = vpack.c.bf16 %v196, %v196
    %v213 = vpack.c.bf16 %v197, %v197
    %v214 = vpack.c.bf16 %v198, %v198
    %v215 = vpack.c.bf16 %v199, %v199
    %v216 = vpack.c.bf16 %v200, %v200
    %v217 = vpack.c.bf16 %v201, %v201
    %v218 = vpack.c.bf16 %v202, %v202
    %vm219 = vcmask 125952
    %220 = vst.msk [vmem:[%s3] sm:$0xf] %vm219, %v203
    %221 = vst.msk [vmem:[%s3 + $0x4] sm:$0xf] %vm219, %v204
    %222 = vst.msk [vmem:[%s3 + $0x8] sm:$0xf] %vm219, %v205
    %223 = vst.msk [vmem:[%s3 + $0xc] sm:$0xf] %vm219, %v206
    %224 = vst.msk [vmem:[%s3 + $0x10] sm:$0xf] %vm219, %v207
    %225 = vst.msk [vmem:[%s3 + $0x14] sm:$0xf] %vm219, %v208
    %226 = vst.msk [vmem:[%s3 + $0x18] sm:$0xf] %vm219, %v209
    %227 = vst.msk [vmem:[%s3 + $0x1c] sm:$0xf] %vm219, %v210
    %228 = vst.msk [vmem:[%s3 + $0x20] sm:$0xf] %vm219, %v211
    %229 = vst.msk [vmem:[%s3 + $0x24] sm:$0xf] %vm219, %v212
    %230 = vst.msk [vmem:[%s3 + $0x28] sm:$0xf] %vm219, %v213
    %231 = vst.msk [vmem:[%s3 + $0x2c] sm:$0xf] %vm219, %v214
    %232 = vst.msk [vmem:[%s3 + $0x30] sm:$0xf] %vm219, %v215
    %233 = vst.msk [vmem:[%s3 + $0x34] sm:$0xf] %vm219, %v216
    %234 = vst.msk [vmem:[%s3 + $0x38] sm:$0xf] %vm219, %v217
    %235 = vst.msk [vmem:[%s3 + $0x3c] sm:$0xf] %vm219, %v218
    // Predicated region
    $region18: #{autoencoder4x_forward.6} parent=1 // pred_check
      _
    $region19: #{autoencoder4x_forward.6} parent=1 // pred_check_branch
      %237 = sbr.rel (0) target = $region21
    $region20: #{autoencoder4x_forward.6} parent=1 // pred_region
      _
    $region21: #{autoencoder4x_forward.6} parent=1 // pred_fallthru
      _
    // Predicated region
    $region22: #{autoencoder4x_forward.6} parent=1 // pred_check
      _
    $region23: #{autoencoder4x_forward.6} parent=1 // pred_check_branch
      %239 = sbr.rel (0) target = $region25
    $region24: #{autoencoder4x_forward.6} parent=1 // pred_region
      _
    $region25: #{autoencoder4x_forward.6} parent=1 // pred_fallthru
      _
    %240 = vsyncpa [#allocation3], 1

// kernel: autoencoder4x_forward.7
$region0: #{autoencoder4x_forward.7}
  #allocation0 [shape = 'u32[]', space=smem, size = 0x4, offset = 0x4, fixed_abs, tag = 'smem constant byte address 0x4 - core index']
  #allocation1 [shape = 'u32[72,128]{1,0:T(1,128)}', space=vmem, size = 0x9000, scoped, tag = 'internal scratch']
  %s0 = inlined_call_operand.vmem [shape: bf16[32,144], index: 0, kind: input, shape index: {}]
  %s1 = inlined_call_operand.vmem [shape: bf16[144,8], index: 1, kind: input, shape index: {}]
  %s2 = inlined_call_operand.vmem [shape: f32[1,8], index: 2, kind: input, shape index: {}]
  %s3 = inlined_call_operand.vmem [shape: bf16[32,8], index: 3, kind: output, shape index: {}]
  %s4 = sld [smem:[#allocation0]]
  $region22: #{autoencoder4x_forward.7} parent=0
    _
  %s6 = ssub.s32 1, %s4
  %s7 = scalar_select 0, %s6, %s4
  // Predicated region
  $region2: #{autoencoder4x_forward.7} parent=0 // pred_check
    _
  $region3: #{autoencoder4x_forward.7} parent=0 // pred_check_branch
    %9 = sbr.rel (0) target = $region5
  $region4: #{autoencoder4x_forward.7} parent=0 // pred_region
    _
  $region5: #{autoencoder4x_forward.7} parent=0 // pred_fallthru
    _
  // Predicated region
  $region6: #{autoencoder4x_forward.7} parent=0 // pred_check
    _
  $region7: #{autoencoder4x_forward.7} parent=0 // pred_check_branch
    %11 = sbr.rel (0) target = $region9
  $region8: #{autoencoder4x_forward.7} parent=0 // pred_region
    _
  $region9: #{autoencoder4x_forward.7} parent=0 // pred_fallthru
    _
  // Predicated region
  $region10: #{autoencoder4x_forward.7} parent=0 // pred_check
    _
  $region11: #{autoencoder4x_forward.7} parent=0 // pred_check_branch
    %13 = sbr.rel (0) target = $region13
  $region12: #{autoencoder4x_forward.7} parent=0 // pred_region
    _
  $region13: #{autoencoder4x_forward.7} parent=0 // pred_fallthru
    _
  %v15 = vld [vmem:[%s0] sm:$0xff]
  %v16 = vld [vmem:[%s0 + $0x8] sm:$0xff]
  %v17 = vld [vmem:[%s0 + $0x10] sm:$0xff]
  %v18 = vld [vmem:[%s0 + $0x18] sm:$0xff]
  %v19 = vld [vmem:[%s1] sm:$0xf]
  %v20 = vld [vmem:[%s1 + $0x4] sm:$0xf]
  %v21 = vld [vmem:[%s1 + $0x8] sm:$0xf]
  %v22 = vld [vmem:[%s1 + $0xc] sm:$0xf]
  %v23 = vld [vmem:[%s1 + $0x10] sm:$0xf]
  %v24 = vld [vmem:[%s1 + $0x14] sm:$0xf]
  %v25 = vld [vmem:[%s1 + $0x18] sm:$0xf]
  %v26 = vld [vmem:[%s1 + $0x1c] sm:$0xf]
  %v27 = vld [vmem:[%s1 + $0x20] sm:$0xf]
  %v28 = vld [vmem:[%s1 + $0x24] sm:$0xf]
  %v29 = vld [vmem:[%s1 + $0x28] sm:$0xf]
  %v30 = vld [vmem:[%s1 + $0x2c] sm:$0xf]
  %v31 = vld [vmem:[%s1 + $0x30] sm:$0xf]
  %v32 = vld [vmem:[%s1 + $0x34] sm:$0xf]
  %v33 = vld [vmem:[%s1 + $0x38] sm:$0xf]
  %v34 = vld [vmem:[%s1 + $0x3c] sm:$0xf]
  %v35 = vld [vmem:[%s1 + $0x40] sm:$0xf]
  %v36 = vld [vmem:[%s1 + $0x44] sm:$0xf]
  %v37 = vld [vmem:[%s2] sm:$0x1]
  %v39 = vperm.slane %v37, 0
  %v45 = vunpack.c.l.b16 %v15
  %v46 = vunpack.c.h.b16 %v15
  %v47 = vunpack.c.l.b16 %v16
  %v48 = vunpack.c.h.b16 %v16
  %v49 = vunpack.c.l.b16 %v17
  %v50 = vunpack.c.h.b16 %v17
  %v51 = vunpack.c.l.b16 %v18
  %v52 = vunpack.c.h.b16 %v18
  %v53 = vpack.c.b16 %v47, %v45
  %v54 = vpack.c.b16 %v48, %v46
  %v55 = vpack.c.b16 %v51, %v49
  %v56 = vpack.c.b16 %v52, %v50
  %v77 = vunpack.c.l.b16 %v19
  %v78 = vunpack.c.l.b16 %v20
  %v79 = vunpack.c.l.b16 %v21
  %v80 = vunpack.c.l.b16 %v22
  %v81 = vunpack.c.l.b16 %v23
  %v82 = vunpack.c.l.b16 %v24
  %v83 = vunpack.c.l.b16 %v25
  %v84 = vunpack.c.l.b16 %v26
  %v85 = vunpack.c.l.b16 %v27
  %v86 = vunpack.c.l.b16 %v28
  %v87 = vunpack.c.l.b16 %v29
  %v88 = vunpack.c.l.b16 %v30
  %v89 = vunpack.c.l.b16 %v31
  %v90 = vunpack.c.l.b16 %v32
  %v91 = vunpack.c.l.b16 %v33
  %v92 = vunpack.c.l.b16 %v34
  %v93 = vunpack.c.l.b16 %v35
  %v94 = vunpack.c.l.b16 %v36
  %v95 = vpack.c.b16 %v78, %v77
  %v96 = vpack.c.b16 %v80, %v79
  %v97 = vpack.c.b16 %v82, %v81
  %v98 = vpack.c.b16 %v84, %v83
  %v99 = vpack.c.b16 %v86, %v85
  %v100 = vpack.c.b16 %v88, %v87
  %v101 = vpack.c.b16 %v90, %v89
  %v102 = vpack.c.b16 %v92, %v91
  %v103 = vpack.c.b16 %v94, %v93
  %vm113 = vcmask 130048
  %v115 = vsel %vm113, %v54, 0
  %v118 = vsel %vm113, %v56, 0
  %120 = vmatpush.bf16.msra.mxu0 %v102
  %121 = vmatpush.bf16.msra.mxu0 %v101
  %122 = vmatpush.bf16.msra.mxu0 %v100
  %123 = vmatpush.bf16.msra.mxu0 %v99
  %124 = vmatpush.bf16.msra.mxu0 %v98
  %125 = vmatpush.bf16.msra.mxu0 %v97
  %126 = vmatpush.bf16.msra.mxu0 %v96
  %127 = vmatpush.bf16.msra.mxu0 %v95
  %128 = vmatmul.bf16.gmra.mxu0 %v53
  %v129 = vpop.f32.mrf.mxu0
  %v130 = vadd.f32 %v39, %v129
  %v131 = vpop.f32.mrf.mxu0
  %v132 = vadd.f32 %v39, %v131
  %133 = vmatmul.bf16.gmra.mxu0 %v55
  %v134 = vpop.f32.mrf.mxu0
  %v135 = vadd.f32 %v39, %v134
  %v136 = vpop.f32.mrf.mxu0
  %v137 = vadd.f32 %v39, %v136
  %138 = vdwg.mxu0
  %139 = vmatpush.bf16.msra.mxu0 0
  %140 = vmatpush.bf16.msra.mxu0 0
  %141 = vmatpush.bf16.msra.mxu0 0
  %142 = vmatpush.bf16.msra.mxu0 0
  %143 = vmatpush.bf16.msra.mxu0 0
  %144 = vmatpush.bf16.msra.mxu0 0
  %145 = vmatpush.bf16.msra.mxu0 0
  %146 = vmatpush.bf16.msra.mxu0 %v103
  %147 = vmatmul.bf16.gmra.mxu0 %v115
  %v148 = vpop.f32.mrf.mxu0
  %v149 = vadd.f32 %v130, %v148
  %v150 = vpop.f32.mrf.mxu0
  %v151 = vadd.f32 %v132, %v150
  %152 = vmatmul.bf16.gmra.mxu0 %v118
  %v153 = vpop.f32.mrf.mxu0
  %v154 = vadd.f32 %v135, %v153
  %v155 = vpop.f32.mrf.mxu0
  %v156 = vadd.f32 %v137, %v155
  %157 = vdwg.mxu0
  %v158 = vmax.f32 %v149, 0.0
  %v159 = vmax.f32 %v151, 0.0
  %v160 = vmax.f32 %v154, 0.0
  %v161 = vmax.f32 %v156, 0.0
  %v162 = vpack.c.bf16 %v158, %v158
  %v163 = vpack.c.bf16 %v159, %v159
  %v164 = vpack.c.bf16 %v160, %v160
  %v165 = vpack.c.bf16 %v161, %v161
  %vm166 = vcmask 60416
  %167 = vst.msk [vmem:[%s3] sm:$0xf] %vm166, %v162
  %168 = vst.msk [vmem:[%s3 + $0x4] sm:$0xf] %vm166, %v163
  %169 = vst.msk [vmem:[%s3 + $0x8] sm:$0xf] %vm166, %v164
  %170 = vst.msk [vmem:[%s3 + $0xc] sm:$0xf] %vm166, %v165
  // Predicated region
  $region14: #{autoencoder4x_forward.7} parent=0 // pred_check
    _
  $region15: #{autoencoder4x_forward.7} parent=0 // pred_check_branch
    %172 = sbr.rel (0) target = $region17
  $region16: #{autoencoder4x_forward.7} parent=0 // pred_region
    _
  $region17: #{autoencoder4x_forward.7} parent=0 // pred_fallthru
    _
  // Predicated region
  $region18: #{autoencoder4x_forward.7} parent=0 // pred_check
    _
  $region19: #{autoencoder4x_forward.7} parent=0 // pred_check_branch
    %174 = sbr.rel (0) target = $region21
  $region20: #{autoencoder4x_forward.7} parent=0 // pred_region
    _
  $region21: #{autoencoder4x_forward.7} parent=0 // pred_fallthru
    _

// kernel: autoencoder4x_forward.8
$region0: #{autoencoder4x_forward.8}
  #allocation0 [shape = 'u32[]', space=smem, size = 0x4, offset = 0x4, fixed_abs, tag = 'smem constant byte address 0x4 - core index']
  #allocation1 [shape = 'u32[72,128]{1,0:T(1,128)}', space=vmem, size = 0x9000, scoped, tag = 'internal scratch']
  %s0 = inlined_call_operand.vmem [shape: bf16[32,32], index: 0, kind: input, shape index: {}]
  %s1 = inlined_call_operand.vmem [shape: bf16[32,64], index: 1, kind: input, shape index: {}]
  %s2 = inlined_call_operand.vmem [shape: f32[1,64], index: 2, kind: input, shape index: {}]
  %s3 = inlined_call_operand.vmem [shape: bf16[32,64], index: 3, kind: output, shape index: {}]
  %s4 = sld [smem:[#allocation0]]
  $region22: #{autoencoder4x_forward.8} parent=0
    _
  %s6 = ssub.s32 1, %s4
  %s7 = scalar_select 0, %s6, %s4
  // Predicated region
  $region2: #{autoencoder4x_forward.8} parent=0 // pred_check
    _
  $region3: #{autoencoder4x_forward.8} parent=0 // pred_check_branch
    %9 = sbr.rel (0) target = $region5
  $region4: #{autoencoder4x_forward.8} parent=0 // pred_region
    _
  $region5: #{autoencoder4x_forward.8} parent=0 // pred_fallthru
    _
  // Predicated region
  $region6: #{autoencoder4x_forward.8} parent=0 // pred_check
    _
  $region7: #{autoencoder4x_forward.8} parent=0 // pred_check_branch
    %11 = sbr.rel (0) target = $region9
  $region8: #{autoencoder4x_forward.8} parent=0 // pred_region
    _
  $region9: #{autoencoder4x_forward.8} parent=0 // pred_fallthru
    _
  // Predicated region
  $region10: #{autoencoder4x_forward.8} parent=0 // pred_check
    _
  $region11: #{autoencoder4x_forward.8} parent=0 // pred_check_branch
    %13 = sbr.rel (0) target = $region13
  $region12: #{autoencoder4x_forward.8} parent=0 // pred_region
    _
  $region13: #{autoencoder4x_forward.8} parent=0 // pred_fallthru
    _
  %v15 = vld [vmem:[%s0] sm:$0xf]
  %v16 = vld [vmem:[%s0 + $0x4] sm:$0xf]
  %v17 = vld [vmem:[%s0 + $0x8] sm:$0xf]
  %v18 = vld [vmem:[%s0 + $0xc] sm:$0xf]
  %v19 = vld [vmem:[%s1] sm:$0xf]
  %v20 = vld [vmem:[%s1 + $0x4] sm:$0xf]
  %v21 = vld [vmem:[%s1 + $0x8] sm:$0xf]
  %v22 = vld [vmem:[%s1 + $0xc] sm:$0xf]
  %v23 = vld [vmem:[%s2] sm:$0x1]
  %v25 = vperm.slane %v23, 0
  %v31 = vunpack.c.l.b16 %v15
  %v32 = vunpack.c.l.b16 %v16
  %v33 = vunpack.c.l.b16 %v17
  %v34 = vunpack.c.l.b16 %v18
  %v35 = vpack.c.b16 %v32, %v31
  %v36 = vpack.c.b16 %v34, %v33
  %v41 = vunpack.c.l.b16 %v19
  %v42 = vunpack.c.l.b16 %v20
  %v43 = vunpack.c.l.b16 %v21
  %v44 = vunpack.c.l.b16 %v22
  %v45 = vpack.c.b16 %v42, %v41
  %v46 = vpack.c.b16 %v44, %v43
  %vm49 = vcmask 261120
  %v51 = vsel %vm49, %v35, 0
  %v54 = vsel %vm49, %v36, 0
  %56 = vmatpush.bf16.msra.mxu0 0
  %57 = vmatpush.bf16.msra.mxu0 0
  %58 = vmatpush.bf16.msra.mxu0 0
  %59 = vmatpush.bf16.msra.mxu0 0
  %60 = vmatpush.bf16.msra.mxu0 0
  %61 = vmatpush.bf16.msra.mxu0 0
  %62 = vmatpush.bf16.msra.mxu0 %v46
  %63 = vmatpush.bf16.msra.mxu0 %v45
  %64 = vmatmul.bf16.gmra.mxu0 %v51
  %v65 = vpop.f32.mrf.mxu0
  %v66 = vadd.f32 %v25, %v65
  %v67 = vpop.f32.mrf.mxu0
  %v68 = vadd.f32 %v25, %v67
  %69 = vmatmul.bf16.gmra.mxu0 %v54
  %v70 = vpop.f32.mrf.mxu0
  %v71 = vadd.f32 %v25, %v70
  %v72 = vpop.f32.mrf.mxu0
  %v73 = vadd.f32 %v25, %v72
  %74 = vdwg.mxu0
  %v75 = vmax.f32 %v66, 0.0
  %v76 = vmax.f32 %v68, 0.0
  %v77 = vmax.f32 %v71, 0.0
  %v78 = vmax.f32 %v73, 0.0
  %v79 = vpack.c.bf16 %v75, %v75
  %v80 = vpack.c.bf16 %v76, %v76
  %v81 = vpack.c.bf16 %v77, %v77
  %v82 = vpack.c.bf16 %v78, %v78
  %vm83 = vcmask 519168
  %84 = vst.msk [vmem:[%s3] sm:$0xf] %vm83, %v79
  %85 = vst.msk [vmem:[%s3 + $0x4] sm:$0xf] %vm83, %v80
  %86 = vst.msk [vmem:[%s3 + $0x8] sm:$0xf] %vm83, %v81
  %87 = vst.msk [vmem:[%s3 + $0xc] sm:$0xf] %vm83, %v82
  // Predicated region
  $region14: #{autoencoder4x_forward.8} parent=0 // pred_check
    _
  $region15: #{autoencoder4x_forward.8} parent=0 // pred_check_branch
    %89 = sbr.rel (0) target = $region17
  $region16: #{autoencoder4x_forward.8} parent=0 // pred_region
    _
  $region17: #{autoencoder4x_forward.8} parent=0 // pred_fallthru
    _
  // Predicated region
  $region18: #{autoencoder4x_forward.8} parent=0 // pred_check
    _
  $region19: #{autoencoder4x_forward.8} parent=0 // pred_check_branch
    %91 = sbr.rel (0) target = $region21
  $region20: #{autoencoder4x_forward.8} parent=0 // pred_region
    _
  $region21: #{autoencoder4x_forward.8} parent=0 // pred_fallthru
    _

// kernel: autoencoder4x_forward.9
$region0: #{autoencoder4x_forward.9}
  #allocation0 [shape = 'u32[]', space=smem, size = 0x4, offset = 0x4, fixed_abs, tag = 'smem constant byte address 0x4 - core index']
  #allocation1 [shape = 'u32[72,128]{1,0:T(1,128)}', space=vmem, size = 0x9000, scoped, tag = 'internal scratch']
  %s0 = inlined_call_operand.vmem [shape: bf16[104,64], index: 0, kind: input, shape index: {}]
  %s1 = inlined_call_operand.vmem [shape: bf16[64,64], index: 1, kind: input, shape index: {}]
  %s2 = inlined_call_operand.vmem [shape: f32[1,64], index: 2, kind: input, shape index: {}]
  %s3 = inlined_call_operand.vmem [shape: bf16[104,64], index: 3, kind: output, shape index: {}]
  %s4 = sld [smem:[#allocation0]]
  $region22: #{autoencoder4x_forward.9} parent=0
    _
  %s6 = ssub.s32 1, %s4
  %s7 = scalar_select 0, %s6, %s4
  // Predicated region
  $region2: #{autoencoder4x_forward.9} parent=0 // pred_check
    _
  $region3: #{autoencoder4x_forward.9} parent=0 // pred_check_branch
    %9 = sbr.rel (0) target = $region5
  $region4: #{autoencoder4x_forward.9} parent=0 // pred_region
    _
  $region5: #{autoencoder4x_forward.9} parent=0 // pred_fallthru
    _
  // Predicated region
  $region6: #{autoencoder4x_forward.9} parent=0 // pred_check
    _
  $region7: #{autoencoder4x_forward.9} parent=0 // pred_check_branch
    %11 = sbr.rel (0) target = $region9
  $region8: #{autoencoder4x_forward.9} parent=0 // pred_region
    _
  $region9: #{autoencoder4x_forward.9} parent=0 // pred_fallthru
    _
  // Predicated region
  $region10: #{autoencoder4x_forward.9} parent=0 // pred_check
    _
  $region11: #{autoencoder4x_forward.9} parent=0 // pred_check_branch
    %13 = sbr.rel (0) target = $region13
  $region12: #{autoencoder4x_forward.9} parent=0 // pred_region
    _
  $region13: #{autoencoder4x_forward.9} parent=0 // pred_fallthru
    _
  %v15 = vld [vmem:[%s0] sm:$0xf]
  %v16 = vld [vmem:[%s0 + $0x4] sm:$0xf]
  %v17 = vld [vmem:[%s0 + $0x8] sm:$0xf]
  %v18 = vld [vmem:[%s0 + $0xc] sm:$0xf]
  %v19 = vld [vmem:[%s0 + $0x10] sm:$0xf]
  %v20 = vld [vmem:[%s0 + $0x14] sm:$0xf]
  %v21 = vld [vmem:[%s0 + $0x18] sm:$0xf]
  %v22 = vld [vmem:[%s0 + $0x1c] sm:$0xf]
  %v23 = vld [vmem:[%s0 + $0x20] sm:$0xf]
  %v24 = vld [vmem:[%s0 + $0x24] sm:$0xf]
  %v25 = vld [vmem:[%s0 + $0x28] sm:$0xf]
  %v26 = vld [vmem:[%s0 + $0x2c] sm:$0xf]
  %v27 = vld [vmem:[%s0 + $0x30] sm:$0xf]
  %v28 = vld [vmem:[%s1] sm:$0xf]
  %v29 = vld [vmem:[%s1 + $0x4] sm:$0xf]
  %v30 = vld [vmem:[%s1 + $0x8] sm:$0xf]
  %v31 = vld [vmem:[%s1 + $0xc] sm:$0xf]
  %v32 = vld [vmem:[%s1 + $0x10] sm:$0xf]
  %v33 = vld [vmem:[%s1 + $0x14] sm:$0xf]
  %v34 = vld [vmem:[%s1 + $0x18] sm:$0xf]
  %v35 = vld [vmem:[%s1 + $0x1c] sm:$0xf]
  %v36 = vld [vmem:[%s2] sm:$0x1]
  %v38 = vperm.slane %v36, 0
  %v53 = vunpack.c.l.b16 %v15
  %v54 = vunpack.c.l.b16 %v16
  %v55 = vunpack.c.l.b16 %v17
  %v56 = vunpack.c.l.b16 %v18
  %v57 = vunpack.c.l.b16 %v19
  %v58 = vunpack.c.l.b16 %v20
  %v59 = vunpack.c.l.b16 %v21
  %v60 = vunpack.c.l.b16 %v22
  %v61 = vunpack.c.l.b16 %v23
  %v62 = vunpack.c.l.b16 %v24
  %v63 = vunpack.c.l.b16 %v25
  %v64 = vunpack.c.l.b16 %v26
  %v65 = vunpack.c.l.b16 %v27
  %v66 = vpack.c.b16 %v54, %v53
  %v67 = vpack.c.b16 %v56, %v55
  %v68 = vpack.c.b16 %v58, %v57
  %v69 = vpack.c.b16 %v60, %v59
  %v70 = vpack.c.b16 %v62, %v61
  %v71 = vpack.c.b16 %v64, %v63
  %v72 = vpack.c.b16 %v65, %v65
  %v81 = vunpack.c.l.b16 %v28
  %v82 = vunpack.c.l.b16 %v29
  %v83 = vunpack.c.l.b16 %v30
  %v84 = vunpack.c.l.b16 %v31
  %v85 = vunpack.c.l.b16 %v32
  %v86 = vunpack.c.l.b16 %v33
  %v87 = vunpack.c.l.b16 %v34
  %v88 = vunpack.c.l.b16 %v35
  %v89 = vpack.c.b16 %v82, %v81
  %v90 = vpack.c.b16 %v84, %v83
  %v91 = vpack.c.b16 %v86, %v85
  %v92 = vpack.c.b16 %v88, %v87
  %vm97 = vcmask 523264
  %v99 = vsel %vm97, %v66, 0
  %v102 = vsel %vm97, %v67, 0
  %v105 = vsel %vm97, %v68, 0
  %v108 = vsel %vm97, %v69, 0
  %v111 = vsel %vm97, %v70, 0
  %v114 = vsel %vm97, %v71, 0
  %v117 = vsel %vm97, %v72, 0
  %119 = vmatpush.bf16.msra.mxu0 0
  %120 = vmatpush.bf16.msra.mxu0 0
  %121 = vmatpush.bf16.msra.mxu0 0
  %122 = vmatpush.bf16.msra.mxu0 0
  %123 = vmatpush.bf16.msra.mxu0 %v92
  %124 = vmatpush.bf16.msra.mxu0 %v91
  %125 = vmatpush.bf16.msra.mxu0 %v90
  %126 = vmatpush.bf16.msra.mxu0 %v89
  %127 = vmatmul.bf16.gmra.mxu0 %v99
  %v128 = vpop.f32.mrf.mxu0
  %v129 = vadd.f32 %v38, %v128
  %v130 = vpop.f32.mrf.mxu0
  %v131 = vadd.f32 %v38, %v130
  %132 = vmatmul.bf16.gmra.mxu0 %v102
  %v133 = vpop.f32.mrf.mxu0
  %v134 = vadd.f32 %v38, %v133
  %v135 = vpop.f32.mrf.mxu0
  %v136 = vadd.f32 %v38, %v135
  %137 = vmatmul.bf16.gmra.mxu0 %v105
  %v138 = vpop.f32.mrf.mxu0
  %v139 = vadd.f32 %v38, %v138
  %v140 = vpop.f32.mrf.mxu0
  %v141 = vadd.f32 %v38, %v140
  %142 = vmatmul.bf16.gmra.mxu0 %v108
  %v143 = vpop.f32.mrf.mxu0
  %v144 = vadd.f32 %v38, %v143
  %v145 = vpop.f32.mrf.mxu0
  %v146 = vadd.f32 %v38, %v145
  %147 = vmatmul.bf16.gmra.mxu0 %v111
  %v148 = vpop.f32.mrf.mxu0
  %v149 = vadd.f32 %v38, %v148
  %v150 = vpop.f32.mrf.mxu0
  %v151 = vadd.f32 %v38, %v150
  %152 = vmatmul.bf16.gmra.mxu0 %v114
  %v153 = vpop.f32.mrf.mxu0
  %v154 = vadd.f32 %v38, %v153
  %v155 = vpop.f32.mrf.mxu0
  %v156 = vadd.f32 %v38, %v155
  %157 = vmatmul.bf16.gmra.mxu0 %v117
  %v158 = vpop.f32.mrf.mxu0
  %v159 = vadd.f32 %v38, %v158
  %v160 = vpop.f32.mrf.mxu0
  %161 = vdwg.mxu0
  %v162 = vmax.f32 %v129, 0.0
  %v163 = vmax.f32 %v131, 0.0
  %v164 = vmax.f32 %v134, 0.0
  %v165 = vmax.f32 %v136, 0.0
  %v166 = vmax.f32 %v139, 0.0
  %v167 = vmax.f32 %v141, 0.0
  %v168 = vmax.f32 %v144, 0.0
  %v169 = vmax.f32 %v146, 0.0
  %v170 = vmax.f32 %v149, 0.0
  %v171 = vmax.f32 %v151, 0.0
  %v172 = vmax.f32 %v154, 0.0
  %v173 = vmax.f32 %v156, 0.0
  %v174 = vmax.f32 %v159, 0.0
  %v175 = vpack.c.bf16 %v162, %v162
  %v176 = vpack.c.bf16 %v163, %v163
  %v177 = vpack.c.bf16 %v164, %v164
  %v178 = vpack.c.bf16 %v165, %v165
  %v179 = vpack.c.bf16 %v166, %v166
  %v180 = vpack.c.bf16 %v167, %v167
  %v181 = vpack.c.bf16 %v168, %v168
  %v182 = vpack.c.bf16 %v169, %v169
  %v183 = vpack.c.bf16 %v170, %v170
  %v184 = vpack.c.bf16 %v171, %v171
  %v185 = vpack.c.bf16 %v172, %v172
  %v186 = vpack.c.bf16 %v173, %v173
  %v187 = vpack.c.bf16 %v174, %v174
  %vm188 = vcmask 519168
  %189 = vst.msk [vmem:[%s3] sm:$0xf] %vm188, %v175
  %190 = vst.msk [vmem:[%s3 + $0x4] sm:$0xf] %vm188, %v176
  %191 = vst.msk [vmem:[%s3 + $0x8] sm:$0xf] %vm188, %v177
  %192 = vst.msk [vmem:[%s3 + $0xc] sm:$0xf] %vm188, %v178
  %193 = vst.msk [vmem:[%s3 + $0x10] sm:$0xf] %vm188, %v179
  %194 = vst.msk [vmem:[%s3 + $0x14] sm:$0xf] %vm188, %v180
  %195 = vst.msk [vmem:[%s3 + $0x18] sm:$0xf] %vm188, %v181
  %196 = vst.msk [vmem:[%s3 + $0x1c] sm:$0xf] %vm188, %v182
  %197 = vst.msk [vmem:[%s3 + $0x20] sm:$0xf] %vm188, %v183
  %198 = vst.msk [vmem:[%s3 + $0x24] sm:$0xf] %vm188, %v184
  %199 = vst.msk [vmem:[%s3 + $0x28] sm:$0xf] %vm188, %v185
  %200 = vst.msk [vmem:[%s3 + $0x2c] sm:$0xf] %vm188, %v186
  %201 = vst.msk [vmem:[%s3 + $0x30] sm:$0xf] %vm188, %v187
  // Predicated region
  $region14: #{autoencoder4x_forward.9} parent=0 // pred_check
    _
  $region15: #{autoencoder4x_forward.9} parent=0 // pred_check_branch
    %203 = sbr.rel (0) target = $region17
  $region16: #{autoencoder4x_forward.9} parent=0 // pred_region
    _
  $region17: #{autoencoder4x_forward.9} parent=0 // pred_fallthru
    _
  // Predicated region
  $region18: #{autoencoder4x_forward.9} parent=0 // pred_check
    _
  $region19: #{autoencoder4x_forward.9} parent=0 // pred_check_branch
    %205 = sbr.rel (0) target = $region21
  $region20: #{autoencoder4x_forward.9} parent=0 // pred_region
    _
  $region21: #{autoencoder4x_forward.9} parent=0 // pred_fallthru
    _

// kernel: autoencoder4x_forward.10
$region0: #{autoencoder4x_forward.10}
  #allocation0 [shape = 'u32[]', space=smem, size = 0x4, offset = 0x4, fixed_abs, tag = 'smem constant byte address 0x4 - core index']
  #allocation1 [shape = 'u32[72,128]{1,0:T(1,128)}', space=vmem, size = 0x9000, scoped, tag = 'internal scratch']
  %s0 = inlined_call_operand.vmem [shape: bf16[392,64], index: 0, kind: input, shape index: {}]
  %s1 = inlined_call_operand.vmem [shape: bf16[64,32], index: 1, kind: input, shape index: {}]
  %s2 = inlined_call_operand.vmem [shape: f32[1,32], index: 2, kind: input, shape index: {}]
  %s3 = inlined_call_operand.vmem [shape: bf16[392,32], index: 3, kind: output, shape index: {}]
  %s4 = sld [smem:[#allocation0]]
  $region22: #{autoencoder4x_forward.10} parent=0
    _
  %s6 = ssub.s32 1, %s4
  %s7 = scalar_select 0, %s6, %s4
  // Predicated region
  $region2: #{autoencoder4x_forward.10} parent=0 // pred_check
    _
  $region3: #{autoencoder4x_forward.10} parent=0 // pred_check_branch
    %9 = sbr.rel (0) target = $region5
  $region4: #{autoencoder4x_forward.10} parent=0 // pred_region
    _
  $region5: #{autoencoder4x_forward.10} parent=0 // pred_fallthru
    _
  // Predicated region
  $region6: #{autoencoder4x_forward.10} parent=0 // pred_check
    _
  $region7: #{autoencoder4x_forward.10} parent=0 // pred_check_branch
    %11 = sbr.rel (0) target = $region9
  $region8: #{autoencoder4x_forward.10} parent=0 // pred_region
    _
  $region9: #{autoencoder4x_forward.10} parent=0 // pred_fallthru
    _
  // Predicated region
  $region10: #{autoencoder4x_forward.10} parent=0 // pred_check
    _
  $region11: #{autoencoder4x_forward.10} parent=0 // pred_check_branch
    %13 = sbr.rel (0) target = $region13
  $region12: #{autoencoder4x_forward.10} parent=0 // pred_region
    _
  $region13: #{autoencoder4x_forward.10} parent=0 // pred_fallthru
    _
  %v15 = vld [vmem:[%s0] sm:$0xf]
  %v16 = vld [vmem:[%s0 + $0x4] sm:$0xf]
  %v17 = vld [vmem:[%s0 + $0x8] sm:$0xf]
  %v18 = vld [vmem:[%s0 + $0xc] sm:$0xf]
  %v19 = vld [vmem:[%s0 + $0x10] sm:$0xf]
  %v20 = vld [vmem:[%s0 + $0x14] sm:$0xf]
  %v21 = vld [vmem:[%s0 + $0x18] sm:$0xf]
  %v22 = vld [vmem:[%s0 + $0x1c] sm:$0xf]
  %v23 = vld [vmem:[%s0 + $0x20] sm:$0xf]
  %v24 = vld [vmem:[%s0 + $0x24] sm:$0xf]
  %v25 = vld [vmem:[%s0 + $0x28] sm:$0xf]
  %v26 = vld [vmem:[%s0 + $0x2c] sm:$0xf]
  %v27 = vld [vmem:[%s0 + $0x30] sm:$0xf]
  %v28 = vld [vmem:[%s0 + $0x34] sm:$0xf]
  %v29 = vld [vmem:[%s0 + $0x38] sm:$0xf]
  %v30 = vld [vmem:[%s0 + $0x3c] sm:$0xf]
  %v31 = vld [vmem:[%s0 + $0x40] sm:$0xf]
  %v32 = vld [vmem:[%s0 + $0x44] sm:$0xf]
  %v33 = vld [vmem:[%s0 + $0x48] sm:$0xf]
  %v34 = vld [vmem:[%s0 + $0x4c] sm:$0xf]
  %v35 = vld [vmem:[%s0 + $0x50] sm:$0xf]
  %v36 = vld [vmem:[%s0 + $0x54] sm:$0xf]
  %v37 = vld [vmem:[%s0 + $0x58] sm:$0xf]
  %v38 = vld [vmem:[%s0 + $0x5c] sm:$0xf]
  %v39 = vld [vmem:[%s0 + $0x60] sm:$0xf]
  %v40 = vld [vmem:[%s0 + $0x64] sm:$0xf]
  %v41 = vld [vmem:[%s0 + $0x68] sm:$0xf]
  %v42 = vld [vmem:[%s0 + $0x6c] sm:$0xf]
  %v43 = vld [vmem:[%s0 + $0x70] sm:$0xf]
  %v44 = vld [vmem:[%s0 + $0x74] sm:$0xf]
  %v45 = vld [vmem:[%s0 + $0x78] sm:$0xf]
  %v46 = vld [vmem:[%s0 + $0x7c] sm:$0xf]
  %v47 = vld [vmem:[%s0 + $0x80] sm:$0xf]
  %v48 = vld [vmem:[%s0 + $0x84] sm:$0xf]
  %v49 = vld [vmem:[%s0 + $0x88] sm:$0xf]
  %v50 = vld [vmem:[%s0 + $0x8c] sm:$0xf]
  %v51 = vld [vmem:[%s0 + $0x90] sm:$0xf]
  %v52 = vld [vmem:[%s0 + $0x94] sm:$0xf]
  %v53 = vld [vmem:[%s0 + $0x98] sm:$0xf]
  %v54 = vld [vmem:[%s0 + $0x9c] sm:$0xf]
  %v55 = vld [vmem:[%s0 + $0xa0] sm:$0xf]
  %v56 = vld [vmem:[%s0 + $0xa4] sm:$0xf]
  %v57 = vld [vmem:[%s0 + $0xa8] sm:$0xf]
  %v58 = vld [vmem:[%s0 + $0xac] sm:$0xf]
  %v59 = vld [vmem:[%s0 + $0xb0] sm:$0xf]
  %v60 = vld [vmem:[%s0 + $0xb4] sm:$0xf]
  %v61 = vld [vmem:[%s0 + $0xb8] sm:$0xf]
  %v62 = vld [vmem:[%s0 + $0xbc] sm:$0xf]
  %v63 = vld [vmem:[%s0 + $0xc0] sm:$0xf]
  %v64 = vld [vmem:[%s1] sm:$0xf]
  %v65 = vld [vmem:[%s1 + $0x4] sm:$0xf]
  %v66 = vld [vmem:[%s1 + $0x8] sm:$0xf]
  %v67 = vld [vmem:[%s1 + $0xc] sm:$0xf]
  %v68 = vld [vmem:[%s1 + $0x10] sm:$0xf]
  %v69 = vld [vmem:[%s1 + $0x14] sm:$0xf]
  %v70 = vld [vmem:[%s1 + $0x18] sm:$0xf]
  %v71 = vld [vmem:[%s1 + $0x1c] sm:$0xf]
  %v72 = vld [vmem:[%s2] sm:$0x1]
  %v74 = vperm.slane %v72, 0
  %v125 = vunpack.c.l.b16 %v15
  %v126 = vunpack.c.l.b16 %v16
  %v127 = vunpack.c.l.b16 %v17
  %v128 = vunpack.c.l.b16 %v18
  %v129 = vunpack.c.l.b16 %v19
  %v130 = vunpack.c.l.b16 %v20
  %v131 = vunpack.c.l.b16 %v21
  %v132 = vunpack.c.l.b16 %v22
  %v133 = vunpack.c.l.b16 %v23
  %v134 = vunpack.c.l.b16 %v24
  %v135 = vunpack.c.l.b16 %v25
  %v136 = vunpack.c.l.b16 %v26
  %v137 = vunpack.c.l.b16 %v27
  %v138 = vunpack.c.l.b16 %v28
  %v139 = vunpack.c.l.b16 %v29
  %v140 = vunpack.c.l.b16 %v30
  %v141 = vunpack.c.l.b16 %v31
  %v142 = vunpack.c.l.b16 %v32
  %v143 = vunpack.c.l.b16 %v33
  %v144 = vunpack.c.l.b16 %v34
  %v145 = vunpack.c.l.b16 %v35
  %v146 = vunpack.c.l.b16 %v36
  %v147 = vunpack.c.l.b16 %v37
  %v148 = vunpack.c.l.b16 %v38
  %v149 = vunpack.c.l.b16 %v39
  %v150 = vunpack.c.l.b16 %v40
  %v151 = vunpack.c.l.b16 %v41
  %v152 = vunpack.c.l.b16 %v42
  %v153 = vunpack.c.l.b16 %v43
  %v154 = vunpack.c.l.b16 %v44
  %v155 = vunpack.c.l.b16 %v45
  %v156 = vunpack.c.l.b16 %v46
  %v157 = vunpack.c.l.b16 %v47
  %v158 = vunpack.c.l.b16 %v48
  %v159 = vunpack.c.l.b16 %v49
  %v160 = vunpack.c.l.b16 %v50
  %v161 = vunpack.c.l.b16 %v51
  %v162 = vunpack.c.l.b16 %v52
  %v163 = vunpack.c.l.b16 %v53
  %v164 = vunpack.c.l.b16 %v54
  %v165 = vunpack.c.l.b16 %v55
  %v166 = vunpack.c.l.b16 %v56
  %v167 = vunpack.c.l.b16 %v57
  %v168 = vunpack.c.l.b16 %v58
  %v169 = vunpack.c.l.b16 %v59
  %v170 = vunpack.c.l.b16 %v60
  %v171 = vunpack.c.l.b16 %v61
  %v172 = vunpack.c.l.b16 %v62
  %v173 = vunpack.c.l.b16 %v63
  %v174 = vpack.c.b16 %v126, %v125
  %v175 = vpack.c.b16 %v128, %v127
  %v176 = vpack.c.b16 %v130, %v129
  %v177 = vpack.c.b16 %v132, %v131
  %v178 = vpack.c.b16 %v134, %v133
  %v179 = vpack.c.b16 %v136, %v135
  %v180 = vpack.c.b16 %v138, %v137
  %v181 = vpack.c.b16 %v140, %v139
  %v182 = vpack.c.b16 %v142, %v141
  %v183 = vpack.c.b16 %v144, %v143
  %v184 = vpack.c.b16 %v146, %v145
  %v185 = vpack.c.b16 %v148, %v147
  %v186 = vpack.c.b16 %v150, %v149
  %v187 = vpack.c.b16 %v152, %v151
  %v188 = vpack.c.b16 %v154, %v153
  %v189 = vpack.c.b16 %v156, %v155
  %v190 = vpack.c.b16 %v158, %v157
  %v191 = vpack.c.b16 %v160, %v159
  %v192 = vpack.c.b16 %v162, %v161
  %v193 = vpack.c.b16 %v164, %v163
  %v194 = vpack.c.b16 %v166, %v165
  %v195 = vpack.c.b16 %v168, %v167
  %v196 = vpack.c.b16 %v170, %v169
  %v197 = vpack.c.b16 %v172, %v171
  %v198 = vpack.c.b16 %v173, %v173
  %v207 = vunpack.c.l.b16 %v64
  %v208 = vunpack.c.l.b16 %v65
  %v209 = vunpack.c.l.b16 %v66
  %v210 = vunpack.c.l.b16 %v67
  %v211 = vunpack.c.l.b16 %v68
  %v212 = vunpack.c.l.b16 %v69
  %v213 = vunpack.c.l.b16 %v70
  %v214 = vunpack.c.l.b16 %v71
  %v215 = vpack.c.b16 %v208, %v207
  %v216 = vpack.c.b16 %v210, %v209
  %v217 = vpack.c.b16 %v212, %v211
  %v218 = vpack.c.b16 %v214, %v213
  %vm223 = vcmask 523264
  %v225 = vsel %vm223, %v174, 0
  %v228 = vsel %vm223, %v175, 0
  %v231 = vsel %vm223, %v176, 0
  %v234 = vsel %vm223, %v177, 0
  %v237 = vsel %vm223, %v178, 0
  %v240 = vsel %vm223, %v179, 0
  %v243 = vsel %vm223, %v180, 0
  %v246 = vsel %vm223, %v181, 0
  %v249 = vsel %vm223, %v182, 0
  %v252 = vsel %vm223, %v183, 0
  %v255 = vsel %vm223, %v184, 0
  %v258 = vsel %vm223, %v185, 0
  %v261 = vsel %vm223, %v186, 0
  %v264 = vsel %vm223, %v187, 0
  %v267 = vsel %vm223, %v188, 0
  %v270 = vsel %vm223, %v189, 0
  %v273 = vsel %vm223, %v190, 0
  %v276 = vsel %vm223, %v191, 0
  %v279 = vsel %vm223, %v192, 0
  %v282 = vsel %vm223, %v193, 0
  %v285 = vsel %vm223, %v194, 0
  %v288 = vsel %vm223, %v195, 0
  %v291 = vsel %vm223, %v196, 0
  %v294 = vsel %vm223, %v197, 0
  %v297 = vsel %vm223, %v198, 0
  %299 = vmatpush.bf16.msra.mxu0 0
  %300 = vmatpush.bf16.msra.mxu0 0
  %301 = vmatpush.bf16.msra.mxu0 0
  %302 = vmatpush.bf16.msra.mxu0 0
  %303 = vmatpush.bf16.msra.mxu0 %v218
  %304 = vmatpush.bf16.msra.mxu0 %v217
  %305 = vmatpush.bf16.msra.mxu0 %v216
  %306 = vmatpush.bf16.msra.mxu0 %v215
  %307 = vmatmul.bf16.gmra.mxu0 %v225
  %v308 = vpop.f32.mrf.mxu0
  %v309 = vadd.f32 %v74, %v308
  %v310 = vpop.f32.mrf.mxu0
  %v311 = vadd.f32 %v74, %v310
  %312 = vmatmul.bf16.gmra.mxu0 %v228
  %v313 = vpop.f32.mrf.mxu0
  %v314 = vadd.f32 %v74, %v313
  %v315 = vpop.f32.mrf.mxu0
  %v316 = vadd.f32 %v74, %v315
  %317 = vmatmul.bf16.gmra.mxu0 %v231
  %v318 = vpop.f32.mrf.mxu0
  %v319 = vadd.f32 %v74, %v318
  %v320 = vpop.f32.mrf.mxu0
  %v321 = vadd.f32 %v74, %v320
  %322 = vmatmul.bf16.gmra.mxu0 %v234
  %v323 = vpop.f32.mrf.mxu0
  %v324 = vadd.f32 %v74, %v323
  %v325 = vpop.f32.mrf.mxu0
  %v326 = vadd.f32 %v74, %v325
  %327 = vmatmul.bf16.gmra.mxu0 %v237
  %v328 = vpop.f32.mrf.mxu0
  %v329 = vadd.f32 %v74, %v328
  %v330 = vpop.f32.mrf.mxu0
  %v331 = vadd.f32 %v74, %v330
  %332 = vmatmul.bf16.gmra.mxu0 %v240
  %v333 = vpop.f32.mrf.mxu0
  %v334 = vadd.f32 %v74, %v333
  %v335 = vpop.f32.mrf.mxu0
  %v336 = vadd.f32 %v74, %v335
  %337 = vmatmul.bf16.gmra.mxu0 %v243
  %v338 = vpop.f32.mrf.mxu0
  %v339 = vadd.f32 %v74, %v338
  %v340 = vpop.f32.mrf.mxu0
  %v341 = vadd.f32 %v74, %v340
  %342 = vmatmul.bf16.gmra.mxu0 %v246
  %v343 = vpop.f32.mrf.mxu0
  %v344 = vadd.f32 %v74, %v343
  %v345 = vpop.f32.mrf.mxu0
  %v346 = vadd.f32 %v74, %v345
  %347 = vmatmul.bf16.gmra.mxu0 %v249
  %v348 = vpop.f32.mrf.mxu0
  %v349 = vadd.f32 %v74, %v348
  %v350 = vpop.f32.mrf.mxu0
  %v351 = vadd.f32 %v74, %v350
  %352 = vmatmul.bf16.gmra.mxu0 %v252
  %v353 = vpop.f32.mrf.mxu0
  %v354 = vadd.f32 %v74, %v353
  %v355 = vpop.f32.mrf.mxu0
  %v356 = vadd.f32 %v74, %v355
  %357 = vmatmul.bf16.gmra.mxu0 %v255
  %v358 = vpop.f32.mrf.mxu0
  %v359 = vadd.f32 %v74, %v358
  %v360 = vpop.f32.mrf.mxu0
  %v361 = vadd.f32 %v74, %v360
  %362 = vmatmul.bf16.gmra.mxu0 %v258
  %v363 = vpop.f32.mrf.mxu0
  %v364 = vadd.f32 %v74, %v363
  %v365 = vpop.f32.mrf.mxu0
  %v366 = vadd.f32 %v74, %v365
  %367 = vmatmul.bf16.gmra.mxu0 %v261
  %v368 = vpop.f32.mrf.mxu0
  %v369 = vadd.f32 %v74, %v368
  %v370 = vpop.f32.mrf.mxu0
  %v371 = vadd.f32 %v74, %v370
  %372 = vmatmul.bf16.gmra.mxu0 %v264
  %v373 = vpop.f32.mrf.mxu0
  %v374 = vadd.f32 %v74, %v373
  %v375 = vpop.f32.mrf.mxu0
  %v376 = vadd.f32 %v74, %v375
  %377 = vmatmul.bf16.gmra.mxu0 %v267
  %v378 = vpop.f32.mrf.mxu0
  %v379 = vadd.f32 %v74, %v378
  %v380 = vpop.f32.mrf.mxu0
  %v381 = vadd.f32 %v74, %v380
  %382 = vmatmul.bf16.gmra.mxu0 %v270
  %v383 = vpop.f32.mrf.mxu0
  %v384 = vadd.f32 %v74, %v383
  %v385 = vpop.f32.mrf.mxu0
  %v386 = vadd.f32 %v74, %v385
  %387 = vmatmul.bf16.gmra.mxu0 %v273
  %v388 = vpop.f32.mrf.mxu0
  %v389 = vadd.f32 %v74, %v388
  %v390 = vpop.f32.mrf.mxu0
  %v391 = vadd.f32 %v74, %v390
  %392 = vmatmul.bf16.gmra.mxu0 %v276
  %v393 = vpop.f32.mrf.mxu0
  %v394 = vadd.f32 %v74, %v393
  %v395 = vpop.f32.mrf.mxu0
  %v396 = vadd.f32 %v74, %v395
  %397 = vmatmul.bf16.gmra.mxu0 %v279
  %v398 = vpop.f32.mrf.mxu0
  %v399 = vadd.f32 %v74, %v398
  %v400 = vpop.f32.mrf.mxu0
  %v401 = vadd.f32 %v74, %v400
  %402 = vmatmul.bf16.gmra.mxu0 %v282
  %v403 = vpop.f32.mrf.mxu0
  %v404 = vadd.f32 %v74, %v403
  %v405 = vpop.f32.mrf.mxu0
  %v406 = vadd.f32 %v74, %v405
  %407 = vmatmul.bf16.gmra.mxu0 %v285
  %v408 = vpop.f32.mrf.mxu0
  %v409 = vadd.f32 %v74, %v408
  %v410 = vpop.f32.mrf.mxu0
  %v411 = vadd.f32 %v74, %v410
  %412 = vmatmul.bf16.gmra.mxu0 %v288
  %v413 = vpop.f32.mrf.mxu0
  %v414 = vadd.f32 %v74, %v413
  %v415 = vpop.f32.mrf.mxu0
  %v416 = vadd.f32 %v74, %v415
  %417 = vmatmul.bf16.gmra.mxu0 %v291
  %v418 = vpop.f32.mrf.mxu0
  %v419 = vadd.f32 %v74, %v418
  %v420 = vpop.f32.mrf.mxu0
  %v421 = vadd.f32 %v74, %v420
  %422 = vmatmul.bf16.gmra.mxu0 %v294
  %v423 = vpop.f32.mrf.mxu0
  %v424 = vadd.f32 %v74, %v423
  %v425 = vpop.f32.mrf.mxu0
  %v426 = vadd.f32 %v74, %v425
  %427 = vmatmul.bf16.gmra.mxu0 %v297
  %v428 = vpop.f32.mrf.mxu0
  %v429 = vadd.f32 %v74, %v428
  %v430 = vpop.f32.mrf.mxu0
  %431 = vdwg.mxu0
  %v432 = vmax.f32 %v309, 0.0
  %v433 = vmax.f32 %v311, 0.0
  %v434 = vmax.f32 %v314, 0.0
  %v435 = vmax.f32 %v316, 0.0
  %v436 = vmax.f32 %v319, 0.0
  %v437 = vmax.f32 %v321, 0.0
  %v438 = vmax.f32 %v324, 0.0
  %v439 = vmax.f32 %v326, 0.0
  %v440 = vmax.f32 %v329, 0.0
  %v441 = vmax.f32 %v331, 0.0
  %v442 = vmax.f32 %v334, 0.0
  %v443 = vmax.f32 %v336, 0.0
  %v444 = vmax.f32 %v339, 0.0
  %v445 = vmax.f32 %v341, 0.0
  %v446 = vmax.f32 %v344, 0.0
  %v447 = vmax.f32 %v346, 0.0
  %v448 = vmax.f32 %v349, 0.0
  %v449 = vmax.f32 %v351, 0.0
  %v450 = vmax.f32 %v354, 0.0
  %v451 = vmax.f32 %v356, 0.0
  %v452 = vmax.f32 %v359, 0.0
  %v453 = vmax.f32 %v361, 0.0
  %v454 = vmax.f32 %v364, 0.0
  %v455 = vmax.f32 %v366, 0.0
  %v456 = vmax.f32 %v369, 0.0
  %v457 = vmax.f32 %v371, 0.0
  %v458 = vmax.f32 %v374, 0.0
  %v459 = vmax.f32 %v376, 0.0
  %v460 = vmax.f32 %v379, 0.0
  %v461 = vmax.f32 %v381, 0.0
  %v462 = vmax.f32 %v384, 0.0
  %v463 = vmax.f32 %v386, 0.0
  %v464 = vmax.f32 %v389, 0.0
  %v465 = vmax.f32 %v391, 0.0
  %v466 = vmax.f32 %v394, 0.0
  %v467 = vmax.f32 %v396, 0.0
  %v468 = vmax.f32 %v399, 0.0
  %v469 = vmax.f32 %v401, 0.0
  %v470 = vmax.f32 %v404, 0.0
  %v471 = vmax.f32 %v406, 0.0
  %v472 = vmax.f32 %v409, 0.0
  %v473 = vmax.f32 %v411, 0.0
  %v474 = vmax.f32 %v414, 0.0
  %v475 = vmax.f32 %v416, 0.0
  %v476 = vmax.f32 %v419, 0.0
  %v477 = vmax.f32 %v421, 0.0
  %v478 = vmax.f32 %v424, 0.0
  %v479 = vmax.f32 %v426, 0.0
  %v480 = vmax.f32 %v429, 0.0
  %v481 = vpack.c.bf16 %v432, %v432
  %v482 = vpack.c.bf16 %v433, %v433
  %v483 = vpack.c.bf16 %v434, %v434
  %v484 = vpack.c.bf16 %v435, %v435
  %v485 = vpack.c.bf16 %v436, %v436
  %v486 = vpack.c.bf16 %v437, %v437
  %v487 = vpack.c.bf16 %v438, %v438
  %v488 = vpack.c.bf16 %v439, %v439
  %v489 = vpack.c.bf16 %v440, %v440
  %v490 = vpack.c.bf16 %v441, %v441
  %v491 = vpack.c.bf16 %v442, %v442
  %v492 = vpack.c.bf16 %v443, %v443
  %v493 = vpack.c.bf16 %v444, %v444
  %v494 = vpack.c.bf16 %v445, %v445
  %v495 = vpack.c.bf16 %v446, %v446
  %v496 = vpack.c.bf16 %v447, %v447
  %v497 = vpack.c.bf16 %v448, %v448
  %v498 = vpack.c.bf16 %v449, %v449
  %v499 = vpack.c.bf16 %v450, %v450
  %v500 = vpack.c.bf16 %v451, %v451
  %v501 = vpack.c.bf16 %v452, %v452
  %v502 = vpack.c.bf16 %v453, %v453
  %v503 = vpack.c.bf16 %v454, %v454
  %v504 = vpack.c.bf16 %v455, %v455
  %v505 = vpack.c.bf16 %v456, %v456
  %v506 = vpack.c.bf16 %v457, %v457
  %v507 = vpack.c.bf16 %v458, %v458
  %v508 = vpack.c.bf16 %v459, %v459
  %v509 = vpack.c.bf16 %v460, %v460
  %v510 = vpack.c.bf16 %v461, %v461
  %v511 = vpack.c.bf16 %v462, %v462
  %v512 = vpack.c.bf16 %v463, %v463
  %v513 = vpack.c.bf16 %v464, %v464
  %v514 = vpack.c.bf16 %v465, %v465
  %v515 = vpack.c.bf16 %v466, %v466
  %v516 = vpack.c.bf16 %v467, %v467
  %v517 = vpack.c.bf16 %v468, %v468
  %v518 = vpack.c.bf16 %v469, %v469
  %v519 = vpack.c.bf16 %v470, %v470
  %v520 = vpack.c.bf16 %v471, %v471
  %v521 = vpack.c.bf16 %v472, %v472
  %v522 = vpack.c.bf16 %v473, %v473
  %v523 = vpack.c.bf16 %v474, %v474
  %v524 = vpack.c.bf16 %v475, %v475
  %v525 = vpack.c.bf16 %v476, %v476
  %v526 = vpack.c.bf16 %v477, %v477
  %v527 = vpack.c.bf16 %v478, %v478
  %v528 = vpack.c.bf16 %v479, %v479
  %v529 = vpack.c.bf16 %v480, %v480
  %vm530 = vcmask 257024
  %531 = vst.msk [vmem:[%s3] sm:$0xf] %vm530, %v481
  %532 = vst.msk [vmem:[%s3 + $0x4] sm:$0xf] %vm530, %v482
  %533 = vst.msk [vmem:[%s3 + $0x8] sm:$0xf] %vm530, %v483
  %534 = vst.msk [vmem:[%s3 + $0xc] sm:$0xf] %vm530, %v484
  %535 = vst.msk [vmem:[%s3 + $0x10] sm:$0xf] %vm530, %v485
  %536 = vst.msk [vmem:[%s3 + $0x14] sm:$0xf] %vm530, %v486
  %537 = vst.msk [vmem:[%s3 + $0x18] sm:$0xf] %vm530, %v487
  %538 = vst.msk [vmem:[%s3 + $0x1c] sm:$0xf] %vm530, %v488
  %539 = vst.msk [vmem:[%s3 + $0x20] sm:$0xf] %vm530, %v489
  %540 = vst.msk [vmem:[%s3 + $0x24] sm:$0xf] %vm530, %v490
  %541 = vst.msk [vmem:[%s3 + $0x28] sm:$0xf] %vm530, %v491
  %542 = vst.msk [vmem:[%s3 + $0x2c] sm:$0xf] %vm530, %v492
  %543 = vst.msk [vmem:[%s3 + $0x30] sm:$0xf] %vm530, %v493
  %544 = vst.msk [vmem:[%s3 + $0x34] sm:$0xf] %vm530, %v494
  %545 = vst.msk [vmem:[%s3 + $0x38] sm:$0xf] %vm530, %v495
  %546 = vst.msk [vmem:[%s3 + $0x3c] sm:$0xf] %vm530, %v496
  %547 = vst.msk [vmem:[%s3 + $0x40] sm:$0xf] %vm530, %v497
  %548 = vst.msk [vmem:[%s3 + $0x44] sm:$0xf] %vm530, %v498
  %549 = vst.msk [vmem:[%s3 + $0x48] sm:$0xf] %vm530, %v499
  %550 = vst.msk [vmem:[%s3 + $0x4c] sm:$0xf] %vm530, %v500
  %551 = vst.msk [vmem:[%s3 + $0x50] sm:$0xf] %vm530, %v501
  %552 = vst.msk [vmem:[%s3 + $0x54] sm:$0xf] %vm530, %v502
  %553 = vst.msk [vmem:[%s3 + $0x58] sm:$0xf] %vm530, %v503
  %554 = vst.msk [vmem:[%s3 + $0x5c] sm:$0xf] %vm530, %v504
  %555 = vst.msk [vmem:[%s3 + $0x60] sm:$0xf] %vm530, %v505
  %556 = vst.msk [vmem:[%s3 + $0x64] sm:$0xf] %vm530, %v506
  %557 = vst.msk [vmem:[%s3 + $0x68] sm:$0xf] %vm530, %v507
  %558 = vst.msk [vmem:[%s3 + $0x6c] sm:$0xf] %vm530, %v508
  %559 = vst.msk [vmem:[%s3 + $0x70] sm:$0xf] %vm530, %v509
  %560 = vst.msk [vmem:[%s3 + $0x74] sm:$0xf] %vm530, %v510
  %561 = vst.msk [vmem:[%s3 + $0x78] sm:$0xf] %vm530, %v511
  %562 = vst.msk [vmem:[%s3 + $0x7c] sm:$0xf] %vm530, %v512
  %563 = vst.msk [vmem:[%s3 + $0x80] sm:$0xf] %vm530, %v513
  %564 = vst.msk [vmem:[%s3 + $0x84] sm:$0xf] %vm530, %v514
  %565 = vst.msk [vmem:[%s3 + $0x88] sm:$0xf] %vm530, %v515
  %566 = vst.msk [vmem:[%s3 + $0x8c] sm:$0xf] %vm530, %v516
  %567 = vst.msk [vmem:[%s3 + $0x90] sm:$0xf] %vm530, %v517
  %568 = vst.msk [vmem:[%s3 + $0x94] sm:$0xf] %vm530, %v518
  %569 = vst.msk [vmem:[%s3 + $0x98] sm:$0xf] %vm530, %v519
  %570 = vst.msk [vmem:[%s3 + $0x9c] sm:$0xf] %vm530, %v520
  %571 = vst.msk [vmem:[%s3 + $0xa0] sm:$0xf] %vm530, %v521
  %572 = vst.msk [vmem:[%s3 + $0xa4] sm:$0xf] %vm530, %v522
  %573 = vst.msk [vmem:[%s3 + $0xa8] sm:$0xf] %vm530, %v523
  %574 = vst.msk [vmem:[%s3 + $0xac] sm:$0xf] %vm530, %v524
  %575 = vst.msk [vmem:[%s3 + $0xb0] sm:$0xf] %vm530, %v525
  %576 = vst.msk [vmem:[%s3 + $0xb4] sm:$0xf] %vm530, %v526
  %577 = vst.msk [vmem:[%s3 + $0xb8] sm:$0xf] %vm530, %v527
  %578 = vst.msk [vmem:[%s3 + $0xbc] sm:$0xf] %vm530, %v528
  %579 = vst.msk [vmem:[%s3 + $0xc0] sm:$0xf] %vm530, %v529
  // Predicated region
  $region14: #{autoencoder4x_forward.10} parent=0 // pred_check
    _
  $region15: #{autoencoder4x_forward.10} parent=0 // pred_check_branch
    %581 = sbr.rel (0) target = $region17
  $region16: #{autoencoder4x_forward.10} parent=0 // pred_region
    _
  $region17: #{autoencoder4x_forward.10} parent=0 // pred_fallthru
    _
  // Predicated region
  $region18: #{autoencoder4x_forward.10} parent=0 // pred_check
    _
  $region19: #{autoencoder4x_forward.10} parent=0 // pred_check_branch
    %583 = sbr.rel (0) target = $region21
  $region20: #{autoencoder4x_forward.10} parent=0 // pred_region
    _
  $region21: #{autoencoder4x_forward.10} parent=0 // pred_fallthru
    _

// kernel: autoencoder4x_forward.11
$region0: #{autoencoder4x_forward.11}
  #allocation0 [shape = 'u32[]', space=smem, size = 0x4, offset = 0x4, fixed_abs, tag = 'smem constant byte address 0x4 - core index']
  #allocation1 [shape = 'u32[72,128]{1,0:T(1,128)}', space=vmem, size = 0x9000, scoped, tag = 'internal scratch']
  %s0 = inlined_call_operand.vmem [shape: bf16[1568,32], index: 0, kind: input, shape index: {}]
  %s1 = inlined_call_operand.vmem [shape: bf16[32,16], index: 1, kind: input, shape index: {}]
  %s2 = inlined_call_operand.vmem [shape: f32[1,16], index: 2, kind: input, shape index: {}]
  %s3 = inlined_call_operand.vmem [shape: f32[1568,16], index: 3, kind: output, shape index: {}]
  %s4 = sld [smem:[#allocation0]]
  $region45: #{autoencoder4x_forward.11} parent=0
    _
  %s6 = ssub.s32 1, %s4
  %s7 = scalar_select 0, %s6, %s4
  loop: start=0, step=1, limit=4
  $region2: #{autoencoder4x_forward.11} parent=0 // loop_pre_header
    _
  $region3: #{autoencoder4x_forward.11} parent=0 // loop_header
    %s9 = sphi 0, %s13
    %p10 = scmp.ge.s32.totalorder %s9, 4
    %s19 = sphi 0, %s21
    %s22 = sphi 0, %s19
    %s23 = sphi 0, %s22
    %s39 = sphi 0, %s23
    %s43 = sphi 0, %s43
    %s45 = sphi 0, %s43
    %s46 = sphi 0, %s45
    %s60 = sphi 0, %s46
    %s64 = sphi 0, %s64
    %s66 = sphi 0, %s64
    %s67 = sphi 0, %s66
    %s81 = sphi 0, %s67
    %s87 = sphi 0, %s89
    %s90 = sphi 0, %s87
    %s91 = sphi 0, %s90
    %s107 = sphi 0, %s91
  $region4: #{autoencoder4x_forward.11} parent=0 // loop_header_branch
    %12 = sbr.rel (%p10) target = $region8
  $region5: #{autoencoder4x_forward.11} parent=0 // loop_body
    %s14 = ssub.s32 %s9, 1
    %s15 = ssub.s32 %s9, 2
    %s16 = sadd.s32 %s9, 1
    %s17 = ssub.s32 %s9, %s16
    %p18 = scmp.eq.s32.totalorder %s17, 0
    %s20 = sadd.s32 %s19, 1
    %s21 = scalar_select %p18, %s19, %s20
    %p24 = pneg %p18
    %p25 = scmp.eq.s32.totalorder %s9, 1
    %p26 = por %p24, %p25
    %p27 = scmp.ne.s32.totalorder %s19, %s22
    %p28 = scmp.eq.s32.totalorder %s9, 0
    %p29 = por %p27, %p28
    %p30 = scmp.ne.s32.totalorder %s19, %s22
    %p31 = scmp.eq.s32.totalorder %s14, 1
    %p32 = por %p30, %p31
    %p33 = scmp.ne.s32.totalorder %s22, %s23
    %p34 = scmp.eq.s32.totalorder %s14, 0
    %p35 = por %p33, %p34
    %p36 = scmp.ne.s32.totalorder %s22, %s23
    %p37 = scmp.eq.s32.totalorder %s15, 1
    %p38 = por %p36, %p37
    %p40 = scmp.ne.s32.totalorder %s23, %s39
    %p41 = scmp.eq.s32.totalorder %s15, 0
    %p42 = por %p40, %p41
    %s44 = sadd.s32 %s43, 1
    %p47 = scmp.eq.s32.totalorder %s9, 1
    %p48 = scmp.ne.s32.totalorder %s43, %s45
    %p49 = scmp.eq.s32.totalorder %s9, 0
    %p50 = por %p48, %p49
    %p51 = scmp.ne.s32.totalorder %s43, %s45
    %p52 = scmp.eq.s32.totalorder %s14, 1
    %p53 = por %p51, %p52
    %p54 = scmp.ne.s32.totalorder %s45, %s46
    %p55 = scmp.eq.s32.totalorder %s14, 0
    %p56 = por %p54, %p55
    %p57 = scmp.ne.s32.totalorder %s45, %s46
    %p58 = scmp.eq.s32.totalorder %s15, 1
    %p59 = por %p57, %p58
    %p61 = scmp.ne.s32.totalorder %s46, %s60
    %p62 = scmp.eq.s32.totalorder %s15, 0
    %p63 = por %p61, %p62
    %s65 = sadd.s32 %s64, 1
    %p68 = scmp.eq.s32.totalorder %s9, 1
    %p69 = scmp.ne.s32.totalorder %s64, %s66
    %p70 = scmp.eq.s32.totalorder %s9, 0
    %p71 = por %p69, %p70
    %p72 = scmp.ne.s32.totalorder %s64, %s66
    %p73 = scmp.eq.s32.totalorder %s14, 1
    %p74 = por %p72, %p73
    %p75 = scmp.ne.s32.totalorder %s66, %s67
    %p76 = scmp.eq.s32.totalorder %s14, 0
    %p77 = por %p75, %p76
    %p78 = scmp.ne.s32.totalorder %s66, %s67
    %p79 = scmp.eq.s32.totalorder %s15, 1
    %p80 = por %p78, %p79
    %p82 = scmp.ne.s32.totalorder %s67, %s81
    %p83 = scmp.eq.s32.totalorder %s15, 0
    %p84 = por %p82, %p83
    %s85 = ssub.s32 %s9, %s16
    %p86 = scmp.eq.s32.totalorder %s85, 0
    %s88 = sadd.s32 %s87, 1
    %s89 = scalar_select %p86, %s87, %s88
    %p92 = pneg %p86
    %p93 = scmp.eq.s32.totalorder %s9, 1
    %p94 = por %p92, %p93
    %p95 = scmp.ne.s32.totalorder %s87, %s90
    %p96 = scmp.eq.s32.totalorder %s9, 0
    %p97 = por %p95, %p96
    %p98 = scmp.ne.s32.totalorder %s87, %s90
    %p99 = scmp.eq.s32.totalorder %s14, 1
    %p100 = por %p98, %p99
    %p101 = scmp.ne.s32.totalorder %s90, %s91
    %p102 = scmp.eq.s32.totalorder %s14, 0
    %p103 = por %p101, %p102
    %p104 = scmp.ne.s32.totalorder %s90, %s91
    %p105 = scmp.eq.s32.totalorder %s15, 1
    %p106 = por %p104, %p105
    %p108 = scmp.ne.s32.totalorder %s91, %s107
    %p109 = scmp.eq.s32.totalorder %s15, 0
    %p110 = por %p108, %p109
    %p111 = scmp.le.s32.totalorder 1, %s9
    %p112 = scmp.lt.s32.totalorder %s9, 3
    %p113 = pnand %p111, %p112
    %p114 = pneg %p113
    // Predicated region
    $region9: #{autoencoder4x_forward.11} parent=5 // pred_check
      _
    $region10: #{autoencoder4x_forward.11} parent=5 // pred_check_branch
      %116 = sbr.rel (%p113) target = $region12
    $region11: #{autoencoder4x_forward.11} parent=5 // pred_region
      %s117 = ssub.s32 %s9, 1
      // Predicated region
      $region13: #{autoencoder4x_forward.11} parent=11 // pred_check
        %p118 = pneg %p56
      $region14: #{autoencoder4x_forward.11} parent=11 // pred_check_branch
        %120 = sbr.rel (%p118) target = $region16
      $region15: #{autoencoder4x_forward.11} parent=11 // pred_region
        _
      $region16: #{autoencoder4x_forward.11} parent=11 // pred_fallthru
        _
      // Predicated region
      $region17: #{autoencoder4x_forward.11} parent=11 // pred_check
        %p121 = pneg %p77
      $region18: #{autoencoder4x_forward.11} parent=11 // pred_check_branch
        %123 = sbr.rel (%p121) target = $region20
      $region19: #{autoencoder4x_forward.11} parent=11 // pred_region
        _
      $region20: #{autoencoder4x_forward.11} parent=11 // pred_fallthru
        _
    $region12: #{autoencoder4x_forward.11} parent=5 // pred_fallthru
      _
    %p124 = scmp.lt.s32.totalorder %s9, 2
    // Predicated region
    $region21: #{autoencoder4x_forward.11} parent=5 // pred_check
      %p125 = pneg %p124
    $region22: #{autoencoder4x_forward.11} parent=5 // pred_check_branch
      %127 = sbr.rel (%p125) target = $region24
    $region23: #{autoencoder4x_forward.11} parent=5 // pred_region
      // Predicated region
      $region25: #{autoencoder4x_forward.11} parent=23 // pred_check
        %p128 = pneg %p29
      $region26: #{autoencoder4x_forward.11} parent=23 // pred_check_branch
        %130 = sbr.rel (%p128) target = $region28
      $region27: #{autoencoder4x_forward.11} parent=23 // pred_region
        %s131 = smul.u32 98, %s9
        %p132 = scmp.lt.s32.totalorder %s131, 195
        %s133 = scalar_select %p132, %s131, 195
        %s134 = smul.addr %s133, 4
        %s135 = scalar_lea.vmem %s0, %s134
        %s136 = smul.u32 98, %s9
      $region28: #{autoencoder4x_forward.11} parent=23 // pred_fallthru
        _
    $region24: #{autoencoder4x_forward.11} parent=5 // pred_fallthru
      _
    %p137 = scmp.le.s32.totalorder 1, %s9
    %p138 = scmp.lt.s32.totalorder %s9, 3
    %p139 = pnand %p137, %p138
    %p140 = pneg %p139
    // Predicated region
    $region29: #{autoencoder4x_forward.11} parent=5 // pred_check
      _
    $region30: #{autoencoder4x_forward.11} parent=5 // pred_check_branch
      %142 = sbr.rel (%p139) target = $region32
    $region31: #{autoencoder4x_forward.11} parent=5 // pred_region
      %s143 = ssub.s32 %s9, 1
      %s144 = smul.u32 98, %s14
      %p145 = scmp.lt.s32.totalorder %s144, 195
      %s146 = scalar_select %p145, %s144, 195
      %s147 = smul.addr %s146, 4
      %s148 = scalar_lea.vmem %s0, %s147
      %p149 = pneg %p35
      %p150 = pneg %p32
      %p151 = pneg %p56
      %p152 = pneg %p53
      %p153 = pneg %p77
      %p154 = pneg %p74
      %p155 = pneg %p103
      %p156 = pneg %p100
      %s157 = smul.u32 98, %s14
      %p158 = scmp.lt.s32.totalorder %s157, 195
      %s159 = scalar_select %p158, %s157, 195
      %s160 = smul.addr %s159, 8
      %s161 = scalar_lea.vmem %s3, %s160
      %s162 = smul.u32 98, %s14
      %p163 = scmp.lt.s32.totalorder %s162, 195
      %s164 = scalar_select %p163, %s162, 195
      %s165 = smul.addr %s164, 4
      %s166 = scalar_lea.vmem %s0, %s165
      %s167 = smul.u32 98, %s14
      %s168 = smul.u32 98, %s14
      %p169 = scmp.lt.s32.totalorder %s168, 195
      %s170 = scalar_select %p169, %s168, 195
      %s171 = smul.addr %s170, 8
      %s172 = scalar_lea.vmem %s3, %s171
      %s173 = smul.u32 98, %s14
      %v175 = vld [vmem:[%s166] sm:$0xf]
      %v176 = vld [vmem:[%s166 + $0x4] sm:$0xf]
      %v177 = vld [vmem:[%s166 + $0x8] sm:$0xf]
      %v178 = vld [vmem:[%s166 + $0xc] sm:$0xf]
      %v179 = vld [vmem:[%s166 + $0x10] sm:$0xf]
      %v180 = vld [vmem:[%s166 + $0x14] sm:$0xf]
      %v181 = vld [vmem:[%s166 + $0x18] sm:$0xf]
      %v182 = vld [vmem:[%s166 + $0x1c] sm:$0xf]
      %v183 = vld [vmem:[%s166 + $0x20] sm:$0xf]
      %v184 = vld [vmem:[%s166 + $0x24] sm:$0xf]
      %v185 = vld [vmem:[%s166 + $0x28] sm:$0xf]
      %v186 = vld [vmem:[%s166 + $0x2c] sm:$0xf]
      %v187 = vld [vmem:[%s166 + $0x30] sm:$0xf]
      %v188 = vld [vmem:[%s166 + $0x34] sm:$0xf]
      %v189 = vld [vmem:[%s166 + $0x38] sm:$0xf]
      %v190 = vld [vmem:[%s166 + $0x3c] sm:$0xf]
      %v191 = vld [vmem:[%s166 + $0x40] sm:$0xf]
      %v192 = vld [vmem:[%s166 + $0x44] sm:$0xf]
      %v193 = vld [vmem:[%s166 + $0x48] sm:$0xf]
      %v194 = vld [vmem:[%s166 + $0x4c] sm:$0xf]
      %v195 = vld [vmem:[%s166 + $0x50] sm:$0xf]
      %v196 = vld [vmem:[%s166 + $0x54] sm:$0xf]
      %v197 = vld [vmem:[%s166 + $0x58] sm:$0xf]
      %v198 = vld [vmem:[%s166 + $0x5c] sm:$0xf]
      %v199 = vld [vmem:[%s166 + $0x60] sm:$0xf]
      %v200 = vld [vmem:[%s166 + $0x64] sm:$0xf]
      %v201 = vld [vmem:[%s166 + $0x68] sm:$0xf]
      %v202 = vld [vmem:[%s166 + $0x6c] sm:$0xf]
      %v203 = vld [vmem:[%s166 + $0x70] sm:$0xf]
      %v204 = vld [vmem:[%s166 + $0x74] sm:$0xf]
      %v205 = vld [vmem:[%s166 + $0x78] sm:$0xf]
      %v206 = vld [vmem:[%s166 + $0x7c] sm:$0xf]
      %v207 = vld [vmem:[%s166 + $0x80] sm:$0xf]
      %v208 = vld [vmem:[%s166 + $0x84] sm:$0xf]
      %v209 = vld [vmem:[%s166 + $0x88] sm:$0xf]
      %v210 = vld [vmem:[%s166 + $0x8c] sm:$0xf]
      %v211 = vld [vmem:[%s166 + $0x90] sm:$0xf]
      %v212 = vld [vmem:[%s166 + $0x94] sm:$0xf]
      %v213 = vld [vmem:[%s166 + $0x98] sm:$0xf]
      %v214 = vld [vmem:[%s166 + $0x9c] sm:$0xf]
      %v215 = vld [vmem:[%s166 + $0xa0] sm:$0xf]
      %v216 = vld [vmem:[%s166 + $0xa4] sm:$0xf]
      %v217 = vld [vmem:[%s166 + $0xa8] sm:$0xf]
      %v218 = vld [vmem:[%s166 + $0xac] sm:$0xf]
      %v219 = vld [vmem:[%s166 + $0xb0] sm:$0xf]
      %v220 = vld [vmem:[%s166 + $0xb4] sm:$0xf]
      %v221 = vld [vmem:[%s166 + $0xb8] sm:$0xf]
      %v222 = vld [vmem:[%s166 + $0xbc] sm:$0xf]
      %v223 = vld [vmem:[%s166 + $0xc0] sm:$0xf]
      %v224 = vld [vmem:[%s166 + $0xc4] sm:$0xf]
      %v225 = vld [vmem:[%s166 + $0xc8] sm:$0xf]
      %v226 = vld [vmem:[%s166 + $0xcc] sm:$0xf]
      %v227 = vld [vmem:[%s166 + $0xd0] sm:$0xf]
      %v228 = vld [vmem:[%s166 + $0xd4] sm:$0xf]
      %v229 = vld [vmem:[%s166 + $0xd8] sm:$0xf]
      %v230 = vld [vmem:[%s166 + $0xdc] sm:$0xf]
      %v231 = vld [vmem:[%s166 + $0xe0] sm:$0xf]
      %v232 = vld [vmem:[%s166 + $0xe4] sm:$0xf]
      %v233 = vld [vmem:[%s166 + $0xe8] sm:$0xf]
      %v234 = vld [vmem:[%s166 + $0xec] sm:$0xf]
      %v235 = vld [vmem:[%s166 + $0xf0] sm:$0xf]
      %v236 = vld [vmem:[%s166 + $0xf4] sm:$0xf]
      %v237 = vld [vmem:[%s166 + $0xf8] sm:$0xf]
      %v238 = vld [vmem:[%s166 + $0xfc] sm:$0xf]
      %v239 = vld [vmem:[%s166 + $0x100] sm:$0xf]
      %v240 = vld [vmem:[%s166 + $0x104] sm:$0xf]
      %v241 = vld [vmem:[%s166 + $0x108] sm:$0xf]
      %v242 = vld [vmem:[%s166 + $0x10c] sm:$0xf]
      %v243 = vld [vmem:[%s166 + $0x110] sm:$0xf]
      %v244 = vld [vmem:[%s166 + $0x114] sm:$0xf]
      %v245 = vld [vmem:[%s166 + $0x118] sm:$0xf]
      %v246 = vld [vmem:[%s166 + $0x11c] sm:$0xf]
      %v247 = vld [vmem:[%s166 + $0x120] sm:$0xf]
      %v248 = vld [vmem:[%s166 + $0x124] sm:$0xf]
      %v249 = vld [vmem:[%s166 + $0x128] sm:$0xf]
      %v250 = vld [vmem:[%s166 + $0x12c] sm:$0xf]
      %v251 = vld [vmem:[%s166 + $0x130] sm:$0xf]
      %v252 = vld [vmem:[%s166 + $0x134] sm:$0xf]
      %v253 = vld [vmem:[%s166 + $0x138] sm:$0xf]
      %v254 = vld [vmem:[%s166 + $0x13c] sm:$0xf]
      %v255 = vld [vmem:[%s166 + $0x140] sm:$0xf]
      %v256 = vld [vmem:[%s166 + $0x144] sm:$0xf]
      %v257 = vld [vmem:[%s166 + $0x148] sm:$0xf]
      %v258 = vld [vmem:[%s166 + $0x14c] sm:$0xf]
      %v259 = vld [vmem:[%s166 + $0x150] sm:$0xf]
      %v260 = vld [vmem:[%s166 + $0x154] sm:$0xf]
      %v261 = vld [vmem:[%s166 + $0x158] sm:$0xf]
      %v262 = vld [vmem:[%s166 + $0x15c] sm:$0xf]
      %v263 = vld [vmem:[%s166 + $0x160] sm:$0xf]
      %v264 = vld [vmem:[%s166 + $0x164] sm:$0xf]
      %v265 = vld [vmem:[%s166 + $0x168] sm:$0xf]
      %v266 = vld [vmem:[%s166 + $0x16c] sm:$0xf]
      %v267 = vld [vmem:[%s166 + $0x170] sm:$0xf]
      %v268 = vld [vmem:[%s166 + $0x174] sm:$0xf]
      %v269 = vld [vmem:[%s166 + $0x178] sm:$0xf]
      %v270 = vld [vmem:[%s166 + $0x17c] sm:$0xf]
      %v271 = vld [vmem:[%s166 + $0x180] sm:$0xf]
      %v272 = vld [vmem:[%s166 + $0x184] sm:$0xf]
      %v273 = vld [vmem:[%s1] sm:$0xf]
      %v274 = vld [vmem:[%s1 + $0x4] sm:$0xf]
      %v275 = vld [vmem:[%s1 + $0x8] sm:$0xf]
      %v276 = vld [vmem:[%s1 + $0xc] sm:$0xf]
      %v277 = vld [vmem:[%s2] sm:$0x1]
      %v279 = vperm.slane %v277, 0
      %v379 = vunpack.c.l.b16 %v175
      %v380 = vunpack.c.l.b16 %v176
      %v381 = vunpack.c.l.b16 %v177
      %v382 = vunpack.c.l.b16 %v178
      %v383 = vunpack.c.l.b16 %v179
      %v384 = vunpack.c.l.b16 %v180
      %v385 = vunpack.c.l.b16 %v181
      %v386 = vunpack.c.l.b16 %v182
      %v387 = vunpack.c.l.b16 %v183
      %v388 = vunpack.c.l.b16 %v184
      %v389 = vunpack.c.l.b16 %v185
      %v390 = vunpack.c.l.b16 %v186
      %v391 = vunpack.c.l.b16 %v187
      %v392 = vunpack.c.l.b16 %v188
      %v393 = vunpack.c.l.b16 %v189
      %v394 = vunpack.c.l.b16 %v190
      %v395 = vunpack.c.l.b16 %v191
      %v396 = vunpack.c.l.b16 %v192
      %v397 = vunpack.c.l.b16 %v193
      %v398 = vunpack.c.l.b16 %v194
      %v399 = vunpack.c.l.b16 %v195
      %v400 = vunpack.c.l.b16 %v196
      %v401 = vunpack.c.l.b16 %v197
      %v402 = vunpack.c.l.b16 %v198
      %v403 = vunpack.c.l.b16 %v199
      %v404 = vunpack.c.l.b16 %v200
      %v405 = vunpack.c.l.b16 %v201
      %v406 = vunpack.c.l.b16 %v202
      %v407 = vunpack.c.l.b16 %v203
      %v408 = vunpack.c.l.b16 %v204
      %v409 = vunpack.c.l.b16 %v205
      %v410 = vunpack.c.l.b16 %v206
      %v411 = vunpack.c.l.b16 %v207
      %v412 = vunpack.c.l.b16 %v208
      %v413 = vunpack.c.l.b16 %v209
      %v414 = vunpack.c.l.b16 %v210
      %v415 = vunpack.c.l.b16 %v211
      %v416 = vunpack.c.l.b16 %v212
      %v417 = vunpack.c.l.b16 %v213
      %v418 = vunpack.c.l.b16 %v214
      %v419 = vunpack.c.l.b16 %v215
      %v420 = vunpack.c.l.b16 %v216
      %v421 = vunpack.c.l.b16 %v217
      %v422 = vunpack.c.l.b16 %v218
      %v423 = vunpack.c.l.b16 %v219
      %v424 = vunpack.c.l.b16 %v220
      %v425 = vunpack.c.l.b16 %v221
      %v426 = vunpack.c.l.b16 %v222
      %v427 = vunpack.c.l.b16 %v223
      %v428 = vunpack.c.l.b16 %v224
      %v429 = vunpack.c.l.b16 %v225
      %v430 = vunpack.c.l.b16 %v226
      %v431 = vunpack.c.l.b16 %v227
      %v432 = vunpack.c.l.b16 %v228
      %v433 = vunpack.c.l.b16 %v229
      %v434 = vunpack.c.l.b16 %v230
      %v435 = vunpack.c.l.b16 %v231
      %v436 = vunpack.c.l.b16 %v232
      %v437 = vunpack.c.l.b16 %v233
      %v438 = vunpack.c.l.b16 %v234
      %v439 = vunpack.c.l.b16 %v235
      %v440 = vunpack.c.l.b16 %v236
      %v441 = vunpack.c.l.b16 %v237
      %v442 = vunpack.c.l.b16 %v238
      %v443 = vunpack.c.l.b16 %v239
      %v444 = vunpack.c.l.b16 %v240
      %v445 = vunpack.c.l.b16 %v241
      %v446 = vunpack.c.l.b16 %v242
      %v447 = vunpack.c.l.b16 %v243
      %v448 = vunpack.c.l.b16 %v244
      %v449 = vunpack.c.l.b16 %v245
      %v450 = vunpack.c.l.b16 %v246
      %v451 = vunpack.c.l.b16 %v247
      %v452 = vunpack.c.l.b16 %v248
      %v453 = vunpack.c.l.b16 %v249
      %v454 = vunpack.c.l.b16 %v250
      %v455 = vunpack.c.l.b16 %v251
      %v456 = vunpack.c.l.b16 %v252
      %v457 = vunpack.c.l.b16 %v253
      %v458 = vunpack.c.l.b16 %v254
      %v459 = vunpack.c.l.b16 %v255
      %v460 = vunpack.c.l.b16 %v256
      %v461 = vunpack.c.l.b16 %v257
      %v462 = vunpack.c.l.b16 %v258
      %v463 = vunpack.c.l.b16 %v259
      %v464 = vunpack.c.l.b16 %v260
      %v465 = vunpack.c.l.b16 %v261
      %v466 = vunpack.c.l.b16 %v262
      %v467 = vunpack.c.l.b16 %v263
      %v468 = vunpack.c.l.b16 %v264
      %v469 = vunpack.c.l.b16 %v265
      %v470 = vunpack.c.l.b16 %v266
      %v471 = vunpack.c.l.b16 %v267
      %v472 = vunpack.c.l.b16 %v268
      %v473 = vunpack.c.l.b16 %v269
      %v474 = vunpack.c.l.b16 %v270
      %v475 = vunpack.c.l.b16 %v271
      %v476 = vunpack.c.l.b16 %v272
      %v477 = vpack.c.b16 %v380, %v379
      %v478 = vpack.c.b16 %v382, %v381
      %v479 = vpack.c.b16 %v384, %v383
      %v480 = vpack.c.b16 %v386, %v385
      %v481 = vpack.c.b16 %v388, %v387
      %v482 = vpack.c.b16 %v390, %v389
      %v483 = vpack.c.b16 %v392, %v391
      %v484 = vpack.c.b16 %v394, %v393
      %v485 = vpack.c.b16 %v396, %v395
      %v486 = vpack.c.b16 %v398, %v397
      %v487 = vpack.c.b16 %v400, %v399
      %v488 = vpack.c.b16 %v402, %v401
      %v489 = vpack.c.b16 %v404, %v403
      %v490 = vpack.c.b16 %v406, %v405
      %v491 = vpack.c.b16 %v408, %v407
      %v492 = vpack.c.b16 %v410, %v409
      %v493 = vpack.c.b16 %v412, %v411
      %v494 = vpack.c.b16 %v414, %v413
      %v495 = vpack.c.b16 %v416, %v415
      %v496 = vpack.c.b16 %v418, %v417
      %v497 = vpack.c.b16 %v420, %v419
      %v498 = vpack.c.b16 %v422, %v421
      %v499 = vpack.c.b16 %v424, %v423
      %v500 = vpack.c.b16 %v426, %v425
      %v501 = vpack.c.b16 %v428, %v427
      %v502 = vpack.c.b16 %v430, %v429
      %v503 = vpack.c.b16 %v432, %v431
      %v504 = vpack.c.b16 %v434, %v433
      %v505 = vpack.c.b16 %v436, %v435
      %v506 = vpack.c.b16 %v438, %v437
      %v507 = vpack.c.b16 %v440, %v439
      %v508 = vpack.c.b16 %v442, %v441
      %v509 = vpack.c.b16 %v444, %v443
      %v510 = vpack.c.b16 %v446, %v445
      %v511 = vpack.c.b16 %v448, %v447
      %v512 = vpack.c.b16 %v450, %v449
      %v513 = vpack.c.b16 %v452, %v451
      %v514 = vpack.c.b16 %v454, %v453
      %v515 = vpack.c.b16 %v456, %v455
      %v516 = vpack.c.b16 %v458, %v457
      %v517 = vpack.c.b16 %v460, %v459
      %v518 = vpack.c.b16 %v462, %v461
      %v519 = vpack.c.b16 %v464, %v463
      %v520 = vpack.c.b16 %v466, %v465
      %v521 = vpack.c.b16 %v468, %v467
      %v522 = vpack.c.b16 %v470, %v469
      %v523 = vpack.c.b16 %v472, %v471
      %v524 = vpack.c.b16 %v474, %v473
      %v525 = vpack.c.b16 %v476, %v475
      %v530 = vunpack.c.l.b16 %v273
      %v531 = vunpack.c.l.b16 %v274
      %v532 = vunpack.c.l.b16 %v275
      %v533 = vunpack.c.l.b16 %v276
      %v534 = vpack.c.b16 %v531, %v530
      %v535 = vpack.c.b16 %v533, %v532
      %vm538 = vcmask 261120
      %v540 = vsel %vm538, %v477, 0
      %v543 = vsel %vm538, %v478, 0
      %v546 = vsel %vm538, %v479, 0
      %v549 = vsel %vm538, %v480, 0
      %v552 = vsel %vm538, %v481, 0
      %v555 = vsel %vm538, %v482, 0
      %v558 = vsel %vm538, %v483, 0
      %v561 = vsel %vm538, %v484, 0
      %v564 = vsel %vm538, %v485, 0
      %v567 = vsel %vm538, %v486, 0
      %v570 = vsel %vm538, %v487, 0
      %v573 = vsel %vm538, %v488, 0
      %v576 = vsel %vm538, %v489, 0
      %v579 = vsel %vm538, %v490, 0
      %v582 = vsel %vm538, %v491, 0
      %v585 = vsel %vm538, %v492, 0
      %v588 = vsel %vm538, %v493, 0
      %v591 = vsel %vm538, %v494, 0
      %v594 = vsel %vm538, %v495, 0
      %v597 = vsel %vm538, %v496, 0
      %v600 = vsel %vm538, %v497, 0
      %v603 = vsel %vm538, %v498, 0
      %v606 = vsel %vm538, %v499, 0
      %v609 = vsel %vm538, %v500, 0
      %v612 = vsel %vm538, %v501, 0
      %v615 = vsel %vm538, %v502, 0
      %v618 = vsel %vm538, %v503, 0
      %v621 = vsel %vm538, %v504, 0
      %v624 = vsel %vm538, %v505, 0
      %v627 = vsel %vm538, %v506, 0
      %v630 = vsel %vm538, %v507, 0
      %v633 = vsel %vm538, %v508, 0
      %v636 = vsel %vm538, %v509, 0
      %v639 = vsel %vm538, %v510, 0
      %v642 = vsel %vm538, %v511, 0
      %v645 = vsel %vm538, %v512, 0
      %v648 = vsel %vm538, %v513, 0
      %v651 = vsel %vm538, %v514, 0
      %v654 = vsel %vm538, %v515, 0
      %v657 = vsel %vm538, %v516, 0
      %v660 = vsel %vm538, %v517, 0
      %v663 = vsel %vm538, %v518, 0
      %v666 = vsel %vm538, %v519, 0
      %v669 = vsel %vm538, %v520, 0
      %v672 = vsel %vm538, %v521, 0
      %v675 = vsel %vm538, %v522, 0
      %v678 = vsel %vm538, %v523, 0
      %v681 = vsel %vm538, %v524, 0
      %v684 = vsel %vm538, %v525, 0
      %686 = vmatpush.bf16.msra.mxu0 0
      %687 = vmatpush.bf16.msra.mxu0 0
      %688 = vmatpush.bf16.msra.mxu0 0
      %689 = vmatpush.bf16.msra.mxu0 0
      %690 = vmatpush.bf16.msra.mxu0 0
      %691 = vmatpush.bf16.msra.mxu0 0
      %692 = vmatpush.bf16.msra.mxu0 %v535
      %693 = vmatpush.bf16.msra.mxu0 %v534
      %694 = vmatmul.bf16.gmra.mxu0 %v540
      %v695 = vpop.f32.mrf.mxu0
      %v696 = vadd.f32 %v279, %v695
      %v697 = vpop.f32.mrf.mxu0
      %v698 = vadd.f32 %v279, %v697
      %699 = vmatmul.bf16.gmra.mxu0 %v543
      %v700 = vpop.f32.mrf.mxu0
      %v701 = vadd.f32 %v279, %v700
      %v702 = vpop.f32.mrf.mxu0
      %v703 = vadd.f32 %v279, %v702
      %704 = vmatmul.bf16.gmra.mxu0 %v546
      %v705 = vpop.f32.mrf.mxu0
      %v706 = vadd.f32 %v279, %v705
      %v707 = vpop.f32.mrf.mxu0
      %v708 = vadd.f32 %v279, %v707
      %709 = vmatmul.bf16.gmra.mxu0 %v549
      %v710 = vpop.f32.mrf.mxu0
      %v711 = vadd.f32 %v279, %v710
      %v712 = vpop.f32.mrf.mxu0
      %v713 = vadd.f32 %v279, %v712
      %714 = vmatmul.bf16.gmra.mxu0 %v552
      %v715 = vpop.f32.mrf.mxu0
      %v716 = vadd.f32 %v279, %v715
      %v717 = vpop.f32.mrf.mxu0
      %v718 = vadd.f32 %v279, %v717
      %719 = vmatmul.bf16.gmra.mxu0 %v555
      %v720 = vpop.f32.mrf.mxu0
      %v721 = vadd.f32 %v279, %v720
      %v722 = vpop.f32.mrf.mxu0
      %v723 = vadd.f32 %v279, %v722
      %724 = vmatmul.bf16.gmra.mxu0 %v558
      %v725 = vpop.f32.mrf.mxu0
      %v726 = vadd.f32 %v279, %v725
      %v727 = vpop.f32.mrf.mxu0
      %v728 = vadd.f32 %v279, %v727
      %729 = vmatmul.bf16.gmra.mxu0 %v561
      %v730 = vpop.f32.mrf.mxu0
      %v731 = vadd.f32 %v279, %v730
      %v732 = vpop.f32.mrf.mxu0
      %v733 = vadd.f32 %v279, %v732
      %734 = vmatmul.bf16.gmra.mxu0 %v564
      %v735 = vpop.f32.mrf.mxu0
      %v736 = vadd.f32 %v279, %v735
      %v737 = vpop.f32.mrf.mxu0
      %v738 = vadd.f32 %v279, %v737
      %739 = vmatmul.bf16.gmra.mxu0 %v567
      %v740 = vpop.f32.mrf.mxu0
      %v741 = vadd.f32 %v279, %v740
      %v742 = vpop.f32.mrf.mxu0
      %v743 = vadd.f32 %v279, %v742
      %744 = vmatmul.bf16.gmra.mxu0 %v570
      %v745 = vpop.f32.mrf.mxu0
      %v746 = vadd.f32 %v279, %v745
      %v747 = vpop.f32.mrf.mxu0
      %v748 = vadd.f32 %v279, %v747
      %749 = vmatmul.bf16.gmra.mxu0 %v573
      %v750 = vpop.f32.mrf.mxu0
      %v751 = vadd.f32 %v279, %v750
      %v752 = vpop.f32.mrf.mxu0
      %v753 = vadd.f32 %v279, %v752
      %754 = vmatmul.bf16.gmra.mxu0 %v576
      %v755 = vpop.f32.mrf.mxu0
      %v756 = vadd.f32 %v279, %v755
      %v757 = vpop.f32.mrf.mxu0
      %v758 = vadd.f32 %v279, %v757
      %759 = vmatmul.bf16.gmra.mxu0 %v579
      %v760 = vpop.f32.mrf.mxu0
      %v761 = vadd.f32 %v279, %v760
      %v762 = vpop.f32.mrf.mxu0
      %v763 = vadd.f32 %v279, %v762
      %764 = vmatmul.bf16.gmra.mxu0 %v582
      %v765 = vpop.f32.mrf.mxu0
      %v766 = vadd.f32 %v279, %v765
      %v767 = vpop.f32.mrf.mxu0
      %v768 = vadd.f32 %v279, %v767
      %769 = vmatmul.bf16.gmra.mxu0 %v585
      %v770 = vpop.f32.mrf.mxu0
      %v771 = vadd.f32 %v279, %v770
      %v772 = vpop.f32.mrf.mxu0
      %v773 = vadd.f32 %v279, %v772
      %774 = vmatmul.bf16.gmra.mxu0 %v588
      %v775 = vpop.f32.mrf.mxu0
      %v776 = vadd.f32 %v279, %v775
      %v777 = vpop.f32.mrf.mxu0
      %v778 = vadd.f32 %v279, %v777
      %779 = vmatmul.bf16.gmra.mxu0 %v591
      %v780 = vpop.f32.mrf.mxu0
      %v781 = vadd.f32 %v279, %v780
      %v782 = vpop.f32.mrf.mxu0
      %v783 = vadd.f32 %v279, %v782
      %784 = vmatmul.bf16.gmra.mxu0 %v594
      %v785 = vpop.f32.mrf.mxu0
      %v786 = vadd.f32 %v279, %v785
      %v787 = vpop.f32.mrf.mxu0
      %v788 = vadd.f32 %v279, %v787
      %789 = vmatmul.bf16.gmra.mxu0 %v597
      %v790 = vpop.f32.mrf.mxu0
      %v791 = vadd.f32 %v279, %v790
      %v792 = vpop.f32.mrf.mxu0
      %v793 = vadd.f32 %v279, %v792
      %794 = vmatmul.bf16.gmra.mxu0 %v600
      %v795 = vpop.f32.mrf.mxu0
      %v796 = vadd.f32 %v279, %v795
      %v797 = vpop.f32.mrf.mxu0
      %v798 = vadd.f32 %v279, %v797
      %799 = vmatmul.bf16.gmra.mxu0 %v603
      %v800 = vpop.f32.mrf.mxu0
      %v801 = vadd.f32 %v279, %v800
      %v802 = vpop.f32.mrf.mxu0
      %v803 = vadd.f32 %v279, %v802
      %804 = vmatmul.bf16.gmra.mxu0 %v606
      %v805 = vpop.f32.mrf.mxu0
      %v806 = vadd.f32 %v279, %v805
      %v807 = vpop.f32.mrf.mxu0
      %v808 = vadd.f32 %v279, %v807
      %809 = vmatmul.bf16.gmra.mxu0 %v609
      %v810 = vpop.f32.mrf.mxu0
      %v811 = vadd.f32 %v279, %v810
      %v812 = vpop.f32.mrf.mxu0
      %v813 = vadd.f32 %v279, %v812
      %814 = vmatmul.bf16.gmra.mxu0 %v612
      %v815 = vpop.f32.mrf.mxu0
      %v816 = vadd.f32 %v279, %v815
      %v817 = vpop.f32.mrf.mxu0
      %v818 = vadd.f32 %v279, %v817
      %819 = vmatmul.bf16.gmra.mxu0 %v615
      %v820 = vpop.f32.mrf.mxu0
      %v821 = vadd.f32 %v279, %v820
      %v822 = vpop.f32.mrf.mxu0
      %v823 = vadd.f32 %v279, %v822
      %824 = vmatmul.bf16.gmra.mxu0 %v618
      %v825 = vpop.f32.mrf.mxu0
      %v826 = vadd.f32 %v279, %v825
      %v827 = vpop.f32.mrf.mxu0
      %v828 = vadd.f32 %v279, %v827
      %829 = vmatmul.bf16.gmra.mxu0 %v621
      %v830 = vpop.f32.mrf.mxu0
      %v831 = vadd.f32 %v279, %v830
      %v832 = vpop.f32.mrf.mxu0
      %v833 = vadd.f32 %v279, %v832
      %834 = vmatmul.bf16.gmra.mxu0 %v624
      %v835 = vpop.f32.mrf.mxu0
      %v836 = vadd.f32 %v279, %v835
      %v837 = vpop.f32.mrf.mxu0
      %v838 = vadd.f32 %v279, %v837
      %839 = vmatmul.bf16.gmra.mxu0 %v627
      %v840 = vpop.f32.mrf.mxu0
      %v841 = vadd.f32 %v279, %v840
      %v842 = vpop.f32.mrf.mxu0
      %v843 = vadd.f32 %v279, %v842
      %844 = vmatmul.bf16.gmra.mxu0 %v630
      %v845 = vpop.f32.mrf.mxu0
      %v846 = vadd.f32 %v279, %v845
      %v847 = vpop.f32.mrf.mxu0
      %v848 = vadd.f32 %v279, %v847
      %849 = vmatmul.bf16.gmra.mxu0 %v633
      %v850 = vpop.f32.mrf.mxu0
      %v851 = vadd.f32 %v279, %v850
      %v852 = vpop.f32.mrf.mxu0
      %v853 = vadd.f32 %v279, %v852
      %854 = vmatmul.bf16.gmra.mxu0 %v636
      %v855 = vpop.f32.mrf.mxu0
      %v856 = vadd.f32 %v279, %v855
      %v857 = vpop.f32.mrf.mxu0
      %v858 = vadd.f32 %v279, %v857
      %859 = vmatmul.bf16.gmra.mxu0 %v639
      %v860 = vpop.f32.mrf.mxu0
      %v861 = vadd.f32 %v279, %v860
      %v862 = vpop.f32.mrf.mxu0
      %v863 = vadd.f32 %v279, %v862
      %864 = vmatmul.bf16.gmra.mxu0 %v642
      %v865 = vpop.f32.mrf.mxu0
      %v866 = vadd.f32 %v279, %v865
      %v867 = vpop.f32.mrf.mxu0
      %v868 = vadd.f32 %v279, %v867
      %869 = vmatmul.bf16.gmra.mxu0 %v645
      %v870 = vpop.f32.mrf.mxu0
      %v871 = vadd.f32 %v279, %v870
      %v872 = vpop.f32.mrf.mxu0
      %v873 = vadd.f32 %v279, %v872
      %874 = vmatmul.bf16.gmra.mxu0 %v648
      %v875 = vpop.f32.mrf.mxu0
      %v876 = vadd.f32 %v279, %v875
      %v877 = vpop.f32.mrf.mxu0
      %v878 = vadd.f32 %v279, %v877
      %879 = vmatmul.bf16.gmra.mxu0 %v651
      %v880 = vpop.f32.mrf.mxu0
      %v881 = vadd.f32 %v279, %v880
      %v882 = vpop.f32.mrf.mxu0
      %v883 = vadd.f32 %v279, %v882
      %884 = vmatmul.bf16.gmra.mxu0 %v654
      %v885 = vpop.f32.mrf.mxu0
      %v886 = vadd.f32 %v279, %v885
      %v887 = vpop.f32.mrf.mxu0
      %v888 = vadd.f32 %v279, %v887
      %889 = vmatmul.bf16.gmra.mxu0 %v657
      %v890 = vpop.f32.mrf.mxu0
      %v891 = vadd.f32 %v279, %v890
      %v892 = vpop.f32.mrf.mxu0
      %v893 = vadd.f32 %v279, %v892
      %894 = vmatmul.bf16.gmra.mxu0 %v660
      %v895 = vpop.f32.mrf.mxu0
      %v896 = vadd.f32 %v279, %v895
      %v897 = vpop.f32.mrf.mxu0
      %v898 = vadd.f32 %v279, %v897
      %899 = vmatmul.bf16.gmra.mxu0 %v663
      %v900 = vpop.f32.mrf.mxu0
      %v901 = vadd.f32 %v279, %v900
      %v902 = vpop.f32.mrf.mxu0
      %v903 = vadd.f32 %v279, %v902
      %904 = vmatmul.bf16.gmra.mxu0 %v666
      %v905 = vpop.f32.mrf.mxu0
      %v906 = vadd.f32 %v279, %v905
      %v907 = vpop.f32.mrf.mxu0
      %v908 = vadd.f32 %v279, %v907
      %909 = vmatmul.bf16.gmra.mxu0 %v669
      %v910 = vpop.f32.mrf.mxu0
      %v911 = vadd.f32 %v279, %v910
      %v912 = vpop.f32.mrf.mxu0
      %v913 = vadd.f32 %v279, %v912
      %914 = vmatmul.bf16.gmra.mxu0 %v672
      %v915 = vpop.f32.mrf.mxu0
      %v916 = vadd.f32 %v279, %v915
      %v917 = vpop.f32.mrf.mxu0
      %v918 = vadd.f32 %v279, %v917
      %919 = vmatmul.bf16.gmra.mxu0 %v675
      %v920 = vpop.f32.mrf.mxu0
      %v921 = vadd.f32 %v279, %v920
      %v922 = vpop.f32.mrf.mxu0
      %v923 = vadd.f32 %v279, %v922
      %924 = vmatmul.bf16.gmra.mxu0 %v678
      %v925 = vpop.f32.mrf.mxu0
      %v926 = vadd.f32 %v279, %v925
      %v927 = vpop.f32.mrf.mxu0
      %v928 = vadd.f32 %v279, %v927
      %929 = vmatmul.bf16.gmra.mxu0 %v681
      %v930 = vpop.f32.mrf.mxu0
      %v931 = vadd.f32 %v279, %v930
      %v932 = vpop.f32.mrf.mxu0
      %v933 = vadd.f32 %v279, %v932
      %934 = vmatmul.bf16.gmra.mxu0 %v684
      %v935 = vpop.f32.mrf.mxu0
      %v936 = vadd.f32 %v279, %v935
      %v937 = vpop.f32.mrf.mxu0
      %v938 = vadd.f32 %v279, %v937
      %939 = vdwg.mxu0
      %v940 = vsub.f32 0.0, %v696
      %v941 = vsub.f32 0.0, %v698
      %v942 = vsub.f32 0.0, %v701
      %v943 = vsub.f32 0.0, %v703
      %v944 = vsub.f32 0.0, %v706
      %v945 = vsub.f32 0.0, %v708
      %v946 = vsub.f32 0.0, %v711
      %v947 = vsub.f32 0.0, %v713
      %v948 = vsub.f32 0.0, %v716
      %v949 = vsub.f32 0.0, %v718
      %v950 = vsub.f32 0.0, %v721
      %v951 = vsub.f32 0.0, %v723
      %v952 = vsub.f32 0.0, %v726
      %v953 = vsub.f32 0.0, %v728
      %v954 = vsub.f32 0.0, %v731
      %v955 = vsub.f32 0.0, %v733
      %v956 = vsub.f32 0.0, %v736
      %v957 = vsub.f32 0.0, %v738
      %v958 = vsub.f32 0.0, %v741
      %v959 = vsub.f32 0.0, %v743
      %v960 = vsub.f32 0.0, %v746
      %v961 = vsub.f32 0.0, %v748
      %v962 = vsub.f32 0.0, %v751
      %v963 = vsub.f32 0.0, %v753
      %v964 = vsub.f32 0.0, %v756
      %v965 = vsub.f32 0.0, %v758
      %v966 = vsub.f32 0.0, %v761
      %v967 = vsub.f32 0.0, %v763
      %v968 = vsub.f32 0.0, %v766
      %v969 = vsub.f32 0.0, %v768
      %v970 = vsub.f32 0.0, %v771
      %v971 = vsub.f32 0.0, %v773
      %v972 = vsub.f32 0.0, %v776
      %v973 = vsub.f32 0.0, %v778
      %v974 = vsub.f32 0.0, %v781
      %v975 = vsub.f32 0.0, %v783
      %v976 = vsub.f32 0.0, %v786
      %v977 = vsub.f32 0.0, %v788
      %v978 = vsub.f32 0.0, %v791
      %v979 = vsub.f32 0.0, %v793
      %v980 = vsub.f32 0.0, %v796
      %v981 = vsub.f32 0.0, %v798
      %v982 = vsub.f32 0.0, %v801
      %v983 = vsub.f32 0.0, %v803
      %v984 = vsub.f32 0.0, %v806
      %v985 = vsub.f32 0.0, %v808
      %v986 = vsub.f32 0.0, %v811
      %v987 = vsub.f32 0.0, %v813
      %v988 = vsub.f32 0.0, %v816
      %v989 = vsub.f32 0.0, %v818
      %v990 = vsub.f32 0.0, %v821
      %v991 = vsub.f32 0.0, %v823
      %v992 = vsub.f32 0.0, %v826
      %v993 = vsub.f32 0.0, %v828
      %v994 = vsub.f32 0.0, %v831
      %v995 = vsub.f32 0.0, %v833
      %v996 = vsub.f32 0.0, %v836
      %v997 = vsub.f32 0.0, %v838
      %v998 = vsub.f32 0.0, %v841
      %v999 = vsub.f32 0.0, %v843
      %v1000 = vsub.f32 0.0, %v846
      %v1001 = vsub.f32 0.0, %v848
      %v1002 = vsub.f32 0.0, %v851
      %v1003 = vsub.f32 0.0, %v853
      %v1004 = vsub.f32 0.0, %v856
      %v1005 = vsub.f32 0.0, %v858
      %v1006 = vsub.f32 0.0, %v861
      %v1007 = vsub.f32 0.0, %v863
      %v1008 = vsub.f32 0.0, %v866
      %v1009 = vsub.f32 0.0, %v868
      %v1010 = vsub.f32 0.0, %v871
      %v1011 = vsub.f32 0.0, %v873
      %v1012 = vsub.f32 0.0, %v876
      %v1013 = vsub.f32 0.0, %v878
      %v1014 = vsub.f32 0.0, %v881
      %v1015 = vsub.f32 0.0, %v883
      %v1016 = vsub.f32 0.0, %v886
      %v1017 = vsub.f32 0.0, %v888
      %v1018 = vsub.f32 0.0, %v891
      %v1019 = vsub.f32 0.0, %v893
      %v1020 = vsub.f32 0.0, %v896
      %v1021 = vsub.f32 0.0, %v898
      %v1022 = vsub.f32 0.0, %v901
      %v1023 = vsub.f32 0.0, %v903
      %v1024 = vsub.f32 0.0, %v906
      %v1025 = vsub.f32 0.0, %v908
      %v1026 = vsub.f32 0.0, %v911
      %v1027 = vsub.f32 0.0, %v913
      %v1028 = vsub.f32 0.0, %v916
      %v1029 = vsub.f32 0.0, %v918
      %v1030 = vsub.f32 0.0, %v921
      %v1031 = vsub.f32 0.0, %v923
      %v1032 = vsub.f32 0.0, %v926
      %v1033 = vsub.f32 0.0, %v928
      %v1034 = vsub.f32 0.0, %v931
      %v1035 = vsub.f32 0.0, %v933
      %v1036 = vsub.f32 0.0, %v936
      %v1037 = vsub.f32 0.0, %v938
      %v1038 = vmul.f32 %v940, 1.442695
      %v1039 = vpow.pop %v1038
      %v1040 = vmul.f32 %v941, 1.442695
      %v1041 = vpow.pop %v1040
      %v1042 = vmul.f32 %v942, 1.442695
      %v1043 = vpow.pop %v1042
      %v1044 = vmul.f32 %v943, 1.442695
      %v1045 = vpow.pop %v1044
      %v1046 = vmul.f32 %v944, 1.442695
      %v1047 = vpow.pop %v1046
      %v1048 = vmul.f32 %v945, 1.442695
      %v1049 = vpow.pop %v1048
      %v1050 = vmul.f32 %v946, 1.442695
      %v1051 = vpow.pop %v1050
      %v1052 = vmul.f32 %v947, 1.442695
      %v1053 = vpow.pop %v1052
      %v1054 = vmul.f32 %v948, 1.442695
      %v1055 = vpow.pop %v1054
      %v1056 = vmul.f32 %v949, 1.442695
      %v1057 = vpow.pop %v1056
      %v1058 = vmul.f32 %v950, 1.442695
      %v1059 = vpow.pop %v1058
      %v1060 = vmul.f32 %v951, 1.442695
      %v1061 = vpow.pop %v1060
      %v1062 = vmul.f32 %v952, 1.442695
      %v1063 = vpow.pop %v1062
      %v1064 = vmul.f32 %v953, 1.442695
      %v1065 = vpow.pop %v1064
      %v1066 = vmul.f32 %v954, 1.442695
      %v1067 = vpow.pop %v1066
      %v1068 = vmul.f32 %v955, 1.442695
      %v1069 = vpow.pop %v1068
      %v1070 = vmul.f32 %v956, 1.442695
      %v1071 = vpow.pop %v1070
      %v1072 = vmul.f32 %v957, 1.442695
      %v1073 = vpow.pop %v1072
      %v1074 = vmul.f32 %v958, 1.442695
      %v1075 = vpow.pop %v1074
      %v1076 = vmul.f32 %v959, 1.442695
      %v1077 = vpow.pop %v1076
      %v1078 = vmul.f32 %v960, 1.442695
      %v1079 = vpow.pop %v1078
      %v1080 = vmul.f32 %v961, 1.442695
      %v1081 = vpow.pop %v1080
      %v1082 = vmul.f32 %v962, 1.442695
      %v1083 = vpow.pop %v1082
      %v1084 = vmul.f32 %v963, 1.442695
      %v1085 = vpow.pop %v1084
      %v1086 = vmul.f32 %v964, 1.442695
      %v1087 = vpow.pop %v1086
      %v1088 = vmul.f32 %v965, 1.442695
      %v1089 = vpow.pop %v1088
      %v1090 = vmul.f32 %v966, 1.442695
      %v1091 = vpow.pop %v1090
      %v1092 = vmul.f32 %v967, 1.442695
      %v1093 = vpow.pop %v1092
      %v1094 = vmul.f32 %v968, 1.442695
      %v1095 = vpow.pop %v1094
      %v1096 = vmul.f32 %v969, 1.442695
      %v1097 = vpow.pop %v1096
      %v1098 = vmul.f32 %v970, 1.442695
      %v1099 = vpow.pop %v1098
      %v1100 = vmul.f32 %v971, 1.442695
      %v1101 = vpow.pop %v1100
      %v1102 = vmul.f32 %v972, 1.442695
      %v1103 = vpow.pop %v1102
      %v1104 = vmul.f32 %v973, 1.442695
      %v1105 = vpow.pop %v1104
      %v1106 = vmul.f32 %v974, 1.442695
      %v1107 = vpow.pop %v1106
      %v1108 = vmul.f32 %v975, 1.442695
      %v1109 = vpow.pop %v1108
      %v1110 = vmul.f32 %v976, 1.442695
      %v1111 = vpow.pop %v1110
      %v1112 = vmul.f32 %v977, 1.442695
      %v1113 = vpow.pop %v1112
      %v1114 = vmul.f32 %v978, 1.442695
      %v1115 = vpow.pop %v1114
      %v1116 = vmul.f32 %v979, 1.442695
      %v1117 = vpow.pop %v1116
      %v1118 = vmul.f32 %v980, 1.442695
      %v1119 = vpow.pop %v1118
      %v1120 = vmul.f32 %v981, 1.442695
      %v1121 = vpow.pop %v1120
      %v1122 = vmul.f32 %v982, 1.442695
      %v1123 = vpow.pop %v1122
      %v1124 = vmul.f32 %v983, 1.442695
      %v1125 = vpow.pop %v1124
      %v1126 = vmul.f32 %v984, 1.442695
      %v1127 = vpow.pop %v1126
      %v1128 = vmul.f32 %v985, 1.442695
      %v1129 = vpow.pop %v1128
      %v1130 = vmul.f32 %v986, 1.442695
      %v1131 = vpow.pop %v1130
      %v1132 = vmul.f32 %v987, 1.442695
      %v1133 = vpow.pop %v1132
      %v1134 = vmul.f32 %v988, 1.442695
      %v1135 = vpow.pop %v1134
      %v1136 = vmul.f32 %v989, 1.442695
      %v1137 = vpow.pop %v1136
      %v1138 = vmul.f32 %v990, 1.442695
      %v1139 = vpow.pop %v1138
      %v1140 = vmul.f32 %v991, 1.442695
      %v1141 = vpow.pop %v1140
      %v1142 = vmul.f32 %v992, 1.442695
      %v1143 = vpow.pop %v1142
      %v1144 = vmul.f32 %v993, 1.442695
      %v1145 = vpow.pop %v1144
      %v1146 = vmul.f32 %v994, 1.442695
      %v1147 = vpow.pop %v1146
      %v1148 = vmul.f32 %v995, 1.442695
      %v1149 = vpow.pop %v1148
      %v1150 = vmul.f32 %v996, 1.442695
      %v1151 = vpow.pop %v1150
      %v1152 = vmul.f32 %v997, 1.442695
      %v1153 = vpow.pop %v1152
      %v1154 = vmul.f32 %v998, 1.442695
      %v1155 = vpow.pop %v1154
      %v1156 = vmul.f32 %v999, 1.442695
      %v1157 = vpow.pop %v1156
      %v1158 = vmul.f32 %v1000, 1.442695
      %v1159 = vpow.pop %v1158
      %v1160 = vmul.f32 %v1001, 1.442695
      %v1161 = vpow.pop %v1160
      %v1162 = vmul.f32 %v1002, 1.442695
      %v1163 = vpow.pop %v1162
      %v1164 = vmul.f32 %v1003, 1.442695
      %v1165 = vpow.pop %v1164
      %v1166 = vmul.f32 %v1004, 1.442695
      %v1167 = vpow.pop %v1166
      %v1168 = vmul.f32 %v1005, 1.442695
      %v1169 = vpow.pop %v1168
      %v1170 = vmul.f32 %v1006, 1.442695
      %v1171 = vpow.pop %v1170
      %v1172 = vmul.f32 %v1007, 1.442695
      %v1173 = vpow.pop %v1172
      %v1174 = vmul.f32 %v1008, 1.442695
      %v1175 = vpow.pop %v1174
      %v1176 = vmul.f32 %v1009, 1.442695
      %v1177 = vpow.pop %v1176
      %v1178 = vmul.f32 %v1010, 1.442695
      %v1179 = vpow.pop %v1178
      %v1180 = vmul.f32 %v1011, 1.442695
      %v1181 = vpow.pop %v1180
      %v1182 = vmul.f32 %v1012, 1.442695
      %v1183 = vpow.pop %v1182
      %v1184 = vmul.f32 %v1013, 1.442695
      %v1185 = vpow.pop %v1184
      %v1186 = vmul.f32 %v1014, 1.442695
      %v1187 = vpow.pop %v1186
      %v1188 = vmul.f32 %v1015, 1.442695
      %v1189 = vpow.pop %v1188
      %v1190 = vmul.f32 %v1016, 1.442695
      %v1191 = vpow.pop %v1190
      %v1192 = vmul.f32 %v1017, 1.442695
      %v1193 = vpow.pop %v1192
      %v1194 = vmul.f32 %v1018, 1.442695
      %v1195 = vpow.pop %v1194
      %v1196 = vmul.f32 %v1019, 1.442695
      %v1197 = vpow.pop %v1196
      %v1198 = vmul.f32 %v1020, 1.442695
      %v1199 = vpow.pop %v1198
      %v1200 = vmul.f32 %v1021, 1.442695
      %v1201 = vpow.pop %v1200
      %v1202 = vmul.f32 %v1022, 1.442695
      %v1203 = vpow.pop %v1202
      %v1204 = vmul.f32 %v1023, 1.442695
      %v1205 = vpow.pop %v1204
      %v1206 = vmul.f32 %v1024, 1.442695
      %v1207 = vpow.pop %v1206
      %v1208 = vmul.f32 %v1025, 1.442695
      %v1209 = vpow.pop %v1208
      %v1210 = vmul.f32 %v1026, 1.442695
      %v1211 = vpow.pop %v1210
      %v1212 = vmul.f32 %v1027, 1.442695
      %v1213 = vpow.pop %v1212
      %v1214 = vmul.f32 %v1028, 1.442695
      %v1215 = vpow.pop %v1214
      %v1216 = vmul.f32 %v1029, 1.442695
      %v1217 = vpow.pop %v1216
      %v1218 = vmul.f32 %v1030, 1.442695
      %v1219 = vpow.pop %v1218
      %v1220 = vmul.f32 %v1031, 1.442695
      %v1221 = vpow.pop %v1220
      %v1222 = vmul.f32 %v1032, 1.442695
      %v1223 = vpow.pop %v1222
      %v1224 = vmul.f32 %v1033, 1.442695
      %v1225 = vpow.pop %v1224
      %v1226 = vmul.f32 %v1034, 1.442695
      %v1227 = vpow.pop %v1226
      %v1228 = vmul.f32 %v1035, 1.442695
      %v1229 = vpow.pop %v1228
      %v1230 = vmul.f32 %v1036, 1.442695
      %v1231 = vpow.pop %v1230
      %v1232 = vmul.f32 %v1037, 1.442695
      %v1233 = vpow.pop %v1232
      %v1234 = vadd.f32 %v1039, 1.0
      %v1235 = vadd.f32 %v1041, 1.0
      %v1236 = vadd.f32 %v1043, 1.0
      %v1237 = vadd.f32 %v1045, 1.0
      %v1238 = vadd.f32 %v1047, 1.0
      %v1239 = vadd.f32 %v1049, 1.0
      %v1240 = vadd.f32 %v1051, 1.0
      %v1241 = vadd.f32 %v1053, 1.0
      %v1242 = vadd.f32 %v1055, 1.0
      %v1243 = vadd.f32 %v1057, 1.0
      %v1244 = vadd.f32 %v1059, 1.0
      %v1245 = vadd.f32 %v1061, 1.0
      %v1246 = vadd.f32 %v1063, 1.0
      %v1247 = vadd.f32 %v1065, 1.0
      %v1248 = vadd.f32 %v1067, 1.0
      %v1249 = vadd.f32 %v1069, 1.0
      %v1250 = vadd.f32 %v1071, 1.0
      %v1251 = vadd.f32 %v1073, 1.0
      %v1252 = vadd.f32 %v1075, 1.0
      %v1253 = vadd.f32 %v1077, 1.0
      %v1254 = vadd.f32 %v1079, 1.0
      %v1255 = vadd.f32 %v1081, 1.0
      %v1256 = vadd.f32 %v1083, 1.0
      %v1257 = vadd.f32 %v1085, 1.0
      %v1258 = vadd.f32 %v1087, 1.0
      %v1259 = vadd.f32 %v1089, 1.0
      %v1260 = vadd.f32 %v1091, 1.0
      %v1261 = vadd.f32 %v1093, 1.0
      %v1262 = vadd.f32 %v1095, 1.0
      %v1263 = vadd.f32 %v1097, 1.0
      %v1264 = vadd.f32 %v1099, 1.0
      %v1265 = vadd.f32 %v1101, 1.0
      %v1266 = vadd.f32 %v1103, 1.0
      %v1267 = vadd.f32 %v1105, 1.0
      %v1268 = vadd.f32 %v1107, 1.0
      %v1269 = vadd.f32 %v1109, 1.0
      %v1270 = vadd.f32 %v1111, 1.0
      %v1271 = vadd.f32 %v1113, 1.0
      %v1272 = vadd.f32 %v1115, 1.0
      %v1273 = vadd.f32 %v1117, 1.0
      %v1274 = vadd.f32 %v1119, 1.0
      %v1275 = vadd.f32 %v1121, 1.0
      %v1276 = vadd.f32 %v1123, 1.0
      %v1277 = vadd.f32 %v1125, 1.0
      %v1278 = vadd.f32 %v1127, 1.0
      %v1279 = vadd.f32 %v1129, 1.0
      %v1280 = vadd.f32 %v1131, 1.0
      %v1281 = vadd.f32 %v1133, 1.0
      %v1282 = vadd.f32 %v1135, 1.0
      %v1283 = vadd.f32 %v1137, 1.0
      %v1284 = vadd.f32 %v1139, 1.0
      %v1285 = vadd.f32 %v1141, 1.0
      %v1286 = vadd.f32 %v1143, 1.0
      %v1287 = vadd.f32 %v1145, 1.0
      %v1288 = vadd.f32 %v1147, 1.0
      %v1289 = vadd.f32 %v1149, 1.0
      %v1290 = vadd.f32 %v1151, 1.0
      %v1291 = vadd.f32 %v1153, 1.0
      %v1292 = vadd.f32 %v1155, 1.0
      %v1293 = vadd.f32 %v1157, 1.0
      %v1294 = vadd.f32 %v1159, 1.0
      %v1295 = vadd.f32 %v1161, 1.0
      %v1296 = vadd.f32 %v1163, 1.0
      %v1297 = vadd.f32 %v1165, 1.0
      %v1298 = vadd.f32 %v1167, 1.0
      %v1299 = vadd.f32 %v1169, 1.0
      %v1300 = vadd.f32 %v1171, 1.0
      %v1301 = vadd.f32 %v1173, 1.0
      %v1302 = vadd.f32 %v1175, 1.0
      %v1303 = vadd.f32 %v1177, 1.0
      %v1304 = vadd.f32 %v1179, 1.0
      %v1305 = vadd.f32 %v1181, 1.0
      %v1306 = vadd.f32 %v1183, 1.0
      %v1307 = vadd.f32 %v1185, 1.0
      %v1308 = vadd.f32 %v1187, 1.0
      %v1309 = vadd.f32 %v1189, 1.0
      %v1310 = vadd.f32 %v1191, 1.0
      %v1311 = vadd.f32 %v1193, 1.0
      %v1312 = vadd.f32 %v1195, 1.0
      %v1313 = vadd.f32 %v1197, 1.0
      %v1314 = vadd.f32 %v1199, 1.0
      %v1315 = vadd.f32 %v1201, 1.0
      %v1316 = vadd.f32 %v1203, 1.0
      %v1317 = vadd.f32 %v1205, 1.0
      %v1318 = vadd.f32 %v1207, 1.0
      %v1319 = vadd.f32 %v1209, 1.0
      %v1320 = vadd.f32 %v1211, 1.0
      %v1321 = vadd.f32 %v1213, 1.0
      %v1322 = vadd.f32 %v1215, 1.0
      %v1323 = vadd.f32 %v1217, 1.0
      %v1324 = vadd.f32 %v1219, 1.0
      %v1325 = vadd.f32 %v1221, 1.0
      %v1326 = vadd.f32 %v1223, 1.0
      %v1327 = vadd.f32 %v1225, 1.0
      %v1328 = vadd.f32 %v1227, 1.0
      %v1329 = vadd.f32 %v1229, 1.0
      %v1330 = vadd.f32 %v1231, 1.0
      %v1331 = vadd.f32 %v1233, 1.0
      %v1332 = vrcp.pop %v1234
      %v1333 = vrcp.pop %v1235
      %v1334 = vrcp.pop %v1236
      %v1335 = vrcp.pop %v1237
      %v1336 = vrcp.pop %v1238
      %v1337 = vrcp.pop %v1239
      %v1338 = vrcp.pop %v1240
      %v1339 = vrcp.pop %v1241
      %v1340 = vrcp.pop %v1242
      %v1341 = vrcp.pop %v1243
      %v1342 = vrcp.pop %v1244
      %v1343 = vrcp.pop %v1245
      %v1344 = vrcp.pop %v1246
      %v1345 = vrcp.pop %v1247
      %v1346 = vrcp.pop %v1248
      %v1347 = vrcp.pop %v1249
      %v1348 = vrcp.pop %v1250
      %v1349 = vrcp.pop %v1251
      %v1350 = vrcp.pop %v1252
      %v1351 = vrcp.pop %v1253
      %v1352 = vrcp.pop %v1254
      %v1353 = vrcp.pop %v1255
      %v1354 = vrcp.pop %v1256
      %v1355 = vrcp.pop %v1257
      %v1356 = vrcp.pop %v1258
      %v1357 = vrcp.pop %v1259
      %v1358 = vrcp.pop %v1260
      %v1359 = vrcp.pop %v1261
      %v1360 = vrcp.pop %v1262
      %v1361 = vrcp.pop %v1263
      %v1362 = vrcp.pop %v1264
      %v1363 = vrcp.pop %v1265
      %v1364 = vrcp.pop %v1266
      %v1365 = vrcp.pop %v1267
      %v1366 = vrcp.pop %v1268
      %v1367 = vrcp.pop %v1269
      %v1368 = vrcp.pop %v1270
      %v1369 = vrcp.pop %v1271
      %v1370 = vrcp.pop %v1272
      %v1371 = vrcp.pop %v1273
      %v1372 = vrcp.pop %v1274
      %v1373 = vrcp.pop %v1275
      %v1374 = vrcp.pop %v1276
      %v1375 = vrcp.pop %v1277
      %v1376 = vrcp.pop %v1278
      %v1377 = vrcp.pop %v1279
      %v1378 = vrcp.pop %v1280
      %v1379 = vrcp.pop %v1281
      %v1380 = vrcp.pop %v1282
      %v1381 = vrcp.pop %v1283
      %v1382 = vrcp.pop %v1284
      %v1383 = vrcp.pop %v1285
      %v1384 = vrcp.pop %v1286
      %v1385 = vrcp.pop %v1287
      %v1386 = vrcp.pop %v1288
      %v1387 = vrcp.pop %v1289
      %v1388 = vrcp.pop %v1290
      %v1389 = vrcp.pop %v1291
      %v1390 = vrcp.pop %v1292
      %v1391 = vrcp.pop %v1293
      %v1392 = vrcp.pop %v1294
      %v1393 = vrcp.pop %v1295
      %v1394 = vrcp.pop %v1296
      %v1395 = vrcp.pop %v1297
      %v1396 = vrcp.pop %v1298
      %v1397 = vrcp.pop %v1299
      %v1398 = vrcp.pop %v1300
      %v1399 = vrcp.pop %v1301
      %v1400 = vrcp.pop %v1302
      %v1401 = vrcp.pop %v1303
      %v1402 = vrcp.pop %v1304
      %v1403 = vrcp.pop %v1305
      %v1404 = vrcp.pop %v1306
      %v1405 = vrcp.pop %v1307
      %v1406 = vrcp.pop %v1308
      %v1407 = vrcp.pop %v1309
      %v1408 = vrcp.pop %v1310
      %v1409 = vrcp.pop %v1311
      %v1410 = vrcp.pop %v1312
      %v1411 = vrcp.pop %v1313
      %v1412 = vrcp.pop %v1314
      %v1413 = vrcp.pop %v1315
      %v1414 = vrcp.pop %v1316
      %v1415 = vrcp.pop %v1317
      %v1416 = vrcp.pop %v1318
      %v1417 = vrcp.pop %v1319
      %v1418 = vrcp.pop %v1320
      %v1419 = vrcp.pop %v1321
      %v1420 = vrcp.pop %v1322
      %v1421 = vrcp.pop %v1323
      %v1422 = vrcp.pop %v1324
      %v1423 = vrcp.pop %v1325
      %v1424 = vrcp.pop %v1326
      %v1425 = vrcp.pop %v1327
      %v1426 = vrcp.pop %v1328
      %v1427 = vrcp.pop %v1329
      %v1428 = vrcp.pop %v1330
      %v1429 = vrcp.pop %v1331
      %v1430 = vmax.f32 %v1332, 0.0
      %v1431 = vmax.f32 %v1333, 0.0
      %v1432 = vmax.f32 %v1334, 0.0
      %v1433 = vmax.f32 %v1335, 0.0
      %v1434 = vmax.f32 %v1336, 0.0
      %v1435 = vmax.f32 %v1337, 0.0
      %v1436 = vmax.f32 %v1338, 0.0
      %v1437 = vmax.f32 %v1339, 0.0
      %v1438 = vmax.f32 %v1340, 0.0
      %v1439 = vmax.f32 %v1341, 0.0
      %v1440 = vmax.f32 %v1342, 0.0
      %v1441 = vmax.f32 %v1343, 0.0
      %v1442 = vmax.f32 %v1344, 0.0
      %v1443 = vmax.f32 %v1345, 0.0
      %v1444 = vmax.f32 %v1346, 0.0
      %v1445 = vmax.f32 %v1347, 0.0
      %v1446 = vmax.f32 %v1348, 0.0
      %v1447 = vmax.f32 %v1349, 0.0
      %v1448 = vmax.f32 %v1350, 0.0
      %v1449 = vmax.f32 %v1351, 0.0
      %v1450 = vmax.f32 %v1352, 0.0
      %v1451 = vmax.f32 %v1353, 0.0
      %v1452 = vmax.f32 %v1354, 0.0
      %v1453 = vmax.f32 %v1355, 0.0
      %v1454 = vmax.f32 %v1356, 0.0
      %v1455 = vmax.f32 %v1357, 0.0
      %v1456 = vmax.f32 %v1358, 0.0
      %v1457 = vmax.f32 %v1359, 0.0
      %v1458 = vmax.f32 %v1360, 0.0
      %v1459 = vmax.f32 %v1361, 0.0
      %v1460 = vmax.f32 %v1362, 0.0
      %v1461 = vmax.f32 %v1363, 0.0
      %v1462 = vmax.f32 %v1364, 0.0
      %v1463 = vmax.f32 %v1365, 0.0
      %v1464 = vmax.f32 %v1366, 0.0
      %v1465 = vmax.f32 %v1367, 0.0
      %v1466 = vmax.f32 %v1368, 0.0
      %v1467 = vmax.f32 %v1369, 0.0
      %v1468 = vmax.f32 %v1370, 0.0
      %v1469 = vmax.f32 %v1371, 0.0
      %v1470 = vmax.f32 %v1372, 0.0
      %v1471 = vmax.f32 %v1373, 0.0
      %v1472 = vmax.f32 %v1374, 0.0
      %v1473 = vmax.f32 %v1375, 0.0
      %v1474 = vmax.f32 %v1376, 0.0
      %v1475 = vmax.f32 %v1377, 0.0
      %v1476 = vmax.f32 %v1378, 0.0
      %v1477 = vmax.f32 %v1379, 0.0
      %v1478 = vmax.f32 %v1380, 0.0
      %v1479 = vmax.f32 %v1381, 0.0
      %v1480 = vmax.f32 %v1382, 0.0
      %v1481 = vmax.f32 %v1383, 0.0
      %v1482 = vmax.f32 %v1384, 0.0
      %v1483 = vmax.f32 %v1385, 0.0
      %v1484 = vmax.f32 %v1386, 0.0
      %v1485 = vmax.f32 %v1387, 0.0
      %v1486 = vmax.f32 %v1388, 0.0
      %v1487 = vmax.f32 %v1389, 0.0
      %v1488 = vmax.f32 %v1390, 0.0
      %v1489 = vmax.f32 %v1391, 0.0
      %v1490 = vmax.f32 %v1392, 0.0
      %v1491 = vmax.f32 %v1393, 0.0
      %v1492 = vmax.f32 %v1394, 0.0
      %v1493 = vmax.f32 %v1395, 0.0
      %v1494 = vmax.f32 %v1396, 0.0
      %v1495 = vmax.f32 %v1397, 0.0
      %v1496 = vmax.f32 %v1398, 0.0
      %v1497 = vmax.f32 %v1399, 0.0
      %v1498 = vmax.f32 %v1400, 0.0
      %v1499 = vmax.f32 %v1401, 0.0
      %v1500 = vmax.f32 %v1402, 0.0
      %v1501 = vmax.f32 %v1403, 0.0
      %v1502 = vmax.f32 %v1404, 0.0
      %v1503 = vmax.f32 %v1405, 0.0
      %v1504 = vmax.f32 %v1406, 0.0
      %v1505 = vmax.f32 %v1407, 0.0
      %v1506 = vmax.f32 %v1408, 0.0
      %v1507 = vmax.f32 %v1409, 0.0
      %v1508 = vmax.f32 %v1410, 0.0
      %v1509 = vmax.f32 %v1411, 0.0
      %v1510 = vmax.f32 %v1412, 0.0
      %v1511 = vmax.f32 %v1413, 0.0
      %v1512 = vmax.f32 %v1414, 0.0
      %v1513 = vmax.f32 %v1415, 0.0
      %v1514 = vmax.f32 %v1416, 0.0
      %v1515 = vmax.f32 %v1417, 0.0
      %v1516 = vmax.f32 %v1418, 0.0
      %v1517 = vmax.f32 %v1419, 0.0
      %v1518 = vmax.f32 %v1420, 0.0
      %v1519 = vmax.f32 %v1421, 0.0
      %v1520 = vmax.f32 %v1422, 0.0
      %v1521 = vmax.f32 %v1423, 0.0
      %v1522 = vmax.f32 %v1424, 0.0
      %v1523 = vmax.f32 %v1425, 0.0
      %v1524 = vmax.f32 %v1426, 0.0
      %v1525 = vmax.f32 %v1427, 0.0
      %v1526 = vmax.f32 %v1428, 0.0
      %v1527 = vmax.f32 %v1429, 0.0
      %v1528 = vmin.f32 %v1430, 1.0
      %v1529 = vmin.f32 %v1431, 1.0
      %v1530 = vmin.f32 %v1432, 1.0
      %v1531 = vmin.f32 %v1433, 1.0
      %v1532 = vmin.f32 %v1434, 1.0
      %v1533 = vmin.f32 %v1435, 1.0
      %v1534 = vmin.f32 %v1436, 1.0
      %v1535 = vmin.f32 %v1437, 1.0
      %v1536 = vmin.f32 %v1438, 1.0
      %v1537 = vmin.f32 %v1439, 1.0
      %v1538 = vmin.f32 %v1440, 1.0
      %v1539 = vmin.f32 %v1441, 1.0
      %v1540 = vmin.f32 %v1442, 1.0
      %v1541 = vmin.f32 %v1443, 1.0
      %v1542 = vmin.f32 %v1444, 1.0
      %v1543 = vmin.f32 %v1445, 1.0
      %v1544 = vmin.f32 %v1446, 1.0
      %v1545 = vmin.f32 %v1447, 1.0
      %v1546 = vmin.f32 %v1448, 1.0
      %v1547 = vmin.f32 %v1449, 1.0
      %v1548 = vmin.f32 %v1450, 1.0
      %v1549 = vmin.f32 %v1451, 1.0
      %v1550 = vmin.f32 %v1452, 1.0
      %v1551 = vmin.f32 %v1453, 1.0
      %v1552 = vmin.f32 %v1454, 1.0
      %v1553 = vmin.f32 %v1455, 1.0
      %v1554 = vmin.f32 %v1456, 1.0
      %v1555 = vmin.f32 %v1457, 1.0
      %v1556 = vmin.f32 %v1458, 1.0
      %v1557 = vmin.f32 %v1459, 1.0
      %v1558 = vmin.f32 %v1460, 1.0
      %v1559 = vmin.f32 %v1461, 1.0
      %v1560 = vmin.f32 %v1462, 1.0
      %v1561 = vmin.f32 %v1463, 1.0
      %v1562 = vmin.f32 %v1464, 1.0
      %v1563 = vmin.f32 %v1465, 1.0
      %v1564 = vmin.f32 %v1466, 1.0
      %v1565 = vmin.f32 %v1467, 1.0
      %v1566 = vmin.f32 %v1468, 1.0
      %v1567 = vmin.f32 %v1469, 1.0
      %v1568 = vmin.f32 %v1470, 1.0
      %v1569 = vmin.f32 %v1471, 1.0
      %v1570 = vmin.f32 %v1472, 1.0
      %v1571 = vmin.f32 %v1473, 1.0
      %v1572 = vmin.f32 %v1474, 1.0
      %v1573 = vmin.f32 %v1475, 1.0
      %v1574 = vmin.f32 %v1476, 1.0
      %v1575 = vmin.f32 %v1477, 1.0
      %v1576 = vmin.f32 %v1478, 1.0
      %v1577 = vmin.f32 %v1479, 1.0
      %v1578 = vmin.f32 %v1480, 1.0
      %v1579 = vmin.f32 %v1481, 1.0
      %v1580 = vmin.f32 %v1482, 1.0
      %v1581 = vmin.f32 %v1483, 1.0
      %v1582 = vmin.f32 %v1484, 1.0
      %v1583 = vmin.f32 %v1485, 1.0
      %v1584 = vmin.f32 %v1486, 1.0
      %v1585 = vmin.f32 %v1487, 1.0
      %v1586 = vmin.f32 %v1488, 1.0
      %v1587 = vmin.f32 %v1489, 1.0
      %v1588 = vmin.f32 %v1490, 1.0
      %v1589 = vmin.f32 %v1491, 1.0
      %v1590 = vmin.f32 %v1492, 1.0
      %v1591 = vmin.f32 %v1493, 1.0
      %v1592 = vmin.f32 %v1494, 1.0
      %v1593 = vmin.f32 %v1495, 1.0
      %v1594 = vmin.f32 %v1496, 1.0
      %v1595 = vmin.f32 %v1497, 1.0
      %v1596 = vmin.f32 %v1498, 1.0
      %v1597 = vmin.f32 %v1499, 1.0
      %v1598 = vmin.f32 %v1500, 1.0
      %v1599 = vmin.f32 %v1501, 1.0
      %v1600 = vmin.f32 %v1502, 1.0
      %v1601 = vmin.f32 %v1503, 1.0
      %v1602 = vmin.f32 %v1504, 1.0
      %v1603 = vmin.f32 %v1505, 1.0
      %v1604 = vmin.f32 %v1506, 1.0
      %v1605 = vmin.f32 %v1507, 1.0
      %v1606 = vmin.f32 %v1508, 1.0
      %v1607 = vmin.f32 %v1509, 1.0
      %v1608 = vmin.f32 %v1510, 1.0
      %v1609 = vmin.f32 %v1511, 1.0
      %v1610 = vmin.f32 %v1512, 1.0
      %v1611 = vmin.f32 %v1513, 1.0
      %v1612 = vmin.f32 %v1514, 1.0
      %v1613 = vmin.f32 %v1515, 1.0
      %v1614 = vmin.f32 %v1516, 1.0
      %v1615 = vmin.f32 %v1517, 1.0
      %v1616 = vmin.f32 %v1518, 1.0
      %v1617 = vmin.f32 %v1519, 1.0
      %v1618 = vmin.f32 %v1520, 1.0
      %v1619 = vmin.f32 %v1521, 1.0
      %v1620 = vmin.f32 %v1522, 1.0
      %v1621 = vmin.f32 %v1523, 1.0
      %v1622 = vmin.f32 %v1524, 1.0
      %v1623 = vmin.f32 %v1525, 1.0
      %v1624 = vmin.f32 %v1526, 1.0
      %v1625 = vmin.f32 %v1527, 1.0
      %vm1626 = vcmask 130048
      %1627 = vst.msk [vmem:[%s172] sm:$0xff] %vm1626, %v1528
      %1628 = vst.msk [vmem:[%s172 + $0x8] sm:$0xff] %vm1626, %v1529
      %1629 = vst.msk [vmem:[%s172 + $0x10] sm:$0xff] %vm1626, %v1530
      %1630 = vst.msk [vmem:[%s172 + $0x18] sm:$0xff] %vm1626, %v1531
      %1631 = vst.msk [vmem:[%s172 + $0x20] sm:$0xff] %vm1626, %v1532
      %1632 = vst.msk [vmem:[%s172 + $0x28] sm:$0xff] %vm1626, %v1533
      %1633 = vst.msk [vmem:[%s172 + $0x30] sm:$0xff] %vm1626, %v1534
      %1634 = vst.msk [vmem:[%s172 + $0x38] sm:$0xff] %vm1626, %v1535
      %1635 = vst.msk [vmem:[%s172 + $0x40] sm:$0xff] %vm1626, %v1536
      %1636 = vst.msk [vmem:[%s172 + $0x48] sm:$0xff] %vm1626, %v1537
      %1637 = vst.msk [vmem:[%s172 + $0x50] sm:$0xff] %vm1626, %v1538
      %1638 = vst.msk [vmem:[%s172 + $0x58] sm:$0xff] %vm1626, %v1539
      %1639 = vst.msk [vmem:[%s172 + $0x60] sm:$0xff] %vm1626, %v1540
      %1640 = vst.msk [vmem:[%s172 + $0x68] sm:$0xff] %vm1626, %v1541
      %1641 = vst.msk [vmem:[%s172 + $0x70] sm:$0xff] %vm1626, %v1542
      %1642 = vst.msk [vmem:[%s172 + $0x78] sm:$0xff] %vm1626, %v1543
      %1643 = vst.msk [vmem:[%s172 + $0x80] sm:$0xff] %vm1626, %v1544
      %1644 = vst.msk [vmem:[%s172 + $0x88] sm:$0xff] %vm1626, %v1545
      %1645 = vst.msk [vmem:[%s172 + $0x90] sm:$0xff] %vm1626, %v1546
      %1646 = vst.msk [vmem:[%s172 + $0x98] sm:$0xff] %vm1626, %v1547
      %1647 = vst.msk [vmem:[%s172 + $0xa0] sm:$0xff] %vm1626, %v1548
      %1648 = vst.msk [vmem:[%s172 + $0xa8] sm:$0xff] %vm1626, %v1549
      %1649 = vst.msk [vmem:[%s172 + $0xb0] sm:$0xff] %vm1626, %v1550
      %1650 = vst.msk [vmem:[%s172 + $0xb8] sm:$0xff] %vm1626, %v1551
      %1651 = vst.msk [vmem:[%s172 + $0xc0] sm:$0xff] %vm1626, %v1552
      %1652 = vst.msk [vmem:[%s172 + $0xc8] sm:$0xff] %vm1626, %v1553
      %1653 = vst.msk [vmem:[%s172 + $0xd0] sm:$0xff] %vm1626, %v1554
      %1654 = vst.msk [vmem:[%s172 + $0xd8] sm:$0xff] %vm1626, %v1555
      %1655 = vst.msk [vmem:[%s172 + $0xe0] sm:$0xff] %vm1626, %v1556
      %1656 = vst.msk [vmem:[%s172 + $0xe8] sm:$0xff] %vm1626, %v1557
      %1657 = vst.msk [vmem:[%s172 + $0xf0] sm:$0xff] %vm1626, %v1558
      %1658 = vst.msk [vmem:[%s172 + $0xf8] sm:$0xff] %vm1626, %v1559
      %1659 = vst.msk [vmem:[%s172 + $0x100] sm:$0xff] %vm1626, %v1560
      %1660 = vst.msk [vmem:[%s172 + $0x108] sm:$0xff] %vm1626, %v1561
      %1661 = vst.msk [vmem:[%s172 + $0x110] sm:$0xff] %vm1626, %v1562
      %1662 = vst.msk [vmem:[%s172 + $0x118] sm:$0xff] %vm1626, %v1563
      %1663 = vst.msk [vmem:[%s172 + $0x120] sm:$0xff] %vm1626, %v1564
      %1664 = vst.msk [vmem:[%s172 + $0x128] sm:$0xff] %vm1626, %v1565
      %1665 = vst.msk [vmem:[%s172 + $0x130] sm:$0xff] %vm1626, %v1566
      %1666 = vst.msk [vmem:[%s172 + $0x138] sm:$0xff] %vm1626, %v1567
      %1667 = vst.msk [vmem:[%s172 + $0x140] sm:$0xff] %vm1626, %v1568
      %1668 = vst.msk [vmem:[%s172 + $0x148] sm:$0xff] %vm1626, %v1569
      %1669 = vst.msk [vmem:[%s172 + $0x150] sm:$0xff] %vm1626, %v1570
      %1670 = vst.msk [vmem:[%s172 + $0x158] sm:$0xff] %vm1626, %v1571
      %1671 = vst.msk [vmem:[%s172 + $0x160] sm:$0xff] %vm1626, %v1572
      %1672 = vst.msk [vmem:[%s172 + $0x168] sm:$0xff] %vm1626, %v1573
      %1673 = vst.msk [vmem:[%s172 + $0x170] sm:$0xff] %vm1626, %v1574
      %1674 = vst.msk [vmem:[%s172 + $0x178] sm:$0xff] %vm1626, %v1575
      %1675 = vst.msk [vmem:[%s172 + $0x180] sm:$0xff] %vm1626, %v1576
      %1676 = vst.msk [vmem:[%s172 + $0x188] sm:$0xff] %vm1626, %v1577
      %1677 = vst.msk [vmem:[%s172 + $0x190] sm:$0xff] %vm1626, %v1578
      %1678 = vst.msk [vmem:[%s172 + $0x198] sm:$0xff] %vm1626, %v1579
      %1679 = vst.msk [vmem:[%s172 + $0x1a0] sm:$0xff] %vm1626, %v1580
      %1680 = vst.msk [vmem:[%s172 + $0x1a8] sm:$0xff] %vm1626, %v1581
      %1681 = vst.msk [vmem:[%s172 + $0x1b0] sm:$0xff] %vm1626, %v1582
      %1682 = vst.msk [vmem:[%s172 + $0x1b8] sm:$0xff] %vm1626, %v1583
      %1683 = vst.msk [vmem:[%s172 + $0x1c0] sm:$0xff] %vm1626, %v1584
      %1684 = vst.msk [vmem:[%s172 + $0x1c8] sm:$0xff] %vm1626, %v1585
      %1685 = vst.msk [vmem:[%s172 + $0x1d0] sm:$0xff] %vm1626, %v1586
      %1686 = vst.msk [vmem:[%s172 + $0x1d8] sm:$0xff] %vm1626, %v1587
      %1687 = vst.msk [vmem:[%s172 + $0x1e0] sm:$0xff] %vm1626, %v1588
      %1688 = vst.msk [vmem:[%s172 + $0x1e8] sm:$0xff] %vm1626, %v1589
      %1689 = vst.msk [vmem:[%s172 + $0x1f0] sm:$0xff] %vm1626, %v1590
      %1690 = vst.msk [vmem:[%s172 + $0x1f8] sm:$0xff] %vm1626, %v1591
      %1691 = vst.msk [vmem:[%s172 + $0x200] sm:$0xff] %vm1626, %v1592
      %1692 = vst.msk [vmem:[%s172 + $0x208] sm:$0xff] %vm1626, %v1593
      %1693 = vst.msk [vmem:[%s172 + $0x210] sm:$0xff] %vm1626, %v1594
      %1694 = vst.msk [vmem:[%s172 + $0x218] sm:$0xff] %vm1626, %v1595
      %1695 = vst.msk [vmem:[%s172 + $0x220] sm:$0xff] %vm1626, %v1596
      %1696 = vst.msk [vmem:[%s172 + $0x228] sm:$0xff] %vm1626, %v1597
      %1697 = vst.msk [vmem:[%s172 + $0x230] sm:$0xff] %vm1626, %v1598
      %1698 = vst.msk [vmem:[%s172 + $0x238] sm:$0xff] %vm1626, %v1599
      %1699 = vst.msk [vmem:[%s172 + $0x240] sm:$0xff] %vm1626, %v1600
      %1700 = vst.msk [vmem:[%s172 + $0x248] sm:$0xff] %vm1626, %v1601
      %1701 = vst.msk [vmem:[%s172 + $0x250] sm:$0xff] %vm1626, %v1602
      %1702 = vst.msk [vmem:[%s172 + $0x258] sm:$0xff] %vm1626, %v1603
      %1703 = vst.msk [vmem:[%s172 + $0x260] sm:$0xff] %vm1626, %v1604
      %1704 = vst.msk [vmem:[%s172 + $0x268] sm:$0xff] %vm1626, %v1605
      %1705 = vst.msk [vmem:[%s172 + $0x270] sm:$0xff] %vm1626, %v1606
      %1706 = vst.msk [vmem:[%s172 + $0x278] sm:$0xff] %vm1626, %v1607
      %1707 = vst.msk [vmem:[%s172 + $0x280] sm:$0xff] %vm1626, %v1608
      %1708 = vst.msk [vmem:[%s172 + $0x288] sm:$0xff] %vm1626, %v1609
      %1709 = vst.msk [vmem:[%s172 + $0x290] sm:$0xff] %vm1626, %v1610
      %1710 = vst.msk [vmem:[%s172 + $0x298] sm:$0xff] %vm1626, %v1611
      %1711 = vst.msk [vmem:[%s172 + $0x2a0] sm:$0xff] %vm1626, %v1612
      %1712 = vst.msk [vmem:[%s172 + $0x2a8] sm:$0xff] %vm1626, %v1613
      %1713 = vst.msk [vmem:[%s172 + $0x2b0] sm:$0xff] %vm1626, %v1614
      %1714 = vst.msk [vmem:[%s172 + $0x2b8] sm:$0xff] %vm1626, %v1615
      %1715 = vst.msk [vmem:[%s172 + $0x2c0] sm:$0xff] %vm1626, %v1616
      %1716 = vst.msk [vmem:[%s172 + $0x2c8] sm:$0xff] %vm1626, %v1617
      %1717 = vst.msk [vmem:[%s172 + $0x2d0] sm:$0xff] %vm1626, %v1618
      %1718 = vst.msk [vmem:[%s172 + $0x2d8] sm:$0xff] %vm1626, %v1619
      %1719 = vst.msk [vmem:[%s172 + $0x2e0] sm:$0xff] %vm1626, %v1620
      %1720 = vst.msk [vmem:[%s172 + $0x2e8] sm:$0xff] %vm1626, %v1621
      %1721 = vst.msk [vmem:[%s172 + $0x2f0] sm:$0xff] %vm1626, %v1622
      %1722 = vst.msk [vmem:[%s172 + $0x2f8] sm:$0xff] %vm1626, %v1623
      %1723 = vst.msk [vmem:[%s172 + $0x300] sm:$0xff] %vm1626, %v1624
      %1724 = vst.msk [vmem:[%s172 + $0x308] sm:$0xff] %vm1626, %v1625
      %s1725 = smul.u32 98, %s14
      %p1726 = scmp.lt.s32.totalorder %s1725, 195
      %s1727 = scalar_select %p1726, %s1725, 195
      %s1728 = smul.addr %s1727, 8
      %s1729 = scalar_lea.vmem %s3, %s1728
      // Predicated region
      $region33: #{autoencoder4x_forward.11} parent=31 // pred_check
        %p1730 = pneg %p100
      $region34: #{autoencoder4x_forward.11} parent=31 // pred_check_branch
        %1732 = sbr.rel (%p1730) target = $region36
      $region35: #{autoencoder4x_forward.11} parent=31 // pred_region
        %s1733 = smul.u32 98, %s14
      $region36: #{autoencoder4x_forward.11} parent=31 // pred_fallthru
        _
    $region32: #{autoencoder4x_forward.11} parent=5 // pred_fallthru
      _
    %p1734 = scmp.le.s32.totalorder 2, %s9
    // Predicated region
    $region37: #{autoencoder4x_forward.11} parent=5 // pred_check
      %p1735 = pneg %p1734
    $region38: #{autoencoder4x_forward.11} parent=5 // pred_check_branch
      %1737 = sbr.rel (%p1735) target = $region40
    $region39: #{autoencoder4x_forward.11} parent=5 // pred_region
      %s1738 = ssub.s32 %s9, 2
      // Predicated region
      $region41: #{autoencoder4x_forward.11} parent=39 // pred_check
        %p1739 = pneg %p106
      $region42: #{autoencoder4x_forward.11} parent=39 // pred_check_branch
        %1741 = sbr.rel (%p1739) target = $region44
      $region43: #{autoencoder4x_forward.11} parent=39 // pred_region
        %s1742 = smul.u32 98, %s15
        %p1743 = scmp.lt.s32.totalorder %s1742, 195
        %s1744 = scalar_select %p1743, %s1742, 195
        %s1745 = smul.addr %s1744, 8
        %s1746 = scalar_lea.vmem %s3, %s1745
      $region44: #{autoencoder4x_forward.11} parent=39 // pred_fallthru
        _
    $region40: #{autoencoder4x_forward.11} parent=5 // pred_fallthru
      _
  $region6: #{autoencoder4x_forward.11} parent=0 // loop_footer
    %s13 = sadd.s32 1, %s9
  $region7: #{autoencoder4x_forward.11} parent=0 // loop_footer_branch
    %8 = sbr.rel target = $region3
  $region8: #{autoencoder4x_forward.11} parent=0 // loop_exit
    _

</llo_original>
